<compile_context>
chip_gen: v6e
topology: v6e:2x2x1
jax: 0.10.0
libtpu: 0.0.40
codegen_flags: <defaults>
</compile_context>

<pallas_src>
import jax
import jax.numpy as jnp
import numpy as np
from jax.experimental import pallas as pl
from jax.experimental.pallas import tpu as pltpu


def _leaky_relu(x, slope=0.01):
    return jnp.where(x > 0, x, slope * x)


def ddpg_critic_kernel(obs_ref, act_ref,
                       w1_ref, b1_ref,
                       w2a_ref, w2x_ref, b2_ref,
                       w3_ref, b3_ref,
                       w4_ref, b4_ref,
                       w5_ref, b5_ref,
                       out_ref):
    # Matmul operand dtype follows the stored weights (bf16 default, f32 fallback);
    # accumulation and all element-wise math stay f32.
    cdt = w1_ref.dtype

    # obs_x: Linear(obs_dim, 1024) + ReLU
    x = jnp.dot(obs_ref[...].astype(cdt), w1_ref[...],
                preferred_element_type=jnp.float32) + b1_ref[...]
    x = jnp.maximum(x, 0.0)

    # _critic[0]: Linear(act_dim + 1024, 512) -- split weight realizes the concat.
    h = (jnp.dot(act_ref[...].astype(cdt), w2a_ref[...],
                 preferred_element_type=jnp.float32)
         + jnp.dot(x.astype(cdt), w2x_ref[...],
                   preferred_element_type=jnp.float32)
         + b2_ref[...])
    h = _leaky_relu(h)

    # _critic[2]: Linear(512, 256) + LeakyReLU
    h = jnp.dot(h.astype(cdt), w3_ref[...],
                preferred_element_type=jnp.float32) + b3_ref[...]
    h = _leaky_relu(h)

    # _critic[4]: Linear(256, 128) + LeakyReLU
    h = jnp.dot(h.astype(cdt), w4_ref[...],
                preferred_element_type=jnp.float32) + b4_ref[...]
    h = _leaky_relu(h)

    # _critic[6]: Linear(128, 1) -- N=1 matmul replaced by VPU multiply + XLU lane reduce.
    q = jnp.sum(h * w5_ref[...].astype(jnp.float32), axis=-1) + b5_ref[0, 0]   # (tile_b,)
    # Lane-dense store: (1, 1, tile_b) row instead of a (tile_b, 1) column.
    out_ref[...] = q[None, None, :].astype(out_ref.dtype)


def _choose_tile_b(batch):
    """Pick an MXU-aligned batch tile.

    Priorities (lexicographic):
      1. >= 2 grid tiles whenever batch > 128, so v7x's two TensorCores both get work.
      2. Minimal padding waste (no MXU cycles on discarded rows).
      3. Larger tiles to amortise per-grid-step overhead and MXU pipeline fill.
      4. Even tile count (balanced megacore split).
    """
    if batch <= 128:
        # One small, sublane-aligned tile; splitting below 128 rows just starves the MXU.
        return max(8, ((batch + 7) // 8) * 8)
    best_key, best_tile = None, None
    for t in (128, 256, 512, 1024):
        n = -(-batch // t)                  # ceil-div
        waste = n * t - batch
        key = (n < 2, waste, -t, n % 2)
        if best_key is None or key < best_key:
            best_key, best_tile = key, t
    return best_tile


def ddpg_critic_forward(obs_n, action_n, params, *, tile_b=None):
    (w1, b1, w2a, w2x, b2, w3, b3, w4, b4, w5t, b5) = params
    B, obs_dim = obs_n.shape
    act_dim = action_n.shape[1]

    if tile_b is None:
        tile_b = _choose_tile_b(B)
    num_tiles = pl.cdiv(B, tile_b)
    padded_b = num_tiles * tile_b
    if padded_b != B:
        obs_n = jnp.pad(obs_n, ((0, padded_b - B), (0, 0)))
        action_n = jnp.pad(action_n, ((0, padded_b - B), (0, 0)))

    def batched(dim):
        return pl.BlockSpec((tile_b, dim), lambda i: (i, 0))

    def run(single_buffer_weights):
        if single_buffer_weights:
            # Constant index_map -> block fetched once; no need to double-buffer it.
            def resident(arr):
                return pl.BlockSpec(arr.shape, lambda i: (0, 0),
                                    pipeline_mode=pl.Buffered(1))
        else:
            def resident(arr):
                return pl.BlockSpec(arr.shape, lambda i: (0, 0))

        in_specs = [
            batched(obs_dim),                 # obs tile
            batched(act_dim),                 # action tile
            resident(w1), resident(b1),
            resident(w2a), resident(w2x), resident(b2),
            resident(w3), resident(b3),
            resident(w4), resident(b4),
            resident(w5t),
            pl.BlockSpec((1, 1), lambda i: (0, 0),
                         memory_space=pltpu.MemorySpace.SMEM),   # b5 scalar in SMEM
        ]

        return pl.pallas_call(
            ddpg_critic_kernel,
            # Lane-dense (1, 1, tile_b) output blocks; last two dims equal the array dims.
            out_shape=jax.ShapeDtypeStruct((num_tiles, 1, tile_b), jnp.float32),
            grid=(num_tiles,),
            in_specs=in_specs,
            out_specs=pl.BlockSpec((1, 1, tile_b), lambda i: (i, 0, 0)),
            compiler_params=pltpu.CompilerParams(
                dimension_semantics=("parallel",),   # v7x: shard batch tiles over both TCs
                # tile_b is capped at 1024 -> intermediates stay well under 32 MiB,
                # which also fits v7x's 64 MiB/TC physical VMEM with headroom.
                vmem_limit_bytes=32 << 20,
            ),
        )(obs_n, action_n, w1, b1, w2a, w2x, b2, w3, b3, w4, b4, w5t, b5)

    try:
        out = run(True)
    except Exception:
        # pipeline_mode=pl.Buffered(1) not supported by this JAX build: fall back to the
        # default double-buffered (still resident) weight blocks.
        out = run(False)

    return out.reshape(padded_b, 1)[:B]


def init_params(key, obs_dim, act_dim, *, weight_dtype=jnp.bfloat16):
    """nn.Linear-style U(-1/sqrt(fan_in), 1/sqrt(fan_in)) init, weights stored (in, out).
    Matmul weights stored in `weight_dtype` (bf16 default; pass jnp.float32 for exact
    parity with the f32 torch module); biases + final row stay f32. Last layer
    zero-filled exactly as in the PyTorch module."""
    def linear(k, fan_in, fan_out):
        kw, kb = jax.random.split(k)
        bound = 1.0 / np.sqrt(fan_in)
        w = jax.random.uniform(kw, (fan_in, fan_out), jnp.float32, -bound, bound)
        b = jax.random.uniform(kb, (1, fan_out), jnp.float32, -bound, bound)
        return w.astype(weight_dtype), b

    k1, k2, k3, k4 = jax.random.split(key, 4)
    w1, b1 = linear(k1, obs_dim, 1024)               # obs_x Linear
    w2, b2 = linear(k2, act_dim + 1024, 512)         # _critic[0]
    w2a, w2x = w2[:act_dim, :], w2[act_dim:, :]      # split for the concat
    w3, b3 = linear(k3, 512, 256)                    # _critic[2]
    w4, b4 = linear(k4, 256, 128)                    # _critic[4]
    w5t = jnp.zeros((1, 128), jnp.float32)           # _critic[6] weight row, zero-filled
    b5 = jnp.zeros((1, 1), jnp.float32)              # _critic[6] bias, zero-filled
    return (w1, b1, w2a, w2x, b2, w3, b3, w4, b4, w5t, b5)


def reference_forward(obs_n, action_n, params, *, bf16_matmul=True):
    (w1, b1, w2a, w2x, b2, w3, b3, w4, b4, w5t, b5) = params
    mm_dt = jnp.bfloat16 if bf16_matmul else jnp.float32

    def mm(a, w):
        return jnp.dot(a.astype(mm_dt), w.astype(mm_dt),
                       preferred_element_type=jnp.float32)

    x = jnp.maximum(mm(obs_n, w1) + b1, 0.0)
    h = _leaky_relu(mm(action_n, w2a) + mm(x, w2x) + b2)
    h = _leaky_relu(mm(h, w3) + b3)
    h = _leaky_relu(mm(h, w4) + b4)
    return jnp.sum(h * w5t.astype(jnp.float32), axis=-1, keepdims=True) + b5[0, 0]


if __name__ == "__main__":
    B, OBS_DIM, ACT_DIM = 8, 16, 8

    key = jax.random.PRNGKey(0)
    k_obs, k_act, k_par, k_last = jax.random.split(key, 4)
    obs_n = jax.random.normal(k_obs, (B, OBS_DIM), jnp.float32)
    action_n = jax.random.normal(k_act, (B, ACT_DIM), jnp.float32)

    # Module-faithful params (last layer zero-initialized, as in the PyTorch module).
    params = init_params(k_par, OBS_DIM, ACT_DIM)
    out = jax.block_until_ready(ddpg_critic_forward(obs_n, action_n, params))
    assert out.shape == (B, 1)
    ref = reference_forward(obs_n, action_n, params)
    assert np.allclose(np.asarray(out), np.asarray(ref), atol=1e-3), "mismatch (zero head)"

    # Exercise the full numeric path with a non-zero final layer.
    w5t_nz = jax.random.uniform(k_last, (1, 128), jnp.float32, -0.1, 0.1)
    b5_nz = jnp.full((1, 1), 0.05, jnp.float32)
    params_nz = params[:-2] + (w5t_nz, b5_nz)

    out_nz = jax.block_until_ready(ddpg_critic_forward(obs_n, action_n, params_nz))
    ref_matched = reference_forward(obs_n, action_n, params_nz)                     # bf16 matmuls
    ref_f32 = reference_forward(obs_n, action_n, params_nz, bf16_matmul=False)      # f32 reference
    assert np.allclose(np.asarray(out_nz), np.asarray(ref_matched), atol=1e-3), \
        "mismatch vs precision-matched reference"
    assert np.allclose(np.asarray(out_nz), np.asarray(ref_f32), atol=1e-2, rtol=1e-2), \
        "mismatch vs f32 reference (bf16 drift too large)"

    # Multi-step grid + padding path with an explicit small tile: B not a multiple of it.
    B2 = 40
    k_o2, k_a2 = jax.random.split(jax.random.PRNGKey(1))
    obs2 = jax.random.normal(k_o2, (B2, OBS_DIM), jnp.float32)
    act2 = jax.random.normal(k_a2, (B2, ACT_DIM), jnp.float32)
    out2 = jax.block_until_ready(ddpg_critic_forward(obs2, act2, params_nz, tile_b=16))
    ref2 = reference_forward(obs2, act2, params_nz)
    assert out2.shape == (B2, 1)
    assert np.allclose(np.asarray(out2), np.asarray(ref2), atol=1e-3), \
        "mismatch on gridded/padded batch"

    # Auto tile chooser: B=300 -> tile_b=128, 3 tiles (minimal padding, megacore-splittable).
    B3 = 300
    assert _choose_tile_b(B3) == 128
    k_o3, k_a3 = jax.random.split(jax.random.PRNGKey(2))
    obs3 = jax.random.normal(k_o3, (B3, OBS_DIM), jnp.float32)
    act3 = jax.random.normal(k_a3, (B3, ACT_DIM), jnp.float32)
    out3 = jax.block_until_ready(ddpg_critic_forward(obs3, act3, params_nz))
    ref3 = reference_forward(obs3, act3, params_nz)
    assert out3.shape == (B3, 1)
    assert np.allclose(np.asarray(out3), np.asarray(ref3), atol=1e-3), \
        "mismatch on auto-tiled batch"

    print("KERNEL_OK")
</pallas_src>

<mosaic_0001>
module attributes {stable_mosaic.version = 11 : i64} {
  func.func @ddpg_critic_kernel(%arg0: i32, %arg1: memref<8x16xf32, #tpu.memory_space<vmem>>, %arg2: memref<8x8xf32, #tpu.memory_space<vmem>>, %arg3: memref<16x1024xbf16, #tpu.memory_space<vmem>>, %arg4: memref<1x1024xf32, #tpu.memory_space<vmem>>, %arg5: memref<8x512xbf16, #tpu.memory_space<vmem>>, %arg6: memref<1024x512xbf16, #tpu.memory_space<vmem>>, %arg7: memref<1x512xf32, #tpu.memory_space<vmem>>, %arg8: memref<512x256xbf16, #tpu.memory_space<vmem>>, %arg9: memref<1x256xf32, #tpu.memory_space<vmem>>, %arg10: memref<256x128xbf16, #tpu.memory_space<vmem>>, %arg11: memref<1x128xf32, #tpu.memory_space<vmem>>, %arg12: memref<1x128xf32, #tpu.memory_space<vmem>>, %arg13: memref<1x1xf32, #tpu.memory_space<smem>>, %arg14: memref<1x1x8xf32, #tpu.memory_space<vmem>>) attributes {dimension_semantics = [#tpu.dimension_semantics<parallel>], iteration_bounds = array<i64: 1>, scalar_prefetch = 0 : i64, scratch_operands = 0 : i64, tpu.core_type = #tpu.core_type<tc>, window_params = [{transform_indices = @transform_0, window_bounds = array<i64: 8, 16>}, {transform_indices = @transform_1, window_bounds = array<i64: 8, 8>}, {pipeline_mode = #tpu.pipeline_mode<synchronous>, transform_indices = @transform_2, window_bounds = array<i64: 16, 1024>}, {pipeline_mode = #tpu.pipeline_mode<synchronous>, transform_indices = @transform_3, window_bounds = array<i64: 1, 1024>}, {pipeline_mode = #tpu.pipeline_mode<synchronous>, transform_indices = @transform_4, window_bounds = array<i64: 8, 512>}, {pipeline_mode = #tpu.pipeline_mode<synchronous>, transform_indices = @transform_5, window_bounds = array<i64: 1024, 512>}, {pipeline_mode = #tpu.pipeline_mode<synchronous>, transform_indices = @transform_6, window_bounds = array<i64: 1, 512>}, {pipeline_mode = #tpu.pipeline_mode<synchronous>, transform_indices = @transform_7, window_bounds = array<i64: 512, 256>}, {pipeline_mode = #tpu.pipeline_mode<synchronous>, transform_indices = @transform_8, window_bounds = array<i64: 1, 256>}, {pipeline_mode = #tpu.pipeline_mode<synchronous>, transform_indices = @transform_9, window_bounds = array<i64: 256, 128>}, {pipeline_mode = #tpu.pipeline_mode<synchronous>, transform_indices = @transform_10, window_bounds = array<i64: 1, 128>}, {pipeline_mode = #tpu.pipeline_mode<synchronous>, transform_indices = @transform_11, window_bounds = array<i64: 1, 128>}, {transform_indices = @transform_12, window_bounds = array<i64: 1, 1>}, {transform_indices = @transform_13, window_bounds = array<i64: 1, 1, 8>}]} {
    %c0 = arith.constant 0 : index
    %c0_0 = arith.constant 0 : index
    %0 = vector.load %arg1[%c0, %c0_0] : memref<8x16xf32, #tpu.memory_space<vmem>>, vector<8x16xf32>
    %1 = arith.truncf %0 : vector<8x16xf32> to vector<8x16xbf16>
    %c0_1 = arith.constant 0 : index
    %c0_2 = arith.constant 0 : index
    %2 = vector.load %arg3[%c0_1, %c0_2] : memref<16x1024xbf16, #tpu.memory_space<vmem>>, vector<16x1024xbf16>
    %cst = arith.constant dense<0.000000e+00> : vector<8x1024xf32>
    %3 = tpu.matmul %1, %2, %cst {dimension_numbers = #tpu.dot_dimension_numbers<[1], [0], [0], [1], [0, 0, 1, 1], [], []>} : vector<8x16xbf16>, vector<16x1024xbf16>, vector<8x1024xf32> -> vector<8x1024xf32>
    %c0_3 = arith.constant 0 : index
    %c0_4 = arith.constant 0 : index
    %4 = vector.load %arg4[%c0_3, %c0_4] : memref<1x1024xf32, #tpu.memory_space<vmem>>, vector<1x1024xf32>
    %5 = vector.broadcast %4 : vector<1x1024xf32> to vector<8x1024xf32>
    %6 = arith.addf %3, %5 : vector<8x1024xf32>
    %cst_5 = arith.constant 0.000000e+00 : f32
    %7 = vector.broadcast %cst_5 : f32 to vector<8x1024xf32>
    %8 = arith.maximumf %6, %7 : vector<8x1024xf32>
    %c0_6 = arith.constant 0 : index
    %c0_7 = arith.constant 0 : index
    %9 = vector.load %arg2[%c0_6, %c0_7] : memref<8x8xf32, #tpu.memory_space<vmem>>, vector<8x8xf32>
    %10 = arith.truncf %9 : vector<8x8xf32> to vector<8x8xbf16>
    %c0_8 = arith.constant 0 : index
    %c0_9 = arith.constant 0 : index
    %11 = vector.load %arg5[%c0_8, %c0_9] : memref<8x512xbf16, #tpu.memory_space<vmem>>, vector<8x512xbf16>
    %cst_10 = arith.constant dense<0.000000e+00> : vector<8x512xf32>
    %12 = tpu.matmul %10, %11, %cst_10 {dimension_numbers = #tpu.dot_dimension_numbers<[1], [0], [0], [1], [0, 0, 1, 1], [], []>} : vector<8x8xbf16>, vector<8x512xbf16>, vector<8x512xf32> -> vector<8x512xf32>
    %13 = arith.truncf %8 : vector<8x1024xf32> to vector<8x1024xbf16>
    %c0_11 = arith.constant 0 : index
    %c0_12 = arith.constant 0 : index
    %14 = vector.load %arg6[%c0_11, %c0_12] : memref<1024x512xbf16, #tpu.memory_space<vmem>>, vector<1024x512xbf16>
    %cst_13 = arith.constant dense<0.000000e+00> : vector<8x512xf32>
    %15 = tpu.matmul %13, %14, %cst_13 {dimension_numbers = #tpu.dot_dimension_numbers<[1], [0], [0], [1], [0, 0, 1, 1], [], []>} : vector<8x1024xbf16>, vector<1024x512xbf16>, vector<8x512xf32> -> vector<8x512xf32>
    %16 = arith.addf %12, %15 : vector<8x512xf32>
    %c0_14 = arith.constant 0 : index
    %c0_15 = arith.constant 0 : index
    %17 = vector.load %arg7[%c0_14, %c0_15] : memref<1x512xf32, #tpu.memory_space<vmem>>, vector<1x512xf32>
    %18 = vector.broadcast %17 : vector<1x512xf32> to vector<8x512xf32>
    %19 = arith.addf %16, %18 : vector<8x512xf32>
    %cst_16 = arith.constant 0.000000e+00 : f32
    %20 = vector.broadcast %cst_16 : f32 to vector<8x512xf32>
    %21 = arith.cmpf ogt, %19, %20 : vector<8x512xf32>
    %cst_17 = arith.constant 0.00999999977 : f32
    %22 = vector.broadcast %cst_17 : f32 to vector<8x512xf32>
    %23 = arith.mulf %22, %19 : vector<8x512xf32>
    %24 = arith.select %21, %19, %23 : vector<8x512xi1>, vector<8x512xf32>
    %25 = arith.truncf %24 : vector<8x512xf32> to vector<8x512xbf16>
    %c0_18 = arith.constant 0 : index
    %c0_19 = arith.constant 0 : index
    %26 = vector.load %arg8[%c0_18, %c0_19] : memref<512x256xbf16, #tpu.memory_space<vmem>>, vector<512x256xbf16>
    %cst_20 = arith.constant dense<0.000000e+00> : vector<8x256xf32>
    %27 = tpu.matmul %25, %26, %cst_20 {dimension_numbers = #tpu.dot_dimension_numbers<[1], [0], [0], [1], [0, 0, 1, 1], [], []>} : vector<8x512xbf16>, vector<512x256xbf16>, vector<8x256xf32> -> vector<8x256xf32>
    %c0_21 = arith.constant 0 : index
    %c0_22 = arith.constant 0 : index
    %28 = vector.load %arg9[%c0_21, %c0_22] : memref<1x256xf32, #tpu.memory_space<vmem>>, vector<1x256xf32>
    %29 = vector.broadcast %28 : vector<1x256xf32> to vector<8x256xf32>
    %30 = arith.addf %27, %29 : vector<8x256xf32>
    %cst_23 = arith.constant 0.000000e+00 : f32
    %31 = vector.broadcast %cst_23 : f32 to vector<8x256xf32>
    %32 = arith.cmpf ogt, %30, %31 : vector<8x256xf32>
    %cst_24 = arith.constant 0.00999999977 : f32
    %33 = vector.broadcast %cst_24 : f32 to vector<8x256xf32>
    %34 = arith.mulf %33, %30 : vector<8x256xf32>
    %35 = arith.select %32, %30, %34 : vector<8x256xi1>, vector<8x256xf32>
    %36 = arith.truncf %35 : vector<8x256xf32> to vector<8x256xbf16>
    %c0_25 = arith.constant 0 : index
    %c0_26 = arith.constant 0 : index
    %37 = vector.load %arg10[%c0_25, %c0_26] : memref<256x128xbf16, #tpu.memory_space<vmem>>, vector<256x128xbf16>
    %cst_27 = arith.constant dense<0.000000e+00> : vector<8x128xf32>
    %38 = tpu.matmul %36, %37, %cst_27 {dimension_numbers = #tpu.dot_dimension_numbers<[1], [0], [0], [1], [0, 0, 1, 1], [], []>} : vector<8x256xbf16>, vector<256x128xbf16>, vector<8x128xf32> -> vector<8x128xf32>
    %c0_28 = arith.constant 0 : index
    %c0_29 = arith.constant 0 : index
    %39 = vector.load %arg11[%c0_28, %c0_29] : memref<1x128xf32, #tpu.memory_space<vmem>>, vector<1x128xf32>
    %40 = vector.broadcast %39 : vector<1x128xf32> to vector<8x128xf32>
    %41 = arith.addf %38, %40 : vector<8x128xf32>
    %cst_30 = arith.constant 0.000000e+00 : f32
    %42 = vector.broadcast %cst_30 : f32 to vector<8x128xf32>
    %43 = arith.cmpf ogt, %41, %42 : vector<8x128xf32>
    %cst_31 = arith.constant 0.00999999977 : f32
    %44 = vector.broadcast %cst_31 : f32 to vector<8x128xf32>
    %45 = arith.mulf %44, %41 : vector<8x128xf32>
    %46 = arith.select %43, %41, %45 : vector<8x128xi1>, vector<8x128xf32>
    %c0_32 = arith.constant 0 : index
    %c0_33 = arith.constant 0 : index
    %47 = vector.load %arg12[%c0_32, %c0_33] : memref<1x128xf32, #tpu.memory_space<vmem>>, vector<1x128xf32>
    %48 = vector.broadcast %47 : vector<1x128xf32> to vector<8x128xf32>
    %49 = arith.mulf %46, %48 : vector<8x128xf32>
    %cst_34 = arith.constant dense<0.000000e+00> : vector<8xf32>
    %50 = vector.multi_reduction <add>, %49, %cst_34 [1] : vector<8x128xf32> to vector<8xf32>
    %c0_35 = arith.constant 0 : index
    %c0_36 = arith.constant 0 : index
    %51 = memref.load %arg13[%c0_35, %c0_36] : memref<1x1xf32, #tpu.memory_space<smem>>
    %52 = vector.broadcast %51 : f32 to vector<8xf32>
    %53 = arith.addf %50, %52 : vector<8xf32>
    %54 = vector.shape_cast %53 : vector<8xf32> to vector<1x1x8xf32>
    %c0_37 = arith.constant 0 : index
    %c0_38 = arith.constant 0 : index
    %c0_39 = arith.constant 0 : index
    %55 = vector.load %arg14[%c0_37, %c0_38, %c0_39] : memref<1x1x8xf32, #tpu.memory_space<vmem>>, vector<1x1x8xf32>
    tpu.vector_store %arg14[%c0_37, %c0_38, %c0_39], %54 {strides = array<i32>} : memref<1x1x8xf32, #tpu.memory_space<vmem>>, vector<1x1x8xf32>,
    return
  }
  func.func @transform_0(%arg0: i32) -> (i32, i32) {
    %c0_i32 = arith.constant 0 : i32
    %c0_i32_0 = arith.constant 0 : i32
    return %arg0, %c0_i32 : i32, i32
  }
  func.func @transform_1(%arg0: i32) -> (i32, i32) {
    %c0_i32 = arith.constant 0 : i32
    %c0_i32_0 = arith.constant 0 : i32
    return %arg0, %c0_i32 : i32, i32
  }
  func.func @transform_2(%arg0: i32) -> (i32, i32) {
    %c0_i32 = arith.constant 0 : i32
    %c0_i32_0 = arith.constant 0 : i32
    %c0_i32_1 = arith.constant 0 : i32
    return %c0_i32, %c0_i32_0 : i32, i32
  }
  func.func @transform_3(%arg0: i32) -> (i32, i32) {
    %c0_i32 = arith.constant 0 : i32
    %c0_i32_0 = arith.constant 0 : i32
    %c0_i32_1 = arith.constant 0 : i32
    return %c0_i32, %c0_i32_0 : i32, i32
  }
  func.func @transform_4(%arg0: i32) -> (i32, i32) {
    %c0_i32 = arith.constant 0 : i32
    %c0_i32_0 = arith.constant 0 : i32
    %c0_i32_1 = arith.constant 0 : i32
    return %c0_i32, %c0_i32_0 : i32, i32
  }
  func.func @transform_5(%arg0: i32) -> (i32, i32) {
    %c0_i32 = arith.constant 0 : i32
    %c0_i32_0 = arith.constant 0 : i32
    %c0_i32_1 = arith.constant 0 : i32
    return %c0_i32, %c0_i32_0 : i32, i32
  }
  func.func @transform_6(%arg0: i32) -> (i32, i32) {
    %c0_i32 = arith.constant 0 : i32
    %c0_i32_0 = arith.constant 0 : i32
    %c0_i32_1 = arith.constant 0 : i32
    return %c0_i32, %c0_i32_0 : i32, i32
  }
  func.func @transform_7(%arg0: i32) -> (i32, i32) {
    %c0_i32 = arith.constant 0 : i32
    %c0_i32_0 = arith.constant 0 : i32
    %c0_i32_1 = arith.constant 0 : i32
    return %c0_i32, %c0_i32_0 : i32, i32
  }
  func.func @transform_8(%arg0: i32) -> (i32, i32) {
    %c0_i32 = arith.constant 0 : i32
    %c0_i32_0 = arith.constant 0 : i32
    %c0_i32_1 = arith.constant 0 : i32
    return %c0_i32, %c0_i32_0 : i32, i32
  }
  func.func @transform_9(%arg0: i32) -> (i32, i32) {
    %c0_i32 = arith.constant 0 : i32
    %c0_i32_0 = arith.constant 0 : i32
    %c0_i32_1 = arith.constant 0 : i32
    return %c0_i32, %c0_i32_0 : i32, i32
  }
  func.func @transform_10(%arg0: i32) -> (i32, i32) {
    %c0_i32 = arith.constant 0 : i32
    %c0_i32_0 = arith.constant 0 : i32
    %c0_i32_1 = arith.constant 0 : i32
    return %c0_i32, %c0_i32_0 : i32, i32
  }
  func.func @transform_11(%arg0: i32) -> (i32, i32) {
    %c0_i32 = arith.constant 0 : i32
    %c0_i32_0 = arith.constant 0 : i32
    %c0_i32_1 = arith.constant 0 : i32
    return %c0_i32, %c0_i32_0 : i32, i32
  }
  func.func @transform_12(%arg0: i32) -> (i32, i32) {
    %c0_i32 = arith.constant 0 : i32
    %c0_i32_0 = arith.constant 0 : i32
    %c0_i32_1 = arith.constant 0 : i32
    return %c0_i32, %c0_i32_0 : i32, i32
  }
  func.func @transform_13(%arg0: i32) -> (i32, i32, i32) {
    %c0_i32 = arith.constant 0 : i32
    %c0_i32_0 = arith.constant 0 : i32
    %c0_i32_1 = arith.constant 0 : i32
    return %arg0, %c0_i32, %c0_i32_0 : i32, i32, i32
  }
}

module attributes {stable_mosaic.version = 11 : i64} {
  func.func @ddpg_critic_kernel(%arg0: i32, %arg1: memref<8x16xf32, #tpu.memory_space<vmem>>, %arg2: memref<8x8xf32, #tpu.memory_space<vmem>>, %arg3: memref<16x1024xbf16, #tpu.memory_space<vmem>>, %arg4: memref<1x1024xf32, #tpu.memory_space<vmem>>, %arg5: memref<8x512xbf16, #tpu.memory_space<vmem>>, %arg6: memref<1024x512xbf16, #tpu.memory_space<vmem>>, %arg7: memref<1x512xf32, #tpu.memory_space<vmem>>, %arg8: memref<512x256xbf16, #tpu.memory_space<vmem>>, %arg9: memref<1x256xf32, #tpu.memory_space<vmem>>, %arg10: memref<256x128xbf16, #tpu.memory_space<vmem>>, %arg11: memref<1x128xf32, #tpu.memory_space<vmem>>, %arg12: memref<1x128xf32, #tpu.memory_space<vmem>>, %arg13: memref<1x1xf32, #tpu.memory_space<smem>>, %arg14: memref<1x1x8xf32, #tpu.memory_space<vmem>>) attributes {dimension_semantics = [#tpu.dimension_semantics<parallel>], iteration_bounds = array<i64: 1>, scalar_prefetch = 0 : i64, scratch_operands = 0 : i64, tpu.core_type = #tpu.core_type<tc>, window_params = [{transform_indices = @transform_0, window_bounds = array<i64: 8, 16>}, {transform_indices = @transform_1, window_bounds = array<i64: 8, 8>}, {pipeline_mode = #tpu.pipeline_mode<synchronous>, transform_indices = @transform_2, window_bounds = array<i64: 16, 1024>}, {pipeline_mode = #tpu.pipeline_mode<synchronous>, transform_indices = @transform_3, window_bounds = array<i64: 1, 1024>}, {pipeline_mode = #tpu.pipeline_mode<synchronous>, transform_indices = @transform_4, window_bounds = array<i64: 8, 512>}, {pipeline_mode = #tpu.pipeline_mode<synchronous>, transform_indices = @transform_5, window_bounds = array<i64: 1024, 512>}, {pipeline_mode = #tpu.pipeline_mode<synchronous>, transform_indices = @transform_6, window_bounds = array<i64: 1, 512>}, {pipeline_mode = #tpu.pipeline_mode<synchronous>, transform_indices = @transform_7, window_bounds = array<i64: 512, 256>}, {pipeline_mode = #tpu.pipeline_mode<synchronous>, transform_indices = @transform_8, window_bounds = array<i64: 1, 256>}, {pipeline_mode = #tpu.pipeline_mode<synchronous>, transform_indices = @transform_9, window_bounds = array<i64: 256, 128>}, {pipeline_mode = #tpu.pipeline_mode<synchronous>, transform_indices = @transform_10, window_bounds = array<i64: 1, 128>}, {pipeline_mode = #tpu.pipeline_mode<synchronous>, transform_indices = @transform_11, window_bounds = array<i64: 1, 128>}, {transform_indices = @transform_12, window_bounds = array<i64: 1, 1>}, {transform_indices = @transform_13, window_bounds = array<i64: 1, 1, 8>}]} {
    %c0 = arith.constant 0 : index
    %c0_0 = arith.constant 0 : index
    %0 = vector.load %arg1[%c0, %c0_0] : memref<8x16xf32, #tpu.memory_space<vmem>>, vector<8x16xf32>
    %1 = arith.truncf %0 : vector<8x16xf32> to vector<8x16xbf16>
    %c0_1 = arith.constant 0 : index
    %c0_2 = arith.constant 0 : index
    %2 = vector.load %arg3[%c0_1, %c0_2] : memref<16x1024xbf16, #tpu.memory_space<vmem>>, vector<16x1024xbf16>
    %cst = arith.constant dense<0.000000e+00> : vector<8x1024xf32>
    %3 = tpu.matmul %1, %2, %cst {dimension_numbers = #tpu.dot_dimension_numbers<[1], [0], [0], [1], [0, 0, 1, 1], [], []>} : vector<8x16xbf16>, vector<16x1024xbf16>, vector<8x1024xf32> -> vector<8x1024xf32>
    %c0_3 = arith.constant 0 : index
    %c0_4 = arith.constant 0 : index
    %4 = vector.load %arg4[%c0_3, %c0_4] : memref<1x1024xf32, #tpu.memory_space<vmem>>, vector<1x1024xf32>
    %5 = vector.broadcast %4 : vector<1x1024xf32> to vector<8x1024xf32>
    %6 = arith.addf %3, %5 : vector<8x1024xf32>
    %cst_5 = arith.constant 0.000000e+00 : f32
    %7 = vector.broadcast %cst_5 : f32 to vector<8x1024xf32>
    %8 = arith.maximumf %6, %7 : vector<8x1024xf32>
    %c0_6 = arith.constant 0 : index
    %c0_7 = arith.constant 0 : index
    %9 = vector.load %arg2[%c0_6, %c0_7] : memref<8x8xf32, #tpu.memory_space<vmem>>, vector<8x8xf32>
    %10 = arith.truncf %9 : vector<8x8xf32> to vector<8x8xbf16>
    %c0_8 = arith.constant 0 : index
    %c0_9 = arith.constant 0 : index
    %11 = vector.load %arg5[%c0_8, %c0_9] : memref<8x512xbf16, #tpu.memory_space<vmem>>, vector<8x512xbf16>
    %cst_10 = arith.constant dense<0.000000e+00> : vector<8x512xf32>
    %12 = tpu.matmul %10, %11, %cst_10 {dimension_numbers = #tpu.dot_dimension_numbers<[1], [0], [0], [1], [0, 0, 1, 1], [], []>} : vector<8x8xbf16>, vector<8x512xbf16>, vector<8x512xf32> -> vector<8x512xf32>
    %13 = arith.truncf %8 : vector<8x1024xf32> to vector<8x1024xbf16>
    %c0_11 = arith.constant 0 : index
    %c0_12 = arith.constant 0 : index
    %14 = vector.load %arg6[%c0_11, %c0_12] : memref<1024x512xbf16, #tpu.memory_space<vmem>>, vector<1024x512xbf16>
    %cst_13 = arith.constant dense<0.000000e+00> : vector<8x512xf32>
    %15 = tpu.matmul %13, %14, %cst_13 {dimension_numbers = #tpu.dot_dimension_numbers<[1], [0], [0], [1], [0, 0, 1, 1], [], []>} : vector<8x1024xbf16>, vector<1024x512xbf16>, vector<8x512xf32> -> vector<8x512xf32>
    %16 = arith.addf %12, %15 : vector<8x512xf32>
    %c0_14 = arith.constant 0 : index
    %c0_15 = arith.constant 0 : index
    %17 = vector.load %arg7[%c0_14, %c0_15] : memref<1x512xf32, #tpu.memory_space<vmem>>, vector<1x512xf32>
    %18 = vector.broadcast %17 : vector<1x512xf32> to vector<8x512xf32>
    %19 = arith.addf %16, %18 : vector<8x512xf32>
    %cst_16 = arith.constant 0.000000e+00 : f32
    %20 = vector.broadcast %cst_16 : f32 to vector<8x512xf32>
    %21 = arith.cmpf ogt, %19, %20 : vector<8x512xf32>
    %cst_17 = arith.constant 0.00999999977 : f32
    %22 = vector.broadcast %cst_17 : f32 to vector<8x512xf32>
    %23 = arith.mulf %22, %19 : vector<8x512xf32>
    %24 = arith.select %21, %19, %23 : vector<8x512xi1>, vector<8x512xf32>
    %25 = arith.truncf %24 : vector<8x512xf32> to vector<8x512xbf16>
    %c0_18 = arith.constant 0 : index
    %c0_19 = arith.constant 0 : index
    %26 = vector.load %arg8[%c0_18, %c0_19] : memref<512x256xbf16, #tpu.memory_space<vmem>>, vector<512x256xbf16>
    %cst_20 = arith.constant dense<0.000000e+00> : vector<8x256xf32>
    %27 = tpu.matmul %25, %26, %cst_20 {dimension_numbers = #tpu.dot_dimension_numbers<[1], [0], [0], [1], [0, 0, 1, 1], [], []>} : vector<8x512xbf16>, vector<512x256xbf16>, vector<8x256xf32> -> vector<8x256xf32>
    %c0_21 = arith.constant 0 : index
    %c0_22 = arith.constant 0 : index
    %28 = vector.load %arg9[%c0_21, %c0_22] : memref<1x256xf32, #tpu.memory_space<vmem>>, vector<1x256xf32>
    %29 = vector.broadcast %28 : vector<1x256xf32> to vector<8x256xf32>
    %30 = arith.addf %27, %29 : vector<8x256xf32>
    %cst_23 = arith.constant 0.000000e+00 : f32
    %31 = vector.broadcast %cst_23 : f32 to vector<8x256xf32>
    %32 = arith.cmpf ogt, %30, %31 : vector<8x256xf32>
    %cst_24 = arith.constant 0.00999999977 : f32
    %33 = vector.broadcast %cst_24 : f32 to vector<8x256xf32>
    %34 = arith.mulf %33, %30 : vector<8x256xf32>
    %35 = arith.select %32, %30, %34 : vector<8x256xi1>, vector<8x256xf32>
    %36 = arith.truncf %35 : vector<8x256xf32> to vector<8x256xbf16>
    %c0_25 = arith.constant 0 : index
    %c0_26 = arith.constant 0 : index
    %37 = vector.load %arg10[%c0_25, %c0_26] : memref<256x128xbf16, #tpu.memory_space<vmem>>, vector<256x128xbf16>
    %cst_27 = arith.constant dense<0.000000e+00> : vector<8x128xf32>
    %38 = tpu.matmul %36, %37, %cst_27 {dimension_numbers = #tpu.dot_dimension_numbers<[1], [0], [0], [1], [0, 0, 1, 1], [], []>} : vector<8x256xbf16>, vector<256x128xbf16>, vector<8x128xf32> -> vector<8x128xf32>
    %c0_28 = arith.constant 0 : index
    %c0_29 = arith.constant 0 : index
    %39 = vector.load %arg11[%c0_28, %c0_29] : memref<1x128xf32, #tpu.memory_space<vmem>>, vector<1x128xf32>
    %40 = vector.broadcast %39 : vector<1x128xf32> to vector<8x128xf32>
    %41 = arith.addf %38, %40 : vector<8x128xf32>
    %cst_30 = arith.constant 0.000000e+00 : f32
    %42 = vector.broadcast %cst_30 : f32 to vector<8x128xf32>
    %43 = arith.cmpf ogt, %41, %42 : vector<8x128xf32>
    %cst_31 = arith.constant 0.00999999977 : f32
    %44 = vector.broadcast %cst_31 : f32 to vector<8x128xf32>
    %45 = arith.mulf %44, %41 : vector<8x128xf32>
    %46 = arith.select %43, %41, %45 : vector<8x128xi1>, vector<8x128xf32>
    %c0_32 = arith.constant 0 : index
    %c0_33 = arith.constant 0 : index
    %47 = vector.load %arg12[%c0_32, %c0_33] : memref<1x128xf32, #tpu.memory_space<vmem>>, vector<1x128xf32>
    %48 = vector.broadcast %47 : vector<1x128xf32> to vector<8x128xf32>
    %49 = arith.mulf %46, %48 : vector<8x128xf32>
    %cst_34 = arith.constant dense<0.000000e+00> : vector<8xf32>
    %50 = vector.multi_reduction <add>, %49, %cst_34 [1] : vector<8x128xf32> to vector<8xf32>
    %c0_35 = arith.constant 0 : index
    %c0_36 = arith.constant 0 : index
    %51 = memref.load %arg13[%c0_35, %c0_36] : memref<1x1xf32, #tpu.memory_space<smem>>
    %52 = vector.broadcast %51 : f32 to vector<8xf32>
    %53 = arith.addf %50, %52 : vector<8xf32>
    %54 = vector.shape_cast %53 : vector<8xf32> to vector<1x1x8xf32>
    %c0_37 = arith.constant 0 : index
    %c0_38 = arith.constant 0 : index
    %c0_39 = arith.constant 0 : index
    %55 = vector.load %arg14[%c0_37, %c0_38, %c0_39] : memref<1x1x8xf32, #tpu.memory_space<vmem>>, vector<1x1x8xf32>
    tpu.vector_store %arg14[%c0_37, %c0_38, %c0_39], %54 {strides = array<i32>} : memref<1x1x8xf32, #tpu.memory_space<vmem>>, vector<1x1x8xf32>,
    return
  }
  func.func @transform_0(%arg0: i32) -> (i32, i32) {
    %c0_i32 = arith.constant 0 : i32
    %c0_i32_0 = arith.constant 0 : i32
    return %arg0, %c0_i32 : i32, i32
  }
  func.func @transform_1(%arg0: i32) -> (i32, i32) {
    %c0_i32 = arith.constant 0 : i32
    %c0_i32_0 = arith.constant 0 : i32
    return %arg0, %c0_i32 : i32, i32
  }
  func.func @transform_2(%arg0: i32) -> (i32, i32) {
    %c0_i32 = arith.constant 0 : i32
    %c0_i32_0 = arith.constant 0 : i32
    %c0_i32_1 = arith.constant 0 : i32
    return %c0_i32, %c0_i32_0 : i32, i32
  }
  func.func @transform_3(%arg0: i32) -> (i32, i32) {
    %c0_i32 = arith.constant 0 : i32
    %c0_i32_0 = arith.constant 0 : i32
    %c0_i32_1 = arith.constant 0 : i32
    return %c0_i32, %c0_i32_0 : i32, i32
  }
  func.func @transform_4(%arg0: i32) -> (i32, i32) {
    %c0_i32 = arith.constant 0 : i32
    %c0_i32_0 = arith.constant 0 : i32
    %c0_i32_1 = arith.constant 0 : i32
    return %c0_i32, %c0_i32_0 : i32, i32
  }
  func.func @transform_5(%arg0: i32) -> (i32, i32) {
    %c0_i32 = arith.constant 0 : i32
    %c0_i32_0 = arith.constant 0 : i32
    %c0_i32_1 = arith.constant 0 : i32
    return %c0_i32, %c0_i32_0 : i32, i32
  }
  func.func @transform_6(%arg0: i32) -> (i32, i32) {
    %c0_i32 = arith.constant 0 : i32
    %c0_i32_0 = arith.constant 0 : i32
    %c0_i32_1 = arith.constant 0 : i32
    return %c0_i32, %c0_i32_0 : i32, i32
  }
  func.func @transform_7(%arg0: i32) -> (i32, i32) {
    %c0_i32 = arith.constant 0 : i32
    %c0_i32_0 = arith.constant 0 : i32
    %c0_i32_1 = arith.constant 0 : i32
    return %c0_i32, %c0_i32_0 : i32, i32
  }
  func.func @transform_8(%arg0: i32) -> (i32, i32) {
    %c0_i32 = arith.constant 0 : i32
    %c0_i32_0 = arith.constant 0 : i32
    %c0_i32_1 = arith.constant 0 : i32
    return %c0_i32, %c0_i32_0 : i32, i32
  }
  func.func @transform_9(%arg0: i32) -> (i32, i32) {
    %c0_i32 = arith.constant 0 : i32
    %c0_i32_0 = arith.constant 0 : i32
    %c0_i32_1 = arith.constant 0 : i32
    return %c0_i32, %c0_i32_0 : i32, i32
  }
  func.func @transform_10(%arg0: i32) -> (i32, i32) {
    %c0_i32 = arith.constant 0 : i32
    %c0_i32_0 = arith.constant 0 : i32
    %c0_i32_1 = arith.constant 0 : i32
    return %c0_i32, %c0_i32_0 : i32, i32
  }
  func.func @transform_11(%arg0: i32) -> (i32, i32) {
    %c0_i32 = arith.constant 0 : i32
    %c0_i32_0 = arith.constant 0 : i32
    %c0_i32_1 = arith.constant 0 : i32
    return %c0_i32, %c0_i32_0 : i32, i32
  }
  func.func @transform_12(%arg0: i32) -> (i32, i32) {
    %c0_i32 = arith.constant 0 : i32
    %c0_i32_0 = arith.constant 0 : i32
    %c0_i32_1 = arith.constant 0 : i32
    return %c0_i32, %c0_i32_0 : i32, i32
  }
  func.func @transform_13(%arg0: i32) -> (i32, i32, i32) {
    %c0_i32 = arith.constant 0 : i32
    %c0_i32_0 = arith.constant 0 : i32
    %c0_i32_1 = arith.constant 0 : i32
    return %arg0, %c0_i32, %c0_i32_0 : i32, i32, i32
  }
}

</mosaic_0001>

<llo_original>
// kernel: tpu_custom_call.1
$region0: #{tpu_custom_call.1}
  #allocation0 [shape = 'u32[]', space=smem, size = 0x4, offset = 0x4, fixed_abs, tag = 'smem constant byte address 0x4 - core index']
  #allocation1 [shape = 'u32[144,128]{1,0:T(1,128)}', space=vmem, size = 0x12000, scoped, tag = 'internal scratch']
  #allocation2 [shape = 'f32[1,1]{1,0:T(1,128)S(6)}', space=smem, size = 0x200, scoped, tag = 'scoped memory for tpu_custom_call.1']
  %s0 = inlined_call_operand.hbm [shape: f32[8,16], index: 0, kind: input, shape index: {}]
  %s1 = inlined_call_operand.hbm [shape: f32[8,8], index: 1, kind: input, shape index: {}]
  %s2 = inlined_call_operand.hbm [shape: bf16[16,1024], index: 2, kind: input, shape index: {}]
  %s3 = inlined_call_operand.hbm [shape: f32[1,1024], index: 3, kind: input, shape index: {}]
  %s4 = inlined_call_operand.hbm [shape: bf16[8,512], index: 4, kind: input, shape index: {}]
  %s5 = inlined_call_operand.hbm [shape: bf16[1024,512], index: 5, kind: input, shape index: {}]
  %s6 = inlined_call_operand.vmem [shape: f32[1,512], index: 6, kind: input, shape index: {}]
  %s7 = inlined_call_operand.hbm [shape: bf16[512,256], index: 7, kind: input, shape index: {}]
  %s8 = inlined_call_operand.vmem [shape: f32[1,256], index: 8, kind: input, shape index: {}]
  %s9 = inlined_call_operand.hbm [shape: bf16[256,128], index: 9, kind: input, shape index: {}]
  %s10 = inlined_call_operand.vmem [shape: f32[1,128], index: 10, kind: input, shape index: {}]
  %s11 = inlined_call_operand.vmem [shape: f32[1,128], index: 11, kind: input, shape index: {}]
  %s12 = inlined_call_operand.<no memory space> [shape: f32[1,1], index: 12, kind: input, shape index: {}]
  %s13 = inlined_call_operand.hbm [shape: f32[1,1,8], index: 13, kind: output, shape index: {}]
  %s14 = sld [smem:[#allocation0]]
  $region94: #{tpu_custom_call.1} parent=0
    _
  %s16 = ssub.s32 1, %s14
  %s17 = scalar_select 0, %s16, %s14
  %18 = sst [smem:[#allocation2]] %s12
  $region1: #{tpu_custom_call.1} parent=0
    #allocation3 [shape = 'u8[4096]{0}', space=vmem, size = 0x1000, scoped, tag = 'input window, operand 0, single buffered']
    #allocation4 [shape = 's32[1]{0}', space=sflag, size = 0x4, scoped, tag = 'scoped memory for tpu_custom_call.1']
    #allocation5 [shape = 's32[1]{0}', space=sflag, size = 0x4, scoped, tag = 'scoped memory for tpu_custom_call.1']
    #allocation6 [shape = 'u8[4096]{0}', space=vmem, size = 0x1000, scoped, tag = 'input window, operand 1, single buffered']
    #allocation7 [shape = 's32[1]{0}', space=sflag, size = 0x4, scoped, tag = 'scoped memory for tpu_custom_call.1']
    #allocation8 [shape = 'u8[32768]{0}', space=vmem, size = 0x8000, scoped, tag = 'input window, operand 2, single buffered']
    #allocation9 [shape = 'u8[4096]{0}', space=vmem, size = 0x1000, scoped, tag = 'input window, operand 3, single buffered']
    #allocation10 [shape = 's32[1]{0}', space=sflag, size = 0x4, scoped, tag = 'scoped memory for tpu_custom_call.1']
    #allocation11 [shape = 'u8[8192]{0}', space=vmem, size = 0x2000, scoped, tag = 'input window, operand 4, single buffered']
    #allocation12 [shape = 'u8[1048576]{0}', space=vmem, size = 0x100000, scoped, tag = 'input window, operand 5, single buffered']
    #allocation13 [shape = 's32[1]{0}', space=sflag, size = 0x4, scoped, tag = 'scoped memory for tpu_custom_call.1']
    #allocation14 [shape = 'u8[262144]{0}', space=vmem, size = 0x40000, scoped, tag = 'input window, operand 7, single buffered']
    #allocation15 [shape = 'u8[65536]{0}', space=vmem, size = 0x10000, scoped, tag = 'input window, operand 9, single buffered']
    #allocation16 [shape = 's32[1]{0}', space=sflag, size = 0x4, scoped, tag = 'scoped memory for tpu_custom_call.1']
    #allocation17 [shape = 'u8[512]{0}', space=vmem, size = 0x400, scoped, tag = 'output window, operand 0, single buffered']
    %19 = vsyncpa [#allocation4], 0
    %20 = vsyncpa [#allocation7], 0
    %21 = vsyncpa [#allocation10], 0
    %22 = vsyncpa [#allocation13], 0
    %23 = vsyncpa [#allocation16], 0
    %24 = vsyncpa [#allocation5], 0
    // Predicated region
    $region2: #{tpu_custom_call.1} parent=1 // pred_check
      _
    $region3: #{tpu_custom_call.1} parent=1 // pred_check_branch
      %26 = sbr.rel (0) target = $region5
    $region4: #{tpu_custom_call.1} parent=1 // pred_region
      %s28 = ssub.s32 128, 128
      %29 = vsyncadd [#allocation4], %s28
      %s31 = sshll.u32 [#allocation3], 4
      %s32 = int_to_ptr.vmem [resolvable:$true] %s31
      %34 = dma.hbm_to_vmem [thread:$0]  %s0, 128, %s32, [#allocation4]
    $region5: #{tpu_custom_call.1} parent=1 // pred_fallthru
      _
    // Predicated region
    $region6: #{tpu_custom_call.1} parent=1 // pred_check
      _
    $region7: #{tpu_custom_call.1} parent=1 // pred_check_branch
      %36 = sbr.rel (0) target = $region9
    $region8: #{tpu_custom_call.1} parent=1 // pred_region
      %s38 = ssub.s32 128, 128
      %39 = vsyncadd [#allocation7], %s38
      %s41 = sshll.u32 [#allocation6], 4
      %s42 = int_to_ptr.vmem [resolvable:$true] %s41
      %44 = dma.hbm_to_vmem [thread:$0]  %s1, 128, %s42, [#allocation7]
    $region9: #{tpu_custom_call.1} parent=1 // pred_fallthru
      _
    // Predicated region
    $region10: #{tpu_custom_call.1} parent=1 // pred_check
      _
    $region11: #{tpu_custom_call.1} parent=1 // pred_check_branch
      %46 = sbr.rel (0) target = $region13
    $region12: #{tpu_custom_call.1} parent=1 // pred_region
      %s48 = ssub.s32 1024, 1024
      %49 = vsyncadd [#allocation7], %s48
      %s50 = sshll.u32 [#allocation8], 4
      %s51 = int_to_ptr.vmem [resolvable:$true] %s50
      %56 = dma.hbm_to_vmem [thread:$0]  %s2, 1024, %s51, [#allocation7], 512, 512, 32
    $region13: #{tpu_custom_call.1} parent=1 // pred_fallthru
      _
    // Predicated region
    $region14: #{tpu_custom_call.1} parent=1 // pred_check
      _
    $region15: #{tpu_custom_call.1} parent=1 // pred_check_branch
      %58 = sbr.rel (0) target = $region17
    $region16: #{tpu_custom_call.1} parent=1 // pred_region
      %s60 = ssub.s32 128, 128
      %61 = vsyncadd [#allocation10], %s60
      %s63 = sshll.u32 [#allocation9], 4
      %s64 = int_to_ptr.vmem [resolvable:$true] %s63
      %66 = dma.hbm_to_vmem [thread:$0]  %s3, 128, %s64, [#allocation10]
    $region17: #{tpu_custom_call.1} parent=1 // pred_fallthru
      _
    // Predicated region
    $region18: #{tpu_custom_call.1} parent=1 // pred_check
      _
    $region19: #{tpu_custom_call.1} parent=1 // pred_check_branch
      %68 = sbr.rel (0) target = $region21
    $region20: #{tpu_custom_call.1} parent=1 // pred_region
      %s70 = ssub.s32 256, 256
      %71 = vsyncadd [#allocation10], %s70
      %s73 = sshll.u32 [#allocation11], 4
      %s74 = int_to_ptr.vmem [resolvable:$true] %s73
      %76 = dma.hbm_to_vmem [thread:$0]  %s4, 256, %s74, [#allocation10]
    $region21: #{tpu_custom_call.1} parent=1 // pred_fallthru
      _
    // Predicated region
    $region22: #{tpu_custom_call.1} parent=1 // pred_check
      _
    $region23: #{tpu_custom_call.1} parent=1 // pred_check_branch
      %78 = sbr.rel (0) target = $region25
    $region24: #{tpu_custom_call.1} parent=1 // pred_region
      %s80 = ssub.s32 32768, 32768
      %81 = vsyncadd [#allocation13], %s80
      %s82 = sshll.u32 [#allocation12], 4
      %s83 = int_to_ptr.vmem [resolvable:$true] %s82
      %88 = dma.hbm_to_vmem [thread:$0]  %s5, 32768, %s83, [#allocation13], 256, 256, 16
    $region25: #{tpu_custom_call.1} parent=1 // pred_fallthru
      _
    // Predicated region
    $region26: #{tpu_custom_call.1} parent=1 // pred_check
      _
    $region27: #{tpu_custom_call.1} parent=1 // pred_check_branch
      %90 = sbr.rel (0) target = $region29
    $region28: #{tpu_custom_call.1} parent=1 // pred_region
      _
    $region29: #{tpu_custom_call.1} parent=1 // pred_fallthru
      _
    // Predicated region
    $region30: #{tpu_custom_call.1} parent=1 // pred_check
      _
    $region31: #{tpu_custom_call.1} parent=1 // pred_check_branch
      %92 = sbr.rel (0) target = $region33
    $region32: #{tpu_custom_call.1} parent=1 // pred_region
      %s94 = ssub.s32 8192, 8192
      %95 = vsyncadd [#allocation13], %s94
      %s96 = sshll.u32 [#allocation14], 4
      %s97 = int_to_ptr.vmem [resolvable:$true] %s96
      %102 = dma.hbm_to_vmem [thread:$0]  %s7, 8192, %s97, [#allocation13], 128, 128, 8
    $region33: #{tpu_custom_call.1} parent=1 // pred_fallthru
      _
    // Predicated region
    $region34: #{tpu_custom_call.1} parent=1 // pred_check
      _
    $region35: #{tpu_custom_call.1} parent=1 // pred_check_branch
      %104 = sbr.rel (0) target = $region37
    $region36: #{tpu_custom_call.1} parent=1 // pred_region
      _
    $region37: #{tpu_custom_call.1} parent=1 // pred_fallthru
      _
    // Predicated region
    $region38: #{tpu_custom_call.1} parent=1 // pred_check
      _
    $region39: #{tpu_custom_call.1} parent=1 // pred_check_branch
      %106 = sbr.rel (0) target = $region41
    $region40: #{tpu_custom_call.1} parent=1 // pred_region
      %s108 = ssub.s32 2048, 2048
      %109 = vsyncadd [#allocation16], %s108
      %s110 = sshll.u32 [#allocation15], 4
      %s111 = int_to_ptr.vmem [resolvable:$true] %s110
      %116 = dma.hbm_to_vmem [thread:$0]  %s9, 2048, %s111, [#allocation16], 64, 64, 4
    $region41: #{tpu_custom_call.1} parent=1 // pred_fallthru
      _
    // Predicated region
    $region42: #{tpu_custom_call.1} parent=1 // pred_check
      _
    $region43: #{tpu_custom_call.1} parent=1 // pred_check_branch
      %118 = sbr.rel (0) target = $region45
    $region44: #{tpu_custom_call.1} parent=1 // pred_region
      _
    $region45: #{tpu_custom_call.1} parent=1 // pred_fallthru
      _
    // Predicated region
    $region46: #{tpu_custom_call.1} parent=1 // pred_check
      _
    $region47: #{tpu_custom_call.1} parent=1 // pred_check_branch
      %120 = sbr.rel (0) target = $region49
    $region48: #{tpu_custom_call.1} parent=1 // pred_region
      _
    $region49: #{tpu_custom_call.1} parent=1 // pred_fallthru
      _
    // Predicated region
    $region50: #{tpu_custom_call.1} parent=1 // pred_check
      _
    $region51: #{tpu_custom_call.1} parent=1 // pred_check_branch
      %122 = sbr.rel (0) target = $region53
    $region52: #{tpu_custom_call.1} parent=1 // pred_region
      _
    $region53: #{tpu_custom_call.1} parent=1 // pred_fallthru
      _
    // Predicated region
    $region54: #{tpu_custom_call.1} parent=1 // pred_check
      _
    $region55: #{tpu_custom_call.1} parent=1 // pred_check_branch
      %124 = sbr.rel (0) target = $region57
    $region56: #{tpu_custom_call.1} parent=1 // pred_region
      %125 = dma.done [#allocation4], 128
    $region57: #{tpu_custom_call.1} parent=1 // pred_fallthru
      _
    // Predicated region
    $region58: #{tpu_custom_call.1} parent=1 // pred_check
      _
    $region59: #{tpu_custom_call.1} parent=1 // pred_check_branch
      %127 = sbr.rel (0) target = $region61
    $region60: #{tpu_custom_call.1} parent=1 // pred_region
      %128 = dma.done [#allocation7], 128
    $region61: #{tpu_custom_call.1} parent=1 // pred_fallthru
      _
    // Predicated region
    $region62: #{tpu_custom_call.1} parent=1 // pred_check
      _
    $region63: #{tpu_custom_call.1} parent=1 // pred_check_branch
      %130 = sbr.rel (0) target = $region65
    $region64: #{tpu_custom_call.1} parent=1 // pred_region
      %131 = dma.done [#allocation7], 1024
    $region65: #{tpu_custom_call.1} parent=1 // pred_fallthru
      _
    // Predicated region
    $region66: #{tpu_custom_call.1} parent=1 // pred_check
      _
    $region67: #{tpu_custom_call.1} parent=1 // pred_check_branch
      %133 = sbr.rel (0) target = $region69
    $region68: #{tpu_custom_call.1} parent=1 // pred_region
      %134 = dma.done [#allocation10], 128
    $region69: #{tpu_custom_call.1} parent=1 // pred_fallthru
      _
    // Predicated region
    $region70: #{tpu_custom_call.1} parent=1 // pred_check
      _
    $region71: #{tpu_custom_call.1} parent=1 // pred_check_branch
      %136 = sbr.rel (0) target = $region73
    $region72: #{tpu_custom_call.1} parent=1 // pred_region
      %137 = dma.done [#allocation10], 256
    $region73: #{tpu_custom_call.1} parent=1 // pred_fallthru
      _
    // Predicated region
    $region74: #{tpu_custom_call.1} parent=1 // pred_check
      _
    $region75: #{tpu_custom_call.1} parent=1 // pred_check_branch
      %139 = sbr.rel (0) target = $region77
    $region76: #{tpu_custom_call.1} parent=1 // pred_region
      %140 = dma.done [#allocation13], 32768
    $region77: #{tpu_custom_call.1} parent=1 // pred_fallthru
      _
    // Predicated region
    $region78: #{tpu_custom_call.1} parent=1 // pred_check
      _
    $region79: #{tpu_custom_call.1} parent=1 // pred_check_branch
      %142 = sbr.rel (0) target = $region81
    $region80: #{tpu_custom_call.1} parent=1 // pred_region
      %143 = dma.done [#allocation13], 8192
    $region81: #{tpu_custom_call.1} parent=1 // pred_fallthru
      _
    // Predicated region
    $region82: #{tpu_custom_call.1} parent=1 // pred_check
      _
    $region83: #{tpu_custom_call.1} parent=1 // pred_check_branch
      %145 = sbr.rel (0) target = $region85
    $region84: #{tpu_custom_call.1} parent=1 // pred_region
      %146 = dma.done [#allocation16], 2048
    $region85: #{tpu_custom_call.1} parent=1 // pred_fallthru
      _
    %v148 = vld [vmem:[#allocation3] sm:$0xff]
    %v149 = vpack.c.bf16 %v148, %v148
    %v150 = vld [vmem:[#allocation8] sm:$0xff]
    %v151 = vld [vmem:[#allocation8 + $0x8] sm:$0xff]
    %v152 = vld [vmem:[#allocation8 + $0x10] sm:$0xff]
    %v153 = vld [vmem:[#allocation8 + $0x18] sm:$0xff]
    %v154 = vld [vmem:[#allocation8 + $0x20] sm:$0xff]
    %v155 = vld [vmem:[#allocation8 + $0x28] sm:$0xff]
    %v156 = vld [vmem:[#allocation8 + $0x30] sm:$0xff]
    %v157 = vld [vmem:[#allocation8 + $0x38] sm:$0xff]
    %v158 = vld [vmem:[#allocation9] sm:$0xff]
    %v160 = vlaneseq
    %v161 = vshrl.u32 %v160, 7
    %v162 = vsub.s32 0, %v161
    %v163 = vrot.slane %v158, %v162
    %v164 = vlaneseq
    %v165 = vshrl.u32 %v164, 7
    %v166 = vsub.s32 1, %v165
    %v167 = vrot.slane %v158, %v166
    %v168 = vlaneseq
    %v169 = vshrl.u32 %v168, 7
    %v170 = vsub.s32 2, %v169
    %v171 = vrot.slane %v158, %v170
    %v172 = vlaneseq
    %v173 = vshrl.u32 %v172, 7
    %v174 = vsub.s32 3, %v173
    %v175 = vrot.slane %v158, %v174
    %v176 = vlaneseq
    %v177 = vshrl.u32 %v176, 7
    %v178 = vsub.s32 4, %v177
    %v179 = vrot.slane %v158, %v178
    %v180 = vlaneseq
    %v181 = vshrl.u32 %v180, 7
    %v182 = vsub.s32 5, %v181
    %v183 = vrot.slane %v158, %v182
    %v184 = vlaneseq
    %v185 = vshrl.u32 %v184, 7
    %v186 = vsub.s32 6, %v185
    %v187 = vrot.slane %v158, %v186
    %v188 = vlaneseq
    %v189 = vshrl.u32 %v188, 7
    %v190 = vsub.s32 7, %v189
    %v191 = vrot.slane %v158, %v190
    %v208 = vunpack.c.l.b16 %v150
    %v209 = vunpack.c.h.b16 %v150
    %v210 = vunpack.c.l.b16 %v151
    %v211 = vunpack.c.h.b16 %v151
    %v212 = vunpack.c.l.b16 %v152
    %v213 = vunpack.c.h.b16 %v152
    %v214 = vunpack.c.l.b16 %v153
    %v215 = vunpack.c.h.b16 %v153
    %v216 = vunpack.c.l.b16 %v154
    %v217 = vunpack.c.h.b16 %v154
    %v218 = vunpack.c.l.b16 %v155
    %v219 = vunpack.c.h.b16 %v155
    %v220 = vunpack.c.l.b16 %v156
    %v221 = vunpack.c.h.b16 %v156
    %v222 = vunpack.c.l.b16 %v157
    %v223 = vunpack.c.h.b16 %v157
    %v224 = vpack.c.b16 %v216, %v208
    %v225 = vpack.c.b16 %v217, %v209
    %v226 = vpack.c.b16 %v218, %v210
    %v227 = vpack.c.b16 %v219, %v211
    %v228 = vpack.c.b16 %v220, %v212
    %v229 = vpack.c.b16 %v221, %v213
    %v230 = vpack.c.b16 %v222, %v214
    %v231 = vpack.c.b16 %v223, %v215
    %vm240 = vcmask 130048
    %v242 = vsel %vm240, %v149, 0
    %244 = vmatprep.subr.bf16.mxu0 0
    %245 = vmatpush1.bf16.msra.mxu0 0
    %246 = vmatprep.subr.bf16.mxu0 0
    %247 = vmatpush1.bf16.msra.mxu0 0
    %248 = vmatprep.subr.bf16.mxu0 0
    %249 = vmatpush1.bf16.msra.mxu0 0
    %250 = vmatprep.subr.bf16.mxu0 0
    %251 = vmatpush1.bf16.msra.mxu0 0
    %252 = vmatprep.subr.bf16.mxu0 0
    %253 = vmatpush1.bf16.msra.mxu0 0
    %254 = vmatprep.subr.bf16.mxu0 0
    %255 = vmatpush1.bf16.msra.mxu0 0
    %256 = vmatprep.subr.bf16.mxu0 0
    %257 = vmatpush1.bf16.msra.mxu0 0
    %258 = vmatprep.subr.bf16.mxu0 %v225
    %259 = vmatpush1.bf16.msra.mxu0 %v224
    %260 = vmatprep.subr.bf16.mxu0 0
    %261 = vmatpush2.bf16.msra.mxu0 0
    %262 = vmatprep.subr.bf16.mxu0 0
    %263 = vmatpush2.bf16.msra.mxu0 0
    %264 = vmatprep.subr.bf16.mxu0 0
    %265 = vmatpush2.bf16.msra.mxu0 0
    %266 = vmatprep.subr.bf16.mxu0 0
    %267 = vmatpush2.bf16.msra.mxu0 0
    %268 = vmatprep.subr.bf16.mxu0 0
    %269 = vmatpush2.bf16.msra.mxu0 0
    %270 = vmatprep.subr.bf16.mxu0 0
    %271 = vmatpush2.bf16.msra.mxu0 0
    %272 = vmatprep.subr.bf16.mxu0 0
    %273 = vmatpush2.bf16.msra.mxu0 0
    %274 = vmatprep.subr.bf16.mxu0 0
    %275 = vmatpush2.bf16.msra.mxu0 0
    %276 = vmatprep.mubr.bf16.mxu0 0
    %277 = vmatmul.mubr.bf16.gmra.mxu0 %v242
    %v278 = vpop.f32.mrf.mxu0
    %v279 = vadd.f32 %v163, %v278
    %v280 = vpop.f32.mrf.mxu0
    %v281 = vadd.f32 %v167, %v280
    %v282 = vpop.f32.mrf.mxu0
    %v283 = vpop.f32.mrf.mxu0
    %284 = vdwg.mxu0
    %285 = vmatprep.subr.bf16.mxu0 0
    %286 = vmatpush1.bf16.msra.mxu0 0
    %287 = vmatprep.subr.bf16.mxu0 0
    %288 = vmatpush1.bf16.msra.mxu0 0
    %289 = vmatprep.subr.bf16.mxu0 0
    %290 = vmatpush1.bf16.msra.mxu0 0
    %291 = vmatprep.subr.bf16.mxu0 0
    %292 = vmatpush1.bf16.msra.mxu0 0
    %293 = vmatprep.subr.bf16.mxu0 0
    %294 = vmatpush1.bf16.msra.mxu0 0
    %295 = vmatprep.subr.bf16.mxu0 0
    %296 = vmatpush1.bf16.msra.mxu0 0
    %297 = vmatprep.subr.bf16.mxu0 0
    %298 = vmatpush1.bf16.msra.mxu0 0
    %299 = vmatprep.subr.bf16.mxu0 %v227
    %300 = vmatpush1.bf16.msra.mxu0 %v226
    %301 = vmatprep.subr.bf16.mxu0 0
    %302 = vmatpush2.bf16.msra.mxu0 0
    %303 = vmatprep.subr.bf16.mxu0 0
    %304 = vmatpush2.bf16.msra.mxu0 0
    %305 = vmatprep.subr.bf16.mxu0 0
    %306 = vmatpush2.bf16.msra.mxu0 0
    %307 = vmatprep.subr.bf16.mxu0 0
    %308 = vmatpush2.bf16.msra.mxu0 0
    %309 = vmatprep.subr.bf16.mxu0 0
    %310 = vmatpush2.bf16.msra.mxu0 0
    %311 = vmatprep.subr.bf16.mxu0 0
    %312 = vmatpush2.bf16.msra.mxu0 0
    %313 = vmatprep.subr.bf16.mxu0 0
    %314 = vmatpush2.bf16.msra.mxu0 0
    %315 = vmatprep.subr.bf16.mxu0 0
    %316 = vmatpush2.bf16.msra.mxu0 0
    %317 = vmatprep.mubr.bf16.mxu0 0
    %318 = vmatmul.mubr.bf16.gmra.mxu0 %v242
    %v319 = vpop.f32.mrf.mxu0
    %v320 = vadd.f32 %v171, %v319
    %v321 = vpop.f32.mrf.mxu0
    %v322 = vadd.f32 %v175, %v321
    %v323 = vpop.f32.mrf.mxu0
    %v324 = vpop.f32.mrf.mxu0
    %325 = vdwg.mxu0
    %326 = vmatprep.subr.bf16.mxu0 0
    %327 = vmatpush1.bf16.msra.mxu0 0
    %328 = vmatprep.subr.bf16.mxu0 0
    %329 = vmatpush1.bf16.msra.mxu0 0
    %330 = vmatprep.subr.bf16.mxu0 0
    %331 = vmatpush1.bf16.msra.mxu0 0
    %332 = vmatprep.subr.bf16.mxu0 0
    %333 = vmatpush1.bf16.msra.mxu0 0
    %334 = vmatprep.subr.bf16.mxu0 0
    %335 = vmatpush1.bf16.msra.mxu0 0
    %336 = vmatprep.subr.bf16.mxu0 0
    %337 = vmatpush1.bf16.msra.mxu0 0
    %338 = vmatprep.subr.bf16.mxu0 0
    %339 = vmatpush1.bf16.msra.mxu0 0
    %340 = vmatprep.subr.bf16.mxu0 %v229
    %341 = vmatpush1.bf16.msra.mxu0 %v228
    %342 = vmatprep.subr.bf16.mxu0 0
    %343 = vmatpush2.bf16.msra.mxu0 0
    %344 = vmatprep.subr.bf16.mxu0 0
    %345 = vmatpush2.bf16.msra.mxu0 0
    %346 = vmatprep.subr.bf16.mxu0 0
    %347 = vmatpush2.bf16.msra.mxu0 0
    %348 = vmatprep.subr.bf16.mxu0 0
    %349 = vmatpush2.bf16.msra.mxu0 0
    %350 = vmatprep.subr.bf16.mxu0 0
    %351 = vmatpush2.bf16.msra.mxu0 0
    %352 = vmatprep.subr.bf16.mxu0 0
    %353 = vmatpush2.bf16.msra.mxu0 0
    %354 = vmatprep.subr.bf16.mxu0 0
    %355 = vmatpush2.bf16.msra.mxu0 0
    %356 = vmatprep.subr.bf16.mxu0 0
    %357 = vmatpush2.bf16.msra.mxu0 0
    %358 = vmatprep.mubr.bf16.mxu0 0
    %359 = vmatmul.mubr.bf16.gmra.mxu0 %v242
    %v360 = vpop.f32.mrf.mxu0
    %v361 = vadd.f32 %v179, %v360
    %v362 = vpop.f32.mrf.mxu0
    %v363 = vadd.f32 %v183, %v362
    %v364 = vpop.f32.mrf.mxu0
    %v365 = vpop.f32.mrf.mxu0
    %366 = vdwg.mxu0
    %367 = vmatprep.subr.bf16.mxu0 0
    %368 = vmatpush1.bf16.msra.mxu0 0
    %369 = vmatprep.subr.bf16.mxu0 0
    %370 = vmatpush1.bf16.msra.mxu0 0
    %371 = vmatprep.subr.bf16.mxu0 0
    %372 = vmatpush1.bf16.msra.mxu0 0
    %373 = vmatprep.subr.bf16.mxu0 0
    %374 = vmatpush1.bf16.msra.mxu0 0
    %375 = vmatprep.subr.bf16.mxu0 0
    %376 = vmatpush1.bf16.msra.mxu0 0
    %377 = vmatprep.subr.bf16.mxu0 0
    %378 = vmatpush1.bf16.msra.mxu0 0
    %379 = vmatprep.subr.bf16.mxu0 0
    %380 = vmatpush1.bf16.msra.mxu0 0
    %381 = vmatprep.subr.bf16.mxu0 %v231
    %382 = vmatpush1.bf16.msra.mxu0 %v230
    %383 = vmatprep.subr.bf16.mxu0 0
    %384 = vmatpush2.bf16.msra.mxu0 0
    %385 = vmatprep.subr.bf16.mxu0 0
    %386 = vmatpush2.bf16.msra.mxu0 0
    %387 = vmatprep.subr.bf16.mxu0 0
    %388 = vmatpush2.bf16.msra.mxu0 0
    %389 = vmatprep.subr.bf16.mxu0 0
    %390 = vmatpush2.bf16.msra.mxu0 0
    %391 = vmatprep.subr.bf16.mxu0 0
    %392 = vmatpush2.bf16.msra.mxu0 0
    %393 = vmatprep.subr.bf16.mxu0 0
    %394 = vmatpush2.bf16.msra.mxu0 0
    %395 = vmatprep.subr.bf16.mxu0 0
    %396 = vmatpush2.bf16.msra.mxu0 0
    %397 = vmatprep.subr.bf16.mxu0 0
    %398 = vmatpush2.bf16.msra.mxu0 0
    %399 = vmatprep.mubr.bf16.mxu0 0
    %400 = vmatmul.mubr.bf16.gmra.mxu0 %v242
    %v401 = vpop.f32.mrf.mxu0
    %v402 = vadd.f32 %v187, %v401
    %v403 = vpop.f32.mrf.mxu0
    %v404 = vadd.f32 %v191, %v403
    %v405 = vpop.f32.mrf.mxu0
    %v406 = vpop.f32.mrf.mxu0
    %407 = vdwg.mxu0
    %v408 = vmax.f32 %v279, 0.0
    %v409 = vmax.f32 %v281, 0.0
    %v410 = vmax.f32 %v320, 0.0
    %v411 = vmax.f32 %v322, 0.0
    %v412 = vmax.f32 %v361, 0.0
    %v413 = vmax.f32 %v363, 0.0
    %v414 = vmax.f32 %v402, 0.0
    %v415 = vmax.f32 %v404, 0.0
    %v416 = vld [vmem:[#allocation6] sm:$0xff]
    %v417 = vpack.c.bf16 %v416, %v416
    %v418 = vld [vmem:[#allocation11] sm:$0xff]
    %v419 = vld [vmem:[#allocation11 + $0x8] sm:$0xff]
    %v420 = vpack.c.bf16 %v408, %v408
    %v421 = vpack.c.bf16 %v409, %v409
    %v422 = vpack.c.bf16 %v410, %v410
    %v423 = vpack.c.bf16 %v411, %v411
    %v424 = vpack.c.bf16 %v412, %v412
    %v425 = vpack.c.bf16 %v413, %v413
    %v426 = vpack.c.bf16 %v414, %v414
    %v427 = vpack.c.bf16 %v415, %v415
    %v428 = vld [vmem:[#allocation12] sm:$0xff]
    %v429 = vld [vmem:[#allocation12 + $0x8] sm:$0xff]
    %v430 = vld [vmem:[#allocation12 + $0x10] sm:$0xff]
    %v431 = vld [vmem:[#allocation12 + $0x18] sm:$0xff]
    %v432 = vld [vmem:[#allocation12 + $0x20] sm:$0xff]
    %v433 = vld [vmem:[#allocation12 + $0x28] sm:$0xff]
    %v434 = vld [vmem:[#allocation12 + $0x30] sm:$0xff]
    %v435 = vld [vmem:[#allocation12 + $0x38] sm:$0xff]
    %v436 = vld [vmem:[#allocation12 + $0x40] sm:$0xff]
    %v437 = vld [vmem:[#allocation12 + $0x48] sm:$0xff]
    %v438 = vld [vmem:[#allocation12 + $0x50] sm:$0xff]
    %v439 = vld [vmem:[#allocation12 + $0x58] sm:$0xff]
    %v440 = vld [vmem:[#allocation12 + $0x60] sm:$0xff]
    %v441 = vld [vmem:[#allocation12 + $0x68] sm:$0xff]
    %v442 = vld [vmem:[#allocation12 + $0x70] sm:$0xff]
    %v443 = vld [vmem:[#allocation12 + $0x78] sm:$0xff]
    %v444 = vld [vmem:[#allocation12 + $0x80] sm:$0xff]
    %v445 = vld [vmem:[#allocation12 + $0x88] sm:$0xff]
    %v446 = vld [vmem:[#allocation12 + $0x90] sm:$0xff]
    %v447 = vld [vmem:[#allocation12 + $0x98] sm:$0xff]
    %v448 = vld [vmem:[#allocation12 + $0xa0] sm:$0xff]
    %v449 = vld [vmem:[#allocation12 + $0xa8] sm:$0xff]
    %v450 = vld [vmem:[#allocation12 + $0xb0] sm:$0xff]
    %v451 = vld [vmem:[#allocation12 + $0xb8] sm:$0xff]
    %v452 = vld [vmem:[#allocation12 + $0xc0] sm:$0xff]
    %v453 = vld [vmem:[#allocation12 + $0xc8] sm:$0xff]
    %v454 = vld [vmem:[#allocation12 + $0xd0] sm:$0xff]
    %v455 = vld [vmem:[#allocation12 + $0xd8] sm:$0xff]
    %v456 = vld [vmem:[#allocation12 + $0xe0] sm:$0xff]
    %v457 = vld [vmem:[#allocation12 + $0xe8] sm:$0xff]
    %v458 = vld [vmem:[#allocation12 + $0xf0] sm:$0xff]
    %v459 = vld [vmem:[#allocation12 + $0xf8] sm:$0xff]
    %v460 = vld [vmem:[#allocation12 + $0x100] sm:$0xff]
    %v461 = vld [vmem:[#allocation12 + $0x108] sm:$0xff]
    %v462 = vld [vmem:[#allocation12 + $0x110] sm:$0xff]
    %v463 = vld [vmem:[#allocation12 + $0x118] sm:$0xff]
    %v464 = vld [vmem:[#allocation12 + $0x120] sm:$0xff]
    %v465 = vld [vmem:[#allocation12 + $0x128] sm:$0xff]
    %v466 = vld [vmem:[#allocation12 + $0x130] sm:$0xff]
    %v467 = vld [vmem:[#allocation12 + $0x138] sm:$0xff]
    %v468 = vld [vmem:[#allocation12 + $0x140] sm:$0xff]
    %v469 = vld [vmem:[#allocation12 + $0x148] sm:$0xff]
    %v470 = vld [vmem:[#allocation12 + $0x150] sm:$0xff]
    %v471 = vld [vmem:[#allocation12 + $0x158] sm:$0xff]
    %v472 = vld [vmem:[#allocation12 + $0x160] sm:$0xff]
    %v473 = vld [vmem:[#allocation12 + $0x168] sm:$0xff]
    %v474 = vld [vmem:[#allocation12 + $0x170] sm:$0xff]
    %v475 = vld [vmem:[#allocation12 + $0x178] sm:$0xff]
    %v476 = vld [vmem:[#allocation12 + $0x180] sm:$0xff]
    %v477 = vld [vmem:[#allocation12 + $0x188] sm:$0xff]
    %v478 = vld [vmem:[#allocation12 + $0x190] sm:$0xff]
    %v479 = vld [vmem:[#allocation12 + $0x198] sm:$0xff]
    %v480 = vld [vmem:[#allocation12 + $0x1a0] sm:$0xff]
    %v481 = vld [vmem:[#allocation12 + $0x1a8] sm:$0xff]
    %v482 = vld [vmem:[#allocation12 + $0x1b0] sm:$0xff]
    %v483 = vld [vmem:[#allocation12 + $0x1b8] sm:$0xff]
    %v484 = vld [vmem:[#allocation12 + $0x1c0] sm:$0xff]
    %v485 = vld [vmem:[#allocation12 + $0x1c8] sm:$0xff]
    %v486 = vld [vmem:[#allocation12 + $0x1d0] sm:$0xff]
    %v487 = vld [vmem:[#allocation12 + $0x1d8] sm:$0xff]
    %v488 = vld [vmem:[#allocation12 + $0x1e0] sm:$0xff]
    %v489 = vld [vmem:[#allocation12 + $0x1e8] sm:$0xff]
    %v490 = vld [vmem:[#allocation12 + $0x1f0] sm:$0xff]
    %v491 = vld [vmem:[#allocation12 + $0x1f8] sm:$0xff]
    %v492 = vld [vmem:[#allocation12 + $0x200] sm:$0xff]
    %v493 = vld [vmem:[#allocation12 + $0x208] sm:$0xff]
    %v494 = vld [vmem:[#allocation12 + $0x210] sm:$0xff]
    %v495 = vld [vmem:[#allocation12 + $0x218] sm:$0xff]
    %v496 = vld [vmem:[#allocation12 + $0x220] sm:$0xff]
    %v497 = vld [vmem:[#allocation12 + $0x228] sm:$0xff]
    %v498 = vld [vmem:[#allocation12 + $0x230] sm:$0xff]
    %v499 = vld [vmem:[#allocation12 + $0x238] sm:$0xff]
    %v500 = vld [vmem:[#allocation12 + $0x240] sm:$0xff]
    %v501 = vld [vmem:[#allocation12 + $0x248] sm:$0xff]
    %v502 = vld [vmem:[#allocation12 + $0x250] sm:$0xff]
    %v503 = vld [vmem:[#allocation12 + $0x258] sm:$0xff]
    %v504 = vld [vmem:[#allocation12 + $0x260] sm:$0xff]
    %v505 = vld [vmem:[#allocation12 + $0x268] sm:$0xff]
    %v506 = vld [vmem:[#allocation12 + $0x270] sm:$0xff]
    %v507 = vld [vmem:[#allocation12 + $0x278] sm:$0xff]
    %v508 = vld [vmem:[#allocation12 + $0x280] sm:$0xff]
    %v509 = vld [vmem:[#allocation12 + $0x288] sm:$0xff]
    %v510 = vld [vmem:[#allocation12 + $0x290] sm:$0xff]
    %v511 = vld [vmem:[#allocation12 + $0x298] sm:$0xff]
    %v512 = vld [vmem:[#allocation12 + $0x2a0] sm:$0xff]
    %v513 = vld [vmem:[#allocation12 + $0x2a8] sm:$0xff]
    %v514 = vld [vmem:[#allocation12 + $0x2b0] sm:$0xff]
    %v515 = vld [vmem:[#allocation12 + $0x2b8] sm:$0xff]
    %v516 = vld [vmem:[#allocation12 + $0x2c0] sm:$0xff]
    %v517 = vld [vmem:[#allocation12 + $0x2c8] sm:$0xff]
    %v518 = vld [vmem:[#allocation12 + $0x2d0] sm:$0xff]
    %v519 = vld [vmem:[#allocation12 + $0x2d8] sm:$0xff]
    %v520 = vld [vmem:[#allocation12 + $0x2e0] sm:$0xff]
    %v521 = vld [vmem:[#allocation12 + $0x2e8] sm:$0xff]
    %v522 = vld [vmem:[#allocation12 + $0x2f0] sm:$0xff]
    %v523 = vld [vmem:[#allocation12 + $0x2f8] sm:$0xff]
    %v524 = vld [vmem:[#allocation12 + $0x300] sm:$0xff]
    %v525 = vld [vmem:[#allocation12 + $0x308] sm:$0xff]
    %v526 = vld [vmem:[#allocation12 + $0x310] sm:$0xff]
    %v527 = vld [vmem:[#allocation12 + $0x318] sm:$0xff]
    %v528 = vld [vmem:[#allocation12 + $0x320] sm:$0xff]
    %v529 = vld [vmem:[#allocation12 + $0x328] sm:$0xff]
    %v530 = vld [vmem:[#allocation12 + $0x330] sm:$0xff]
    %v531 = vld [vmem:[#allocation12 + $0x338] sm:$0xff]
    %v532 = vld [vmem:[#allocation12 + $0x340] sm:$0xff]
    %v533 = vld [vmem:[#allocation12 + $0x348] sm:$0xff]
    %v534 = vld [vmem:[#allocation12 + $0x350] sm:$0xff]
    %v535 = vld [vmem:[#allocation12 + $0x358] sm:$0xff]
    %v536 = vld [vmem:[#allocation12 + $0x360] sm:$0xff]
    %v537 = vld [vmem:[#allocation12 + $0x368] sm:$0xff]
    %v538 = vld [vmem:[#allocation12 + $0x370] sm:$0xff]
    %v539 = vld [vmem:[#allocation12 + $0x378] sm:$0xff]
    %v540 = vld [vmem:[#allocation12 + $0x380] sm:$0xff]
    %v541 = vld [vmem:[#allocation12 + $0x388] sm:$0xff]
    %v542 = vld [vmem:[#allocation12 + $0x390] sm:$0xff]
    %v543 = vld [vmem:[#allocation12 + $0x398] sm:$0xff]
    %v544 = vld [vmem:[#allocation12 + $0x3a0] sm:$0xff]
    %v545 = vld [vmem:[#allocation12 + $0x3a8] sm:$0xff]
    %v546 = vld [vmem:[#allocation12 + $0x3b0] sm:$0xff]
    %v547 = vld [vmem:[#allocation12 + $0x3b8] sm:$0xff]
    %v548 = vld [vmem:[#allocation12 + $0x3c0] sm:$0xff]
    %v549 = vld [vmem:[#allocation12 + $0x3c8] sm:$0xff]
    %v550 = vld [vmem:[#allocation12 + $0x3d0] sm:$0xff]
    %v551 = vld [vmem:[#allocation12 + $0x3d8] sm:$0xff]
    %v552 = vld [vmem:[#allocation12 + $0x3e0] sm:$0xff]
    %v553 = vld [vmem:[#allocation12 + $0x3e8] sm:$0xff]
    %v554 = vld [vmem:[#allocation12 + $0x3f0] sm:$0xff]
    %v555 = vld [vmem:[#allocation12 + $0x3f8] sm:$0xff]
    %v556 = vld [vmem:[#allocation12 + $0x400] sm:$0xff]
    %v557 = vld [vmem:[#allocation12 + $0x408] sm:$0xff]
    %v558 = vld [vmem:[#allocation12 + $0x410] sm:$0xff]
    %v559 = vld [vmem:[#allocation12 + $0x418] sm:$0xff]
    %v560 = vld [vmem:[#allocation12 + $0x420] sm:$0xff]
    %v561 = vld [vmem:[#allocation12 + $0x428] sm:$0xff]
    %v562 = vld [vmem:[#allocation12 + $0x430] sm:$0xff]
    %v563 = vld [vmem:[#allocation12 + $0x438] sm:$0xff]
    %v564 = vld [vmem:[#allocation12 + $0x440] sm:$0xff]
    %v565 = vld [vmem:[#allocation12 + $0x448] sm:$0xff]
    %v566 = vld [vmem:[#allocation12 + $0x450] sm:$0xff]
    %v567 = vld [vmem:[#allocation12 + $0x458] sm:$0xff]
    %v568 = vld [vmem:[#allocation12 + $0x460] sm:$0xff]
    %v569 = vld [vmem:[#allocation12 + $0x468] sm:$0xff]
    %v570 = vld [vmem:[#allocation12 + $0x470] sm:$0xff]
    %v571 = vld [vmem:[#allocation12 + $0x478] sm:$0xff]
    %v572 = vld [vmem:[#allocation12 + $0x480] sm:$0xff]
    %v573 = vld [vmem:[#allocation12 + $0x488] sm:$0xff]
    %v574 = vld [vmem:[#allocation12 + $0x490] sm:$0xff]
    %v575 = vld [vmem:[#allocation12 + $0x498] sm:$0xff]
    %v576 = vld [vmem:[#allocation12 + $0x4a0] sm:$0xff]
    %v577 = vld [vmem:[#allocation12 + $0x4a8] sm:$0xff]
    %v578 = vld [vmem:[#allocation12 + $0x4b0] sm:$0xff]
    %v579 = vld [vmem:[#allocation12 + $0x4b8] sm:$0xff]
    %v580 = vld [vmem:[#allocation12 + $0x4c0] sm:$0xff]
    %v581 = vld [vmem:[#allocation12 + $0x4c8] sm:$0xff]
    %v582 = vld [vmem:[#allocation12 + $0x4d0] sm:$0xff]
    %v583 = vld [vmem:[#allocation12 + $0x4d8] sm:$0xff]
    %v584 = vld [vmem:[#allocation12 + $0x4e0] sm:$0xff]
    %v585 = vld [vmem:[#allocation12 + $0x4e8] sm:$0xff]
    %v586 = vld [vmem:[#allocation12 + $0x4f0] sm:$0xff]
    %v587 = vld [vmem:[#allocation12 + $0x4f8] sm:$0xff]
    %v588 = vld [vmem:[#allocation12 + $0x500] sm:$0xff]
    %v589 = vld [vmem:[#allocation12 + $0x508] sm:$0xff]
    %v590 = vld [vmem:[#allocation12 + $0x510] sm:$0xff]
    %v591 = vld [vmem:[#allocation12 + $0x518] sm:$0xff]
    %v592 = vld [vmem:[#allocation12 + $0x520] sm:$0xff]
    %v593 = vld [vmem:[#allocation12 + $0x528] sm:$0xff]
    %v594 = vld [vmem:[#allocation12 + $0x530] sm:$0xff]
    %v595 = vld [vmem:[#allocation12 + $0x538] sm:$0xff]
    %v596 = vld [vmem:[#allocation12 + $0x540] sm:$0xff]
    %v597 = vld [vmem:[#allocation12 + $0x548] sm:$0xff]
    %v598 = vld [vmem:[#allocation12 + $0x550] sm:$0xff]
    %v599 = vld [vmem:[#allocation12 + $0x558] sm:$0xff]
    %v600 = vld [vmem:[#allocation12 + $0x560] sm:$0xff]
    %v601 = vld [vmem:[#allocation12 + $0x568] sm:$0xff]
    %v602 = vld [vmem:[#allocation12 + $0x570] sm:$0xff]
    %v603 = vld [vmem:[#allocation12 + $0x578] sm:$0xff]
    %v604 = vld [vmem:[#allocation12 + $0x580] sm:$0xff]
    %v605 = vld [vmem:[#allocation12 + $0x588] sm:$0xff]
    %v606 = vld [vmem:[#allocation12 + $0x590] sm:$0xff]
    %v607 = vld [vmem:[#allocation12 + $0x598] sm:$0xff]
    %v608 = vld [vmem:[#allocation12 + $0x5a0] sm:$0xff]
    %v609 = vld [vmem:[#allocation12 + $0x5a8] sm:$0xff]
    %v610 = vld [vmem:[#allocation12 + $0x5b0] sm:$0xff]
    %v611 = vld [vmem:[#allocation12 + $0x5b8] sm:$0xff]
    %v612 = vld [vmem:[#allocation12 + $0x5c0] sm:$0xff]
    %v613 = vld [vmem:[#allocation12 + $0x5c8] sm:$0xff]
    %v614 = vld [vmem:[#allocation12 + $0x5d0] sm:$0xff]
    %v615 = vld [vmem:[#allocation12 + $0x5d8] sm:$0xff]
    %v616 = vld [vmem:[#allocation12 + $0x5e0] sm:$0xff]
    %v617 = vld [vmem:[#allocation12 + $0x5e8] sm:$0xff]
    %v618 = vld [vmem:[#allocation12 + $0x5f0] sm:$0xff]
    %v619 = vld [vmem:[#allocation12 + $0x5f8] sm:$0xff]
    %v620 = vld [vmem:[#allocation12 + $0x600] sm:$0xff]
    %v621 = vld [vmem:[#allocation12 + $0x608] sm:$0xff]
    %v622 = vld [vmem:[#allocation12 + $0x610] sm:$0xff]
    %v623 = vld [vmem:[#allocation12 + $0x618] sm:$0xff]
    %v624 = vld [vmem:[#allocation12 + $0x620] sm:$0xff]
    %v625 = vld [vmem:[#allocation12 + $0x628] sm:$0xff]
    %v626 = vld [vmem:[#allocation12 + $0x630] sm:$0xff]
    %v627 = vld [vmem:[#allocation12 + $0x638] sm:$0xff]
    %v628 = vld [vmem:[#allocation12 + $0x640] sm:$0xff]
    %v629 = vld [vmem:[#allocation12 + $0x648] sm:$0xff]
    %v630 = vld [vmem:[#allocation12 + $0x650] sm:$0xff]
    %v631 = vld [vmem:[#allocation12 + $0x658] sm:$0xff]
    %v632 = vld [vmem:[#allocation12 + $0x660] sm:$0xff]
    %v633 = vld [vmem:[#allocation12 + $0x668] sm:$0xff]
    %v634 = vld [vmem:[#allocation12 + $0x670] sm:$0xff]
    %v635 = vld [vmem:[#allocation12 + $0x678] sm:$0xff]
    %v636 = vld [vmem:[#allocation12 + $0x680] sm:$0xff]
    %v637 = vld [vmem:[#allocation12 + $0x688] sm:$0xff]
    %v638 = vld [vmem:[#allocation12 + $0x690] sm:$0xff]
    %v639 = vld [vmem:[#allocation12 + $0x698] sm:$0xff]
    %v640 = vld [vmem:[#allocation12 + $0x6a0] sm:$0xff]
    %v641 = vld [vmem:[#allocation12 + $0x6a8] sm:$0xff]
    %v642 = vld [vmem:[#allocation12 + $0x6b0] sm:$0xff]
    %v643 = vld [vmem:[#allocation12 + $0x6b8] sm:$0xff]
    %v644 = vld [vmem:[#allocation12 + $0x6c0] sm:$0xff]
    %v645 = vld [vmem:[#allocation12 + $0x6c8] sm:$0xff]
    %v646 = vld [vmem:[#allocation12 + $0x6d0] sm:$0xff]
    %v647 = vld [vmem:[#allocation12 + $0x6d8] sm:$0xff]
    %v648 = vld [vmem:[#allocation12 + $0x6e0] sm:$0xff]
    %v649 = vld [vmem:[#allocation12 + $0x6e8] sm:$0xff]
    %v650 = vld [vmem:[#allocation12 + $0x6f0] sm:$0xff]
    %v651 = vld [vmem:[#allocation12 + $0x6f8] sm:$0xff]
    %v652 = vld [vmem:[#allocation12 + $0x700] sm:$0xff]
    %v653 = vld [vmem:[#allocation12 + $0x708] sm:$0xff]
    %v654 = vld [vmem:[#allocation12 + $0x710] sm:$0xff]
    %v655 = vld [vmem:[#allocation12 + $0x718] sm:$0xff]
    %v656 = vld [vmem:[#allocation12 + $0x720] sm:$0xff]
    %v657 = vld [vmem:[#allocation12 + $0x728] sm:$0xff]
    %v658 = vld [vmem:[#allocation12 + $0x730] sm:$0xff]
    %v659 = vld [vmem:[#allocation12 + $0x738] sm:$0xff]
    %v660 = vld [vmem:[#allocation12 + $0x740] sm:$0xff]
    %v661 = vld [vmem:[#allocation12 + $0x748] sm:$0xff]
    %v662 = vld [vmem:[#allocation12 + $0x750] sm:$0xff]
    %v663 = vld [vmem:[#allocation12 + $0x758] sm:$0xff]
    %v664 = vld [vmem:[#allocation12 + $0x760] sm:$0xff]
    %v665 = vld [vmem:[#allocation12 + $0x768] sm:$0xff]
    %v666 = vld [vmem:[#allocation12 + $0x770] sm:$0xff]
    %v667 = vld [vmem:[#allocation12 + $0x778] sm:$0xff]
    %v668 = vld [vmem:[#allocation12 + $0x780] sm:$0xff]
    %v669 = vld [vmem:[#allocation12 + $0x788] sm:$0xff]
    %v670 = vld [vmem:[#allocation12 + $0x790] sm:$0xff]
    %v671 = vld [vmem:[#allocation12 + $0x798] sm:$0xff]
    %v672 = vld [vmem:[#allocation12 + $0x7a0] sm:$0xff]
    %v673 = vld [vmem:[#allocation12 + $0x7a8] sm:$0xff]
    %v674 = vld [vmem:[#allocation12 + $0x7b0] sm:$0xff]
    %v675 = vld [vmem:[#allocation12 + $0x7b8] sm:$0xff]
    %v676 = vld [vmem:[#allocation12 + $0x7c0] sm:$0xff]
    %v677 = vld [vmem:[#allocation12 + $0x7c8] sm:$0xff]
    %v678 = vld [vmem:[#allocation12 + $0x7d0] sm:$0xff]
    %v679 = vld [vmem:[#allocation12 + $0x7d8] sm:$0xff]
    %v680 = vld [vmem:[#allocation12 + $0x7e0] sm:$0xff]
    %v681 = vld [vmem:[#allocation12 + $0x7e8] sm:$0xff]
    %v682 = vld [vmem:[#allocation12 + $0x7f0] sm:$0xff]
    %v683 = vld [vmem:[#allocation12 + $0x7f8] sm:$0xff]
    %v940 = vunpack.c.l.b16 %v428
    %v941 = vunpack.c.h.b16 %v428
    %v942 = vunpack.c.l.b16 %v429
    %v943 = vunpack.c.h.b16 %v429
    %v944 = vunpack.c.l.b16 %v430
    %v945 = vunpack.c.h.b16 %v430
    %v946 = vunpack.c.l.b16 %v431
    %v947 = vunpack.c.h.b16 %v431
    %v948 = vunpack.c.l.b16 %v432
    %v949 = vunpack.c.h.b16 %v432
    %v950 = vunpack.c.l.b16 %v433
    %v951 = vunpack.c.h.b16 %v433
    %v952 = vunpack.c.l.b16 %v434
    %v953 = vunpack.c.h.b16 %v434
    %v954 = vunpack.c.l.b16 %v435
    %v955 = vunpack.c.h.b16 %v435
    %v956 = vunpack.c.l.b16 %v436
    %v957 = vunpack.c.h.b16 %v436
    %v958 = vunpack.c.l.b16 %v437
    %v959 = vunpack.c.h.b16 %v437
    %v960 = vunpack.c.l.b16 %v438
    %v961 = vunpack.c.h.b16 %v438
    %v962 = vunpack.c.l.b16 %v439
    %v963 = vunpack.c.h.b16 %v439
    %v964 = vunpack.c.l.b16 %v440
    %v965 = vunpack.c.h.b16 %v440
    %v966 = vunpack.c.l.b16 %v441
    %v967 = vunpack.c.h.b16 %v441
    %v968 = vunpack.c.l.b16 %v442
    %v969 = vunpack.c.h.b16 %v442
    %v970 = vunpack.c.l.b16 %v443
    %v971 = vunpack.c.h.b16 %v443
    %v972 = vunpack.c.l.b16 %v444
    %v973 = vunpack.c.h.b16 %v444
    %v974 = vunpack.c.l.b16 %v445
    %v975 = vunpack.c.h.b16 %v445
    %v976 = vunpack.c.l.b16 %v446
    %v977 = vunpack.c.h.b16 %v446
    %v978 = vunpack.c.l.b16 %v447
    %v979 = vunpack.c.h.b16 %v447
    %v980 = vunpack.c.l.b16 %v448
    %v981 = vunpack.c.h.b16 %v448
    %v982 = vunpack.c.l.b16 %v449
    %v983 = vunpack.c.h.b16 %v449
    %v984 = vunpack.c.l.b16 %v450
    %v985 = vunpack.c.h.b16 %v450
    %v986 = vunpack.c.l.b16 %v451
    %v987 = vunpack.c.h.b16 %v451
    %v988 = vunpack.c.l.b16 %v452
    %v989 = vunpack.c.h.b16 %v452
    %v990 = vunpack.c.l.b16 %v453
    %v991 = vunpack.c.h.b16 %v453
    %v992 = vunpack.c.l.b16 %v454
    %v993 = vunpack.c.h.b16 %v454
    %v994 = vunpack.c.l.b16 %v455
    %v995 = vunpack.c.h.b16 %v455
    %v996 = vunpack.c.l.b16 %v456
    %v997 = vunpack.c.h.b16 %v456
    %v998 = vunpack.c.l.b16 %v457
    %v999 = vunpack.c.h.b16 %v457
    %v1000 = vunpack.c.l.b16 %v458
    %v1001 = vunpack.c.h.b16 %v458
    %v1002 = vunpack.c.l.b16 %v459
    %v1003 = vunpack.c.h.b16 %v459
    %v1004 = vunpack.c.l.b16 %v460
    %v1005 = vunpack.c.h.b16 %v460
    %v1006 = vunpack.c.l.b16 %v461
    %v1007 = vunpack.c.h.b16 %v461
    %v1008 = vunpack.c.l.b16 %v462
    %v1009 = vunpack.c.h.b16 %v462
    %v1010 = vunpack.c.l.b16 %v463
    %v1011 = vunpack.c.h.b16 %v463
    %v1012 = vunpack.c.l.b16 %v464
    %v1013 = vunpack.c.h.b16 %v464
    %v1014 = vunpack.c.l.b16 %v465
    %v1015 = vunpack.c.h.b16 %v465
    %v1016 = vunpack.c.l.b16 %v466
    %v1017 = vunpack.c.h.b16 %v466
    %v1018 = vunpack.c.l.b16 %v467
    %v1019 = vunpack.c.h.b16 %v467
    %v1020 = vunpack.c.l.b16 %v468
    %v1021 = vunpack.c.h.b16 %v468
    %v1022 = vunpack.c.l.b16 %v469
    %v1023 = vunpack.c.h.b16 %v469
    %v1024 = vunpack.c.l.b16 %v470
    %v1025 = vunpack.c.h.b16 %v470
    %v1026 = vunpack.c.l.b16 %v471
    %v1027 = vunpack.c.h.b16 %v471
    %v1028 = vunpack.c.l.b16 %v472
    %v1029 = vunpack.c.h.b16 %v472
    %v1030 = vunpack.c.l.b16 %v473
    %v1031 = vunpack.c.h.b16 %v473
    %v1032 = vunpack.c.l.b16 %v474
    %v1033 = vunpack.c.h.b16 %v474
    %v1034 = vunpack.c.l.b16 %v475
    %v1035 = vunpack.c.h.b16 %v475
    %v1036 = vunpack.c.l.b16 %v476
    %v1037 = vunpack.c.h.b16 %v476
    %v1038 = vunpack.c.l.b16 %v477
    %v1039 = vunpack.c.h.b16 %v477
    %v1040 = vunpack.c.l.b16 %v478
    %v1041 = vunpack.c.h.b16 %v478
    %v1042 = vunpack.c.l.b16 %v479
    %v1043 = vunpack.c.h.b16 %v479
    %v1044 = vunpack.c.l.b16 %v480
    %v1045 = vunpack.c.h.b16 %v480
    %v1046 = vunpack.c.l.b16 %v481
    %v1047 = vunpack.c.h.b16 %v481
    %v1048 = vunpack.c.l.b16 %v482
    %v1049 = vunpack.c.h.b16 %v482
    %v1050 = vunpack.c.l.b16 %v483
    %v1051 = vunpack.c.h.b16 %v483
    %v1052 = vunpack.c.l.b16 %v484
    %v1053 = vunpack.c.h.b16 %v484
    %v1054 = vunpack.c.l.b16 %v485
    %v1055 = vunpack.c.h.b16 %v485
    %v1056 = vunpack.c.l.b16 %v486
    %v1057 = vunpack.c.h.b16 %v486
    %v1058 = vunpack.c.l.b16 %v487
    %v1059 = vunpack.c.h.b16 %v487
    %v1060 = vunpack.c.l.b16 %v488
    %v1061 = vunpack.c.h.b16 %v488
    %v1062 = vunpack.c.l.b16 %v489
    %v1063 = vunpack.c.h.b16 %v489
    %v1064 = vunpack.c.l.b16 %v490
    %v1065 = vunpack.c.h.b16 %v490
    %v1066 = vunpack.c.l.b16 %v491
    %v1067 = vunpack.c.h.b16 %v491
    %v1068 = vunpack.c.l.b16 %v492
    %v1069 = vunpack.c.h.b16 %v492
    %v1070 = vunpack.c.l.b16 %v493
    %v1071 = vunpack.c.h.b16 %v493
    %v1072 = vunpack.c.l.b16 %v494
    %v1073 = vunpack.c.h.b16 %v494
    %v1074 = vunpack.c.l.b16 %v495
    %v1075 = vunpack.c.h.b16 %v495
    %v1076 = vunpack.c.l.b16 %v496
    %v1077 = vunpack.c.h.b16 %v496
    %v1078 = vunpack.c.l.b16 %v497
    %v1079 = vunpack.c.h.b16 %v497
    %v1080 = vunpack.c.l.b16 %v498
    %v1081 = vunpack.c.h.b16 %v498
    %v1082 = vunpack.c.l.b16 %v499
    %v1083 = vunpack.c.h.b16 %v499
    %v1084 = vunpack.c.l.b16 %v500
    %v1085 = vunpack.c.h.b16 %v500
    %v1086 = vunpack.c.l.b16 %v501
    %v1087 = vunpack.c.h.b16 %v501
    %v1088 = vunpack.c.l.b16 %v502
    %v1089 = vunpack.c.h.b16 %v502
    %v1090 = vunpack.c.l.b16 %v503
    %v1091 = vunpack.c.h.b16 %v503
    %v1092 = vunpack.c.l.b16 %v504
    %v1093 = vunpack.c.h.b16 %v504
    %v1094 = vunpack.c.l.b16 %v505
    %v1095 = vunpack.c.h.b16 %v505
    %v1096 = vunpack.c.l.b16 %v506
    %v1097 = vunpack.c.h.b16 %v506
    %v1098 = vunpack.c.l.b16 %v507
    %v1099 = vunpack.c.h.b16 %v507
    %v1100 = vunpack.c.l.b16 %v508
    %v1101 = vunpack.c.h.b16 %v508
    %v1102 = vunpack.c.l.b16 %v509
    %v1103 = vunpack.c.h.b16 %v509
    %v1104 = vunpack.c.l.b16 %v510
    %v1105 = vunpack.c.h.b16 %v510
    %v1106 = vunpack.c.l.b16 %v511
    %v1107 = vunpack.c.h.b16 %v511
    %v1108 = vunpack.c.l.b16 %v512
    %v1109 = vunpack.c.h.b16 %v512
    %v1110 = vunpack.c.l.b16 %v513
    %v1111 = vunpack.c.h.b16 %v513
    %v1112 = vunpack.c.l.b16 %v514
    %v1113 = vunpack.c.h.b16 %v514
    %v1114 = vunpack.c.l.b16 %v515
    %v1115 = vunpack.c.h.b16 %v515
    %v1116 = vunpack.c.l.b16 %v516
    %v1117 = vunpack.c.h.b16 %v516
    %v1118 = vunpack.c.l.b16 %v517
    %v1119 = vunpack.c.h.b16 %v517
    %v1120 = vunpack.c.l.b16 %v518
    %v1121 = vunpack.c.h.b16 %v518
    %v1122 = vunpack.c.l.b16 %v519
    %v1123 = vunpack.c.h.b16 %v519
    %v1124 = vunpack.c.l.b16 %v520
    %v1125 = vunpack.c.h.b16 %v520
    %v1126 = vunpack.c.l.b16 %v521
    %v1127 = vunpack.c.h.b16 %v521
    %v1128 = vunpack.c.l.b16 %v522
    %v1129 = vunpack.c.h.b16 %v522
    %v1130 = vunpack.c.l.b16 %v523
    %v1131 = vunpack.c.h.b16 %v523
    %v1132 = vunpack.c.l.b16 %v524
    %v1133 = vunpack.c.h.b16 %v524
    %v1134 = vunpack.c.l.b16 %v525
    %v1135 = vunpack.c.h.b16 %v525
    %v1136 = vunpack.c.l.b16 %v526
    %v1137 = vunpack.c.h.b16 %v526
    %v1138 = vunpack.c.l.b16 %v527
    %v1139 = vunpack.c.h.b16 %v527
    %v1140 = vunpack.c.l.b16 %v528
    %v1141 = vunpack.c.h.b16 %v528
    %v1142 = vunpack.c.l.b16 %v529
    %v1143 = vunpack.c.h.b16 %v529
    %v1144 = vunpack.c.l.b16 %v530
    %v1145 = vunpack.c.h.b16 %v530
    %v1146 = vunpack.c.l.b16 %v531
    %v1147 = vunpack.c.h.b16 %v531
    %v1148 = vunpack.c.l.b16 %v532
    %v1149 = vunpack.c.h.b16 %v532
    %v1150 = vunpack.c.l.b16 %v533
    %v1151 = vunpack.c.h.b16 %v533
    %v1152 = vunpack.c.l.b16 %v534
    %v1153 = vunpack.c.h.b16 %v534
    %v1154 = vunpack.c.l.b16 %v535
    %v1155 = vunpack.c.h.b16 %v535
    %v1156 = vunpack.c.l.b16 %v536
    %v1157 = vunpack.c.h.b16 %v536
    %v1158 = vunpack.c.l.b16 %v537
    %v1159 = vunpack.c.h.b16 %v537
    %v1160 = vunpack.c.l.b16 %v538
    %v1161 = vunpack.c.h.b16 %v538
    %v1162 = vunpack.c.l.b16 %v539
    %v1163 = vunpack.c.h.b16 %v539
    %v1164 = vunpack.c.l.b16 %v540
    %v1165 = vunpack.c.h.b16 %v540
    %v1166 = vunpack.c.l.b16 %v541
    %v1167 = vunpack.c.h.b16 %v541
    %v1168 = vunpack.c.l.b16 %v542
    %v1169 = vunpack.c.h.b16 %v542
    %v1170 = vunpack.c.l.b16 %v543
    %v1171 = vunpack.c.h.b16 %v543
    %v1172 = vunpack.c.l.b16 %v544
    %v1173 = vunpack.c.h.b16 %v544
    %v1174 = vunpack.c.l.b16 %v545
    %v1175 = vunpack.c.h.b16 %v545
    %v1176 = vunpack.c.l.b16 %v546
    %v1177 = vunpack.c.h.b16 %v546
    %v1178 = vunpack.c.l.b16 %v547
    %v1179 = vunpack.c.h.b16 %v547
    %v1180 = vunpack.c.l.b16 %v548
    %v1181 = vunpack.c.h.b16 %v548
    %v1182 = vunpack.c.l.b16 %v549
    %v1183 = vunpack.c.h.b16 %v549
    %v1184 = vunpack.c.l.b16 %v550
    %v1185 = vunpack.c.h.b16 %v550
    %v1186 = vunpack.c.l.b16 %v551
    %v1187 = vunpack.c.h.b16 %v551
    %v1188 = vunpack.c.l.b16 %v552
    %v1189 = vunpack.c.h.b16 %v552
    %v1190 = vunpack.c.l.b16 %v553
    %v1191 = vunpack.c.h.b16 %v553
    %v1192 = vunpack.c.l.b16 %v554
    %v1193 = vunpack.c.h.b16 %v554
    %v1194 = vunpack.c.l.b16 %v555
    %v1195 = vunpack.c.h.b16 %v555
    %v1196 = vunpack.c.l.b16 %v556
    %v1197 = vunpack.c.h.b16 %v556
    %v1198 = vunpack.c.l.b16 %v557
    %v1199 = vunpack.c.h.b16 %v557
    %v1200 = vunpack.c.l.b16 %v558
    %v1201 = vunpack.c.h.b16 %v558
    %v1202 = vunpack.c.l.b16 %v559
    %v1203 = vunpack.c.h.b16 %v559
    %v1204 = vunpack.c.l.b16 %v560
    %v1205 = vunpack.c.h.b16 %v560
    %v1206 = vunpack.c.l.b16 %v561
    %v1207 = vunpack.c.h.b16 %v561
    %v1208 = vunpack.c.l.b16 %v562
    %v1209 = vunpack.c.h.b16 %v562
    %v1210 = vunpack.c.l.b16 %v563
    %v1211 = vunpack.c.h.b16 %v563
    %v1212 = vunpack.c.l.b16 %v564
    %v1213 = vunpack.c.h.b16 %v564
    %v1214 = vunpack.c.l.b16 %v565
    %v1215 = vunpack.c.h.b16 %v565
    %v1216 = vunpack.c.l.b16 %v566
    %v1217 = vunpack.c.h.b16 %v566
    %v1218 = vunpack.c.l.b16 %v567
    %v1219 = vunpack.c.h.b16 %v567
    %v1220 = vunpack.c.l.b16 %v568
    %v1221 = vunpack.c.h.b16 %v568
    %v1222 = vunpack.c.l.b16 %v569
    %v1223 = vunpack.c.h.b16 %v569
    %v1224 = vunpack.c.l.b16 %v570
    %v1225 = vunpack.c.h.b16 %v570
    %v1226 = vunpack.c.l.b16 %v571
    %v1227 = vunpack.c.h.b16 %v571
    %v1228 = vunpack.c.l.b16 %v572
    %v1229 = vunpack.c.h.b16 %v572
    %v1230 = vunpack.c.l.b16 %v573
    %v1231 = vunpack.c.h.b16 %v573
    %v1232 = vunpack.c.l.b16 %v574
    %v1233 = vunpack.c.h.b16 %v574
    %v1234 = vunpack.c.l.b16 %v575
    %v1235 = vunpack.c.h.b16 %v575
    %v1236 = vunpack.c.l.b16 %v576
    %v1237 = vunpack.c.h.b16 %v576
    %v1238 = vunpack.c.l.b16 %v577
    %v1239 = vunpack.c.h.b16 %v577
    %v1240 = vunpack.c.l.b16 %v578
    %v1241 = vunpack.c.h.b16 %v578
    %v1242 = vunpack.c.l.b16 %v579
    %v1243 = vunpack.c.h.b16 %v579
    %v1244 = vunpack.c.l.b16 %v580
    %v1245 = vunpack.c.h.b16 %v580
    %v1246 = vunpack.c.l.b16 %v581
    %v1247 = vunpack.c.h.b16 %v581
    %v1248 = vunpack.c.l.b16 %v582
    %v1249 = vunpack.c.h.b16 %v582
    %v1250 = vunpack.c.l.b16 %v583
    %v1251 = vunpack.c.h.b16 %v583
    %v1252 = vunpack.c.l.b16 %v584
    %v1253 = vunpack.c.h.b16 %v584
    %v1254 = vunpack.c.l.b16 %v585
    %v1255 = vunpack.c.h.b16 %v585
    %v1256 = vunpack.c.l.b16 %v586
    %v1257 = vunpack.c.h.b16 %v586
    %v1258 = vunpack.c.l.b16 %v587
    %v1259 = vunpack.c.h.b16 %v587
    %v1260 = vunpack.c.l.b16 %v588
    %v1261 = vunpack.c.h.b16 %v588
    %v1262 = vunpack.c.l.b16 %v589
    %v1263 = vunpack.c.h.b16 %v589
    %v1264 = vunpack.c.l.b16 %v590
    %v1265 = vunpack.c.h.b16 %v590
    %v1266 = vunpack.c.l.b16 %v591
    %v1267 = vunpack.c.h.b16 %v591
    %v1268 = vunpack.c.l.b16 %v592
    %v1269 = vunpack.c.h.b16 %v592
    %v1270 = vunpack.c.l.b16 %v593
    %v1271 = vunpack.c.h.b16 %v593
    %v1272 = vunpack.c.l.b16 %v594
    %v1273 = vunpack.c.h.b16 %v594
    %v1274 = vunpack.c.l.b16 %v595
    %v1275 = vunpack.c.h.b16 %v595
    %v1276 = vunpack.c.l.b16 %v596
    %v1277 = vunpack.c.h.b16 %v596
    %v1278 = vunpack.c.l.b16 %v597
    %v1279 = vunpack.c.h.b16 %v597
    %v1280 = vunpack.c.l.b16 %v598
    %v1281 = vunpack.c.h.b16 %v598
    %v1282 = vunpack.c.l.b16 %v599
    %v1283 = vunpack.c.h.b16 %v599
    %v1284 = vunpack.c.l.b16 %v600
    %v1285 = vunpack.c.h.b16 %v600
    %v1286 = vunpack.c.l.b16 %v601
    %v1287 = vunpack.c.h.b16 %v601
    %v1288 = vunpack.c.l.b16 %v602
    %v1289 = vunpack.c.h.b16 %v602
    %v1290 = vunpack.c.l.b16 %v603
    %v1291 = vunpack.c.h.b16 %v603
    %v1292 = vunpack.c.l.b16 %v604
    %v1293 = vunpack.c.h.b16 %v604
    %v1294 = vunpack.c.l.b16 %v605
    %v1295 = vunpack.c.h.b16 %v605
    %v1296 = vunpack.c.l.b16 %v606
    %v1297 = vunpack.c.h.b16 %v606
    %v1298 = vunpack.c.l.b16 %v607
    %v1299 = vunpack.c.h.b16 %v607
    %v1300 = vunpack.c.l.b16 %v608
    %v1301 = vunpack.c.h.b16 %v608
    %v1302 = vunpack.c.l.b16 %v609
    %v1303 = vunpack.c.h.b16 %v609
    %v1304 = vunpack.c.l.b16 %v610
    %v1305 = vunpack.c.h.b16 %v610
    %v1306 = vunpack.c.l.b16 %v611
    %v1307 = vunpack.c.h.b16 %v611
    %v1308 = vunpack.c.l.b16 %v612
    %v1309 = vunpack.c.h.b16 %v612
    %v1310 = vunpack.c.l.b16 %v613
    %v1311 = vunpack.c.h.b16 %v613
    %v1312 = vunpack.c.l.b16 %v614
    %v1313 = vunpack.c.h.b16 %v614
    %v1314 = vunpack.c.l.b16 %v615
    %v1315 = vunpack.c.h.b16 %v615
    %v1316 = vunpack.c.l.b16 %v616
    %v1317 = vunpack.c.h.b16 %v616
    %v1318 = vunpack.c.l.b16 %v617
    %v1319 = vunpack.c.h.b16 %v617
    %v1320 = vunpack.c.l.b16 %v618
    %v1321 = vunpack.c.h.b16 %v618
    %v1322 = vunpack.c.l.b16 %v619
    %v1323 = vunpack.c.h.b16 %v619
    %v1324 = vunpack.c.l.b16 %v620
    %v1325 = vunpack.c.h.b16 %v620
    %v1326 = vunpack.c.l.b16 %v621
    %v1327 = vunpack.c.h.b16 %v621
    %v1328 = vunpack.c.l.b16 %v622
    %v1329 = vunpack.c.h.b16 %v622
    %v1330 = vunpack.c.l.b16 %v623
    %v1331 = vunpack.c.h.b16 %v623
    %v1332 = vunpack.c.l.b16 %v624
    %v1333 = vunpack.c.h.b16 %v624
    %v1334 = vunpack.c.l.b16 %v625
    %v1335 = vunpack.c.h.b16 %v625
    %v1336 = vunpack.c.l.b16 %v626
    %v1337 = vunpack.c.h.b16 %v626
    %v1338 = vunpack.c.l.b16 %v627
    %v1339 = vunpack.c.h.b16 %v627
    %v1340 = vunpack.c.l.b16 %v628
    %v1341 = vunpack.c.h.b16 %v628
    %v1342 = vunpack.c.l.b16 %v629
    %v1343 = vunpack.c.h.b16 %v629
    %v1344 = vunpack.c.l.b16 %v630
    %v1345 = vunpack.c.h.b16 %v630
    %v1346 = vunpack.c.l.b16 %v631
    %v1347 = vunpack.c.h.b16 %v631
    %v1348 = vunpack.c.l.b16 %v632
    %v1349 = vunpack.c.h.b16 %v632
    %v1350 = vunpack.c.l.b16 %v633
    %v1351 = vunpack.c.h.b16 %v633
    %v1352 = vunpack.c.l.b16 %v634
    %v1353 = vunpack.c.h.b16 %v634
    %v1354 = vunpack.c.l.b16 %v635
    %v1355 = vunpack.c.h.b16 %v635
    %v1356 = vunpack.c.l.b16 %v636
    %v1357 = vunpack.c.h.b16 %v636
    %v1358 = vunpack.c.l.b16 %v637
    %v1359 = vunpack.c.h.b16 %v637
    %v1360 = vunpack.c.l.b16 %v638
    %v1361 = vunpack.c.h.b16 %v638
    %v1362 = vunpack.c.l.b16 %v639
    %v1363 = vunpack.c.h.b16 %v639
    %v1364 = vunpack.c.l.b16 %v640
    %v1365 = vunpack.c.h.b16 %v640
    %v1366 = vunpack.c.l.b16 %v641
    %v1367 = vunpack.c.h.b16 %v641
    %v1368 = vunpack.c.l.b16 %v642
    %v1369 = vunpack.c.h.b16 %v642
    %v1370 = vunpack.c.l.b16 %v643
    %v1371 = vunpack.c.h.b16 %v643
    %v1372 = vunpack.c.l.b16 %v644
    %v1373 = vunpack.c.h.b16 %v644
    %v1374 = vunpack.c.l.b16 %v645
    %v1375 = vunpack.c.h.b16 %v645
    %v1376 = vunpack.c.l.b16 %v646
    %v1377 = vunpack.c.h.b16 %v646
    %v1378 = vunpack.c.l.b16 %v647
    %v1379 = vunpack.c.h.b16 %v647
    %v1380 = vunpack.c.l.b16 %v648
    %v1381 = vunpack.c.h.b16 %v648
    %v1382 = vunpack.c.l.b16 %v649
    %v1383 = vunpack.c.h.b16 %v649
    %v1384 = vunpack.c.l.b16 %v650
    %v1385 = vunpack.c.h.b16 %v650
    %v1386 = vunpack.c.l.b16 %v651
    %v1387 = vunpack.c.h.b16 %v651
    %v1388 = vunpack.c.l.b16 %v652
    %v1389 = vunpack.c.h.b16 %v652
    %v1390 = vunpack.c.l.b16 %v653
    %v1391 = vunpack.c.h.b16 %v653
    %v1392 = vunpack.c.l.b16 %v654
    %v1393 = vunpack.c.h.b16 %v654
    %v1394 = vunpack.c.l.b16 %v655
    %v1395 = vunpack.c.h.b16 %v655
    %v1396 = vunpack.c.l.b16 %v656
    %v1397 = vunpack.c.h.b16 %v656
    %v1398 = vunpack.c.l.b16 %v657
    %v1399 = vunpack.c.h.b16 %v657
    %v1400 = vunpack.c.l.b16 %v658
    %v1401 = vunpack.c.h.b16 %v658
    %v1402 = vunpack.c.l.b16 %v659
    %v1403 = vunpack.c.h.b16 %v659
    %v1404 = vunpack.c.l.b16 %v660
    %v1405 = vunpack.c.h.b16 %v660
    %v1406 = vunpack.c.l.b16 %v661
    %v1407 = vunpack.c.h.b16 %v661
    %v1408 = vunpack.c.l.b16 %v662
    %v1409 = vunpack.c.h.b16 %v662
    %v1410 = vunpack.c.l.b16 %v663
    %v1411 = vunpack.c.h.b16 %v663
    %v1412 = vunpack.c.l.b16 %v664
    %v1413 = vunpack.c.h.b16 %v664
    %v1414 = vunpack.c.l.b16 %v665
    %v1415 = vunpack.c.h.b16 %v665
    %v1416 = vunpack.c.l.b16 %v666
    %v1417 = vunpack.c.h.b16 %v666
    %v1418 = vunpack.c.l.b16 %v667
    %v1419 = vunpack.c.h.b16 %v667
    %v1420 = vunpack.c.l.b16 %v668
    %v1421 = vunpack.c.h.b16 %v668
    %v1422 = vunpack.c.l.b16 %v669
    %v1423 = vunpack.c.h.b16 %v669
    %v1424 = vunpack.c.l.b16 %v670
    %v1425 = vunpack.c.h.b16 %v670
    %v1426 = vunpack.c.l.b16 %v671
    %v1427 = vunpack.c.h.b16 %v671
    %v1428 = vunpack.c.l.b16 %v672
    %v1429 = vunpack.c.h.b16 %v672
    %v1430 = vunpack.c.l.b16 %v673
    %v1431 = vunpack.c.h.b16 %v673
    %v1432 = vunpack.c.l.b16 %v674
    %v1433 = vunpack.c.h.b16 %v674
    %v1434 = vunpack.c.l.b16 %v675
    %v1435 = vunpack.c.h.b16 %v675
    %v1436 = vunpack.c.l.b16 %v676
    %v1437 = vunpack.c.h.b16 %v676
    %v1438 = vunpack.c.l.b16 %v677
    %v1439 = vunpack.c.h.b16 %v677
    %v1440 = vunpack.c.l.b16 %v678
    %v1441 = vunpack.c.h.b16 %v678
    %v1442 = vunpack.c.l.b16 %v679
    %v1443 = vunpack.c.h.b16 %v679
    %v1444 = vunpack.c.l.b16 %v680
    %v1445 = vunpack.c.h.b16 %v680
    %v1446 = vunpack.c.l.b16 %v681
    %v1447 = vunpack.c.h.b16 %v681
    %v1448 = vunpack.c.l.b16 %v682
    %v1449 = vunpack.c.h.b16 %v682
    %v1450 = vunpack.c.l.b16 %v683
    %v1451 = vunpack.c.h.b16 %v683
    %v1452 = vpack.c.b16 %v944, %v940
    %v1453 = vpack.c.b16 %v945, %v941
    %v1454 = vpack.c.b16 %v946, %v942
    %v1455 = vpack.c.b16 %v947, %v943
    %v1456 = vpack.c.b16 %v952, %v948
    %v1457 = vpack.c.b16 %v953, %v949
    %v1458 = vpack.c.b16 %v954, %v950
    %v1459 = vpack.c.b16 %v955, %v951
    %v1460 = vpack.c.b16 %v960, %v956
    %v1461 = vpack.c.b16 %v961, %v957
    %v1462 = vpack.c.b16 %v962, %v958
    %v1463 = vpack.c.b16 %v963, %v959
    %v1464 = vpack.c.b16 %v968, %v964
    %v1465 = vpack.c.b16 %v969, %v965
    %v1466 = vpack.c.b16 %v970, %v966
    %v1467 = vpack.c.b16 %v971, %v967
    %v1468 = vpack.c.b16 %v976, %v972
    %v1469 = vpack.c.b16 %v977, %v973
    %v1470 = vpack.c.b16 %v978, %v974
    %v1471 = vpack.c.b16 %v979, %v975
    %v1472 = vpack.c.b16 %v984, %v980
    %v1473 = vpack.c.b16 %v985, %v981
    %v1474 = vpack.c.b16 %v986, %v982
    %v1475 = vpack.c.b16 %v987, %v983
    %v1476 = vpack.c.b16 %v992, %v988
    %v1477 = vpack.c.b16 %v993, %v989
    %v1478 = vpack.c.b16 %v994, %v990
    %v1479 = vpack.c.b16 %v995, %v991
    %v1480 = vpack.c.b16 %v1000, %v996
    %v1481 = vpack.c.b16 %v1001, %v997
    %v1482 = vpack.c.b16 %v1002, %v998
    %v1483 = vpack.c.b16 %v1003, %v999
    %v1484 = vpack.c.b16 %v1008, %v1004
    %v1485 = vpack.c.b16 %v1009, %v1005
    %v1486 = vpack.c.b16 %v1010, %v1006
    %v1487 = vpack.c.b16 %v1011, %v1007
    %v1488 = vpack.c.b16 %v1016, %v1012
    %v1489 = vpack.c.b16 %v1017, %v1013
    %v1490 = vpack.c.b16 %v1018, %v1014
    %v1491 = vpack.c.b16 %v1019, %v1015
    %v1492 = vpack.c.b16 %v1024, %v1020
    %v1493 = vpack.c.b16 %v1025, %v1021
    %v1494 = vpack.c.b16 %v1026, %v1022
    %v1495 = vpack.c.b16 %v1027, %v1023
    %v1496 = vpack.c.b16 %v1032, %v1028
    %v1497 = vpack.c.b16 %v1033, %v1029
    %v1498 = vpack.c.b16 %v1034, %v1030
    %v1499 = vpack.c.b16 %v1035, %v1031
    %v1500 = vpack.c.b16 %v1040, %v1036
    %v1501 = vpack.c.b16 %v1041, %v1037
    %v1502 = vpack.c.b16 %v1042, %v1038
    %v1503 = vpack.c.b16 %v1043, %v1039
    %v1504 = vpack.c.b16 %v1048, %v1044
    %v1505 = vpack.c.b16 %v1049, %v1045
    %v1506 = vpack.c.b16 %v1050, %v1046
    %v1507 = vpack.c.b16 %v1051, %v1047
    %v1508 = vpack.c.b16 %v1056, %v1052
    %v1509 = vpack.c.b16 %v1057, %v1053
    %v1510 = vpack.c.b16 %v1058, %v1054
    %v1511 = vpack.c.b16 %v1059, %v1055
    %v1512 = vpack.c.b16 %v1064, %v1060
    %v1513 = vpack.c.b16 %v1065, %v1061
    %v1514 = vpack.c.b16 %v1066, %v1062
    %v1515 = vpack.c.b16 %v1067, %v1063
    %v1516 = vpack.c.b16 %v1072, %v1068
    %v1517 = vpack.c.b16 %v1073, %v1069
    %v1518 = vpack.c.b16 %v1074, %v1070
    %v1519 = vpack.c.b16 %v1075, %v1071
    %v1520 = vpack.c.b16 %v1080, %v1076
    %v1521 = vpack.c.b16 %v1081, %v1077
    %v1522 = vpack.c.b16 %v1082, %v1078
    %v1523 = vpack.c.b16 %v1083, %v1079
    %v1524 = vpack.c.b16 %v1088, %v1084
    %v1525 = vpack.c.b16 %v1089, %v1085
    %v1526 = vpack.c.b16 %v1090, %v1086
    %v1527 = vpack.c.b16 %v1091, %v1087
    %v1528 = vpack.c.b16 %v1096, %v1092
    %v1529 = vpack.c.b16 %v1097, %v1093
    %v1530 = vpack.c.b16 %v1098, %v1094
    %v1531 = vpack.c.b16 %v1099, %v1095
    %v1532 = vpack.c.b16 %v1104, %v1100
    %v1533 = vpack.c.b16 %v1105, %v1101
    %v1534 = vpack.c.b16 %v1106, %v1102
    %v1535 = vpack.c.b16 %v1107, %v1103
    %v1536 = vpack.c.b16 %v1112, %v1108
    %v1537 = vpack.c.b16 %v1113, %v1109
    %v1538 = vpack.c.b16 %v1114, %v1110
    %v1539 = vpack.c.b16 %v1115, %v1111
    %v1540 = vpack.c.b16 %v1120, %v1116
    %v1541 = vpack.c.b16 %v1121, %v1117
    %v1542 = vpack.c.b16 %v1122, %v1118
    %v1543 = vpack.c.b16 %v1123, %v1119
    %v1544 = vpack.c.b16 %v1128, %v1124
    %v1545 = vpack.c.b16 %v1129, %v1125
    %v1546 = vpack.c.b16 %v1130, %v1126
    %v1547 = vpack.c.b16 %v1131, %v1127
    %v1548 = vpack.c.b16 %v1136, %v1132
    %v1549 = vpack.c.b16 %v1137, %v1133
    %v1550 = vpack.c.b16 %v1138, %v1134
    %v1551 = vpack.c.b16 %v1139, %v1135
    %v1552 = vpack.c.b16 %v1144, %v1140
    %v1553 = vpack.c.b16 %v1145, %v1141
    %v1554 = vpack.c.b16 %v1146, %v1142
    %v1555 = vpack.c.b16 %v1147, %v1143
    %v1556 = vpack.c.b16 %v1152, %v1148
    %v1557 = vpack.c.b16 %v1153, %v1149
    %v1558 = vpack.c.b16 %v1154, %v1150
    %v1559 = vpack.c.b16 %v1155, %v1151
    %v1560 = vpack.c.b16 %v1160, %v1156
    %v1561 = vpack.c.b16 %v1161, %v1157
    %v1562 = vpack.c.b16 %v1162, %v1158
    %v1563 = vpack.c.b16 %v1163, %v1159
    %v1564 = vpack.c.b16 %v1168, %v1164
    %v1565 = vpack.c.b16 %v1169, %v1165
    %v1566 = vpack.c.b16 %v1170, %v1166
    %v1567 = vpack.c.b16 %v1171, %v1167
    %v1568 = vpack.c.b16 %v1176, %v1172
    %v1569 = vpack.c.b16 %v1177, %v1173
    %v1570 = vpack.c.b16 %v1178, %v1174
    %v1571 = vpack.c.b16 %v1179, %v1175
    %v1572 = vpack.c.b16 %v1184, %v1180
    %v1573 = vpack.c.b16 %v1185, %v1181
    %v1574 = vpack.c.b16 %v1186, %v1182
    %v1575 = vpack.c.b16 %v1187, %v1183
    %v1576 = vpack.c.b16 %v1192, %v1188
    %v1577 = vpack.c.b16 %v1193, %v1189
    %v1578 = vpack.c.b16 %v1194, %v1190
    %v1579 = vpack.c.b16 %v1195, %v1191
    %v1580 = vpack.c.b16 %v1200, %v1196
    %v1581 = vpack.c.b16 %v1201, %v1197
    %v1582 = vpack.c.b16 %v1202, %v1198
    %v1583 = vpack.c.b16 %v1203, %v1199
    %v1584 = vpack.c.b16 %v1208, %v1204
    %v1585 = vpack.c.b16 %v1209, %v1205
    %v1586 = vpack.c.b16 %v1210, %v1206
    %v1587 = vpack.c.b16 %v1211, %v1207
    %v1588 = vpack.c.b16 %v1216, %v1212
    %v1589 = vpack.c.b16 %v1217, %v1213
    %v1590 = vpack.c.b16 %v1218, %v1214
    %v1591 = vpack.c.b16 %v1219, %v1215
    %v1592 = vpack.c.b16 %v1224, %v1220
    %v1593 = vpack.c.b16 %v1225, %v1221
    %v1594 = vpack.c.b16 %v1226, %v1222
    %v1595 = vpack.c.b16 %v1227, %v1223
    %v1596 = vpack.c.b16 %v1232, %v1228
    %v1597 = vpack.c.b16 %v1233, %v1229
    %v1598 = vpack.c.b16 %v1234, %v1230
    %v1599 = vpack.c.b16 %v1235, %v1231
    %v1600 = vpack.c.b16 %v1240, %v1236
    %v1601 = vpack.c.b16 %v1241, %v1237
    %v1602 = vpack.c.b16 %v1242, %v1238
    %v1603 = vpack.c.b16 %v1243, %v1239
    %v1604 = vpack.c.b16 %v1248, %v1244
    %v1605 = vpack.c.b16 %v1249, %v1245
    %v1606 = vpack.c.b16 %v1250, %v1246
    %v1607 = vpack.c.b16 %v1251, %v1247
    %v1608 = vpack.c.b16 %v1256, %v1252
    %v1609 = vpack.c.b16 %v1257, %v1253
    %v1610 = vpack.c.b16 %v1258, %v1254
    %v1611 = vpack.c.b16 %v1259, %v1255
    %v1612 = vpack.c.b16 %v1264, %v1260
    %v1613 = vpack.c.b16 %v1265, %v1261
    %v1614 = vpack.c.b16 %v1266, %v1262
    %v1615 = vpack.c.b16 %v1267, %v1263
    %v1616 = vpack.c.b16 %v1272, %v1268
    %v1617 = vpack.c.b16 %v1273, %v1269
    %v1618 = vpack.c.b16 %v1274, %v1270
    %v1619 = vpack.c.b16 %v1275, %v1271
    %v1620 = vpack.c.b16 %v1280, %v1276
    %v1621 = vpack.c.b16 %v1281, %v1277
    %v1622 = vpack.c.b16 %v1282, %v1278
    %v1623 = vpack.c.b16 %v1283, %v1279
    %v1624 = vpack.c.b16 %v1288, %v1284
    %v1625 = vpack.c.b16 %v1289, %v1285
    %v1626 = vpack.c.b16 %v1290, %v1286
    %v1627 = vpack.c.b16 %v1291, %v1287
    %v1628 = vpack.c.b16 %v1296, %v1292
    %v1629 = vpack.c.b16 %v1297, %v1293
    %v1630 = vpack.c.b16 %v1298, %v1294
    %v1631 = vpack.c.b16 %v1299, %v1295
    %v1632 = vpack.c.b16 %v1304, %v1300
    %v1633 = vpack.c.b16 %v1305, %v1301
    %v1634 = vpack.c.b16 %v1306, %v1302
    %v1635 = vpack.c.b16 %v1307, %v1303
    %v1636 = vpack.c.b16 %v1312, %v1308
    %v1637 = vpack.c.b16 %v1313, %v1309
    %v1638 = vpack.c.b16 %v1314, %v1310
    %v1639 = vpack.c.b16 %v1315, %v1311
    %v1640 = vpack.c.b16 %v1320, %v1316
    %v1641 = vpack.c.b16 %v1321, %v1317
    %v1642 = vpack.c.b16 %v1322, %v1318
    %v1643 = vpack.c.b16 %v1323, %v1319
    %v1644 = vpack.c.b16 %v1328, %v1324
    %v1645 = vpack.c.b16 %v1329, %v1325
    %v1646 = vpack.c.b16 %v1330, %v1326
    %v1647 = vpack.c.b16 %v1331, %v1327
    %v1648 = vpack.c.b16 %v1336, %v1332
    %v1649 = vpack.c.b16 %v1337, %v1333
    %v1650 = vpack.c.b16 %v1338, %v1334
    %v1651 = vpack.c.b16 %v1339, %v1335
    %v1652 = vpack.c.b16 %v1344, %v1340
    %v1653 = vpack.c.b16 %v1345, %v1341
    %v1654 = vpack.c.b16 %v1346, %v1342
    %v1655 = vpack.c.b16 %v1347, %v1343
    %v1656 = vpack.c.b16 %v1352, %v1348
    %v1657 = vpack.c.b16 %v1353, %v1349
    %v1658 = vpack.c.b16 %v1354, %v1350
    %v1659 = vpack.c.b16 %v1355, %v1351
    %v1660 = vpack.c.b16 %v1360, %v1356
    %v1661 = vpack.c.b16 %v1361, %v1357
    %v1662 = vpack.c.b16 %v1362, %v1358
    %v1663 = vpack.c.b16 %v1363, %v1359
    %v1664 = vpack.c.b16 %v1368, %v1364
    %v1665 = vpack.c.b16 %v1369, %v1365
    %v1666 = vpack.c.b16 %v1370, %v1366
    %v1667 = vpack.c.b16 %v1371, %v1367
    %v1668 = vpack.c.b16 %v1376, %v1372
    %v1669 = vpack.c.b16 %v1377, %v1373
    %v1670 = vpack.c.b16 %v1378, %v1374
    %v1671 = vpack.c.b16 %v1379, %v1375
    %v1672 = vpack.c.b16 %v1384, %v1380
    %v1673 = vpack.c.b16 %v1385, %v1381
    %v1674 = vpack.c.b16 %v1386, %v1382
    %v1675 = vpack.c.b16 %v1387, %v1383
    %v1676 = vpack.c.b16 %v1392, %v1388
    %v1677 = vpack.c.b16 %v1393, %v1389
    %v1678 = vpack.c.b16 %v1394, %v1390
    %v1679 = vpack.c.b16 %v1395, %v1391
    %v1680 = vpack.c.b16 %v1400, %v1396
    %v1681 = vpack.c.b16 %v1401, %v1397
    %v1682 = vpack.c.b16 %v1402, %v1398
    %v1683 = vpack.c.b16 %v1403, %v1399
    %v1684 = vpack.c.b16 %v1408, %v1404
    %v1685 = vpack.c.b16 %v1409, %v1405
    %v1686 = vpack.c.b16 %v1410, %v1406
    %v1687 = vpack.c.b16 %v1411, %v1407
    %v1688 = vpack.c.b16 %v1416, %v1412
    %v1689 = vpack.c.b16 %v1417, %v1413
    %v1690 = vpack.c.b16 %v1418, %v1414
    %v1691 = vpack.c.b16 %v1419, %v1415
    %v1692 = vpack.c.b16 %v1424, %v1420
    %v1693 = vpack.c.b16 %v1425, %v1421
    %v1694 = vpack.c.b16 %v1426, %v1422
    %v1695 = vpack.c.b16 %v1427, %v1423
    %v1696 = vpack.c.b16 %v1432, %v1428
    %v1697 = vpack.c.b16 %v1433, %v1429
    %v1698 = vpack.c.b16 %v1434, %v1430
    %v1699 = vpack.c.b16 %v1435, %v1431
    %v1700 = vpack.c.b16 %v1440, %v1436
    %v1701 = vpack.c.b16 %v1441, %v1437
    %v1702 = vpack.c.b16 %v1442, %v1438
    %v1703 = vpack.c.b16 %v1443, %v1439
    %v1704 = vpack.c.b16 %v1448, %v1444
    %v1705 = vpack.c.b16 %v1449, %v1445
    %v1706 = vpack.c.b16 %v1450, %v1446
    %v1707 = vpack.c.b16 %v1451, %v1447
    %1964 = vmatprep.subr.bf16.mxu0 %v1481
    %1965 = vmatpush1.bf16.msra.mxu0 %v1480
    %1966 = vmatprep.subr.bf16.mxu0 %v1477
    %1967 = vmatpush1.bf16.msra.mxu0 %v1476
    %1968 = vmatprep.subr.bf16.mxu0 %v1473
    %1969 = vmatpush1.bf16.msra.mxu0 %v1472
    %1970 = vmatprep.subr.bf16.mxu0 %v1469
    %1971 = vmatpush1.bf16.msra.mxu0 %v1468
    %1972 = vmatprep.subr.bf16.mxu0 %v1465
    %1973 = vmatpush1.bf16.msra.mxu0 %v1464
    %1974 = vmatprep.subr.bf16.mxu0 %v1461
    %1975 = vmatpush1.bf16.msra.mxu0 %v1460
    %1976 = vmatprep.subr.bf16.mxu0 %v1457
    %1977 = vmatpush1.bf16.msra.mxu0 %v1456
    %1978 = vmatprep.subr.bf16.mxu0 %v1453
    %1979 = vmatpush1.bf16.msra.mxu0 %v1452
    %1980 = vmatprep.subr.bf16.mxu0 %v1513
    %1981 = vmatpush2.bf16.msra.mxu0 %v1512
    %1982 = vmatprep.subr.bf16.mxu0 %v1509
    %1983 = vmatpush2.bf16.msra.mxu0 %v1508
    %1984 = vmatprep.subr.bf16.mxu0 %v1505
    %1985 = vmatpush2.bf16.msra.mxu0 %v1504
    %1986 = vmatprep.subr.bf16.mxu0 %v1501
    %1987 = vmatpush2.bf16.msra.mxu0 %v1500
    %1988 = vmatprep.subr.bf16.mxu0 %v1497
    %1989 = vmatpush2.bf16.msra.mxu0 %v1496
    %1990 = vmatprep.subr.bf16.mxu0 %v1493
    %1991 = vmatpush2.bf16.msra.mxu0 %v1492
    %1992 = vmatprep.subr.bf16.mxu0 %v1489
    %1993 = vmatpush2.bf16.msra.mxu0 %v1488
    %1994 = vmatprep.subr.bf16.mxu0 %v1485
    %1995 = vmatpush2.bf16.msra.mxu0 %v1484
    %1996 = vmatprep.mubr.bf16.mxu0 %v421
    %1997 = vmatmul.mubr.bf16.gmra.mxu0 %v420
    %v1998 = vpop.f32.mrf.mxu0
    %v1999 = vadd.f32 0.0, %v1998
    %v2000 = vpop.f32.mrf.mxu0
    %v2001 = vadd.f32 0.0, %v2000
    %v2002 = vpop.f32.mrf.mxu0
    %v2003 = vpop.f32.mrf.mxu0
    %2004 = vdwg.mxu0
    %2005 = vmatprep.subr.bf16.mxu0 %v1545
    %2006 = vmatpush1.bf16.msra.mxu0 %v1544
    %2007 = vmatprep.subr.bf16.mxu0 %v1541
    %2008 = vmatpush1.bf16.msra.mxu0 %v1540
    %2009 = vmatprep.subr.bf16.mxu0 %v1537
    %2010 = vmatpush1.bf16.msra.mxu0 %v1536
    %2011 = vmatprep.subr.bf16.mxu0 %v1533
    %2012 = vmatpush1.bf16.msra.mxu0 %v1532
    %2013 = vmatprep.subr.bf16.mxu0 %v1529
    %2014 = vmatpush1.bf16.msra.mxu0 %v1528
    %2015 = vmatprep.subr.bf16.mxu0 %v1525
    %2016 = vmatpush1.bf16.msra.mxu0 %v1524
    %2017 = vmatprep.subr.bf16.mxu0 %v1521
    %2018 = vmatpush1.bf16.msra.mxu0 %v1520
    %2019 = vmatprep.subr.bf16.mxu0 %v1517
    %2020 = vmatpush1.bf16.msra.mxu0 %v1516
    %2021 = vmatprep.subr.bf16.mxu0 %v1577
    %2022 = vmatpush2.bf16.msra.mxu0 %v1576
    %2023 = vmatprep.subr.bf16.mxu0 %v1573
    %2024 = vmatpush2.bf16.msra.mxu0 %v1572
    %2025 = vmatprep.subr.bf16.mxu0 %v1569
    %2026 = vmatpush2.bf16.msra.mxu0 %v1568
    %2027 = vmatprep.subr.bf16.mxu0 %v1565
    %2028 = vmatpush2.bf16.msra.mxu0 %v1564
    %2029 = vmatprep.subr.bf16.mxu0 %v1561
    %2030 = vmatpush2.bf16.msra.mxu0 %v1560
    %2031 = vmatprep.subr.bf16.mxu0 %v1557
    %2032 = vmatpush2.bf16.msra.mxu0 %v1556
    %2033 = vmatprep.subr.bf16.mxu0 %v1553
    %2034 = vmatpush2.bf16.msra.mxu0 %v1552
    %2035 = vmatprep.subr.bf16.mxu0 %v1549
    %2036 = vmatpush2.bf16.msra.mxu0 %v1548
    %2037 = vmatprep.mubr.bf16.mxu0 %v423
    %2038 = vmatmul.mubr.bf16.gmra.mxu0 %v422
    %v2039 = vpop.f32.mrf.mxu0
    %v2040 = vadd.f32 %v1999, %v2039
    %v2041 = vpop.f32.mrf.mxu0
    %v2042 = vadd.f32 %v2001, %v2041
    %v2043 = vpop.f32.mrf.mxu0
    %v2044 = vpop.f32.mrf.mxu0
    %2045 = vdwg.mxu0
    %2046 = vmatprep.subr.bf16.mxu0 %v1609
    %2047 = vmatpush1.bf16.msra.mxu0 %v1608
    %2048 = vmatprep.subr.bf16.mxu0 %v1605
    %2049 = vmatpush1.bf16.msra.mxu0 %v1604
    %2050 = vmatprep.subr.bf16.mxu0 %v1601
    %2051 = vmatpush1.bf16.msra.mxu0 %v1600
    %2052 = vmatprep.subr.bf16.mxu0 %v1597
    %2053 = vmatpush1.bf16.msra.mxu0 %v1596
    %2054 = vmatprep.subr.bf16.mxu0 %v1593
    %2055 = vmatpush1.bf16.msra.mxu0 %v1592
    %2056 = vmatprep.subr.bf16.mxu0 %v1589
    %2057 = vmatpush1.bf16.msra.mxu0 %v1588
    %2058 = vmatprep.subr.bf16.mxu0 %v1585
    %2059 = vmatpush1.bf16.msra.mxu0 %v1584
    %2060 = vmatprep.subr.bf16.mxu0 %v1581
    %2061 = vmatpush1.bf16.msra.mxu0 %v1580
    %2062 = vmatprep.subr.bf16.mxu0 %v1641
    %2063 = vmatpush2.bf16.msra.mxu0 %v1640
    %2064 = vmatprep.subr.bf16.mxu0 %v1637
    %2065 = vmatpush2.bf16.msra.mxu0 %v1636
    %2066 = vmatprep.subr.bf16.mxu0 %v1633
    %2067 = vmatpush2.bf16.msra.mxu0 %v1632
    %2068 = vmatprep.subr.bf16.mxu0 %v1629
    %2069 = vmatpush2.bf16.msra.mxu0 %v1628
    %2070 = vmatprep.subr.bf16.mxu0 %v1625
    %2071 = vmatpush2.bf16.msra.mxu0 %v1624
    %2072 = vmatprep.subr.bf16.mxu0 %v1621
    %2073 = vmatpush2.bf16.msra.mxu0 %v1620
    %2074 = vmatprep.subr.bf16.mxu0 %v1617
    %2075 = vmatpush2.bf16.msra.mxu0 %v1616
    %2076 = vmatprep.subr.bf16.mxu0 %v1613
    %2077 = vmatpush2.bf16.msra.mxu0 %v1612
    %2078 = vmatprep.mubr.bf16.mxu0 %v425
    %2079 = vmatmul.mubr.bf16.gmra.mxu0 %v424
    %v2080 = vpop.f32.mrf.mxu0
    %v2081 = vadd.f32 %v2040, %v2080
    %v2082 = vpop.f32.mrf.mxu0
    %v2083 = vadd.f32 %v2042, %v2082
    %v2084 = vpop.f32.mrf.mxu0
    %v2085 = vpop.f32.mrf.mxu0
    %2086 = vdwg.mxu0
    %2087 = vmatprep.subr.bf16.mxu0 %v1673
    %2088 = vmatpush1.bf16.msra.mxu0 %v1672
    %2089 = vmatprep.subr.bf16.mxu0 %v1669
    %2090 = vmatpush1.bf16.msra.mxu0 %v1668
    %2091 = vmatprep.subr.bf16.mxu0 %v1665
    %2092 = vmatpush1.bf16.msra.mxu0 %v1664
    %2093 = vmatprep.subr.bf16.mxu0 %v1661
    %2094 = vmatpush1.bf16.msra.mxu0 %v1660
    %2095 = vmatprep.subr.bf16.mxu0 %v1657
    %2096 = vmatpush1.bf16.msra.mxu0 %v1656
    %2097 = vmatprep.subr.bf16.mxu0 %v1653
    %2098 = vmatpush1.bf16.msra.mxu0 %v1652
    %2099 = vmatprep.subr.bf16.mxu0 %v1649
    %2100 = vmatpush1.bf16.msra.mxu0 %v1648
    %2101 = vmatprep.subr.bf16.mxu0 %v1645
    %2102 = vmatpush1.bf16.msra.mxu0 %v1644
    %2103 = vmatprep.subr.bf16.mxu0 %v1705
    %2104 = vmatpush2.bf16.msra.mxu0 %v1704
    %2105 = vmatprep.subr.bf16.mxu0 %v1701
    %2106 = vmatpush2.bf16.msra.mxu0 %v1700
    %2107 = vmatprep.subr.bf16.mxu0 %v1697
    %2108 = vmatpush2.bf16.msra.mxu0 %v1696
    %2109 = vmatprep.subr.bf16.mxu0 %v1693
    %2110 = vmatpush2.bf16.msra.mxu0 %v1692
    %2111 = vmatprep.subr.bf16.mxu0 %v1689
    %2112 = vmatpush2.bf16.msra.mxu0 %v1688
    %2113 = vmatprep.subr.bf16.mxu0 %v1685
    %2114 = vmatpush2.bf16.msra.mxu0 %v1684
    %2115 = vmatprep.subr.bf16.mxu0 %v1681
    %2116 = vmatpush2.bf16.msra.mxu0 %v1680
    %2117 = vmatprep.subr.bf16.mxu0 %v1677
    %2118 = vmatpush2.bf16.msra.mxu0 %v1676
    %2119 = vmatprep.mubr.bf16.mxu0 %v427
    %2120 = vmatmul.mubr.bf16.gmra.mxu0 %v426
    %v2121 = vpop.f32.mrf.mxu0
    %v2122 = vadd.f32 %v2081, %v2121
    %v2123 = vpop.f32.mrf.mxu0
    %v2124 = vadd.f32 %v2083, %v2123
    %v2125 = vpop.f32.mrf.mxu0
    %v2126 = vpop.f32.mrf.mxu0
    %2127 = vdwg.mxu0
    %2128 = vmatprep.subr.bf16.mxu0 %v1483
    %2129 = vmatpush1.bf16.msra.mxu0 %v1482
    %2130 = vmatprep.subr.bf16.mxu0 %v1479
    %2131 = vmatpush1.bf16.msra.mxu0 %v1478
    %2132 = vmatprep.subr.bf16.mxu0 %v1475
    %2133 = vmatpush1.bf16.msra.mxu0 %v1474
    %2134 = vmatprep.subr.bf16.mxu0 %v1471
    %2135 = vmatpush1.bf16.msra.mxu0 %v1470
    %2136 = vmatprep.subr.bf16.mxu0 %v1467
    %2137 = vmatpush1.bf16.msra.mxu0 %v1466
    %2138 = vmatprep.subr.bf16.mxu0 %v1463
    %2139 = vmatpush1.bf16.msra.mxu0 %v1462
    %2140 = vmatprep.subr.bf16.mxu0 %v1459
    %2141 = vmatpush1.bf16.msra.mxu0 %v1458
    %2142 = vmatprep.subr.bf16.mxu0 %v1455
    %2143 = vmatpush1.bf16.msra.mxu0 %v1454
    %2144 = vmatprep.subr.bf16.mxu0 %v1515
    %2145 = vmatpush2.bf16.msra.mxu0 %v1514
    %2146 = vmatprep.subr.bf16.mxu0 %v1511
    %2147 = vmatpush2.bf16.msra.mxu0 %v1510
    %2148 = vmatprep.subr.bf16.mxu0 %v1507
    %2149 = vmatpush2.bf16.msra.mxu0 %v1506
    %2150 = vmatprep.subr.bf16.mxu0 %v1503
    %2151 = vmatpush2.bf16.msra.mxu0 %v1502
    %2152 = vmatprep.subr.bf16.mxu0 %v1499
    %2153 = vmatpush2.bf16.msra.mxu0 %v1498
    %2154 = vmatprep.subr.bf16.mxu0 %v1495
    %2155 = vmatpush2.bf16.msra.mxu0 %v1494
    %2156 = vmatprep.subr.bf16.mxu0 %v1491
    %2157 = vmatpush2.bf16.msra.mxu0 %v1490
    %2158 = vmatprep.subr.bf16.mxu0 %v1487
    %2159 = vmatpush2.bf16.msra.mxu0 %v1486
    %2160 = vmatprep.mubr.bf16.mxu0 %v421
    %2161 = vmatmul.mubr.bf16.gmra.mxu0 %v420
    %v2162 = vpop.f32.mrf.mxu0
    %v2163 = vadd.f32 0.0, %v2162
    %v2164 = vpop.f32.mrf.mxu0
    %v2165 = vadd.f32 0.0, %v2164
    %v2166 = vpop.f32.mrf.mxu0
    %v2167 = vpop.f32.mrf.mxu0
    %2168 = vdwg.mxu0
    %2169 = vmatprep.subr.bf16.mxu0 %v1547
    %2170 = vmatpush1.bf16.msra.mxu0 %v1546
    %2171 = vmatprep.subr.bf16.mxu0 %v1543
    %2172 = vmatpush1.bf16.msra.mxu0 %v1542
    %2173 = vmatprep.subr.bf16.mxu0 %v1539
    %2174 = vmatpush1.bf16.msra.mxu0 %v1538
    %2175 = vmatprep.subr.bf16.mxu0 %v1535
    %2176 = vmatpush1.bf16.msra.mxu0 %v1534
    %2177 = vmatprep.subr.bf16.mxu0 %v1531
    %2178 = vmatpush1.bf16.msra.mxu0 %v1530
    %2179 = vmatprep.subr.bf16.mxu0 %v1527
    %2180 = vmatpush1.bf16.msra.mxu0 %v1526
    %2181 = vmatprep.subr.bf16.mxu0 %v1523
    %2182 = vmatpush1.bf16.msra.mxu0 %v1522
    %2183 = vmatprep.subr.bf16.mxu0 %v1519
    %2184 = vmatpush1.bf16.msra.mxu0 %v1518
    %2185 = vmatprep.subr.bf16.mxu0 %v1579
    %2186 = vmatpush2.bf16.msra.mxu0 %v1578
    %2187 = vmatprep.subr.bf16.mxu0 %v1575
    %2188 = vmatpush2.bf16.msra.mxu0 %v1574
    %2189 = vmatprep.subr.bf16.mxu0 %v1571
    %2190 = vmatpush2.bf16.msra.mxu0 %v1570
    %2191 = vmatprep.subr.bf16.mxu0 %v1567
    %2192 = vmatpush2.bf16.msra.mxu0 %v1566
    %2193 = vmatprep.subr.bf16.mxu0 %v1563
    %2194 = vmatpush2.bf16.msra.mxu0 %v1562
    %2195 = vmatprep.subr.bf16.mxu0 %v1559
    %2196 = vmatpush2.bf16.msra.mxu0 %v1558
    %2197 = vmatprep.subr.bf16.mxu0 %v1555
    %2198 = vmatpush2.bf16.msra.mxu0 %v1554
    %2199 = vmatprep.subr.bf16.mxu0 %v1551
    %2200 = vmatpush2.bf16.msra.mxu0 %v1550
    %2201 = vmatprep.mubr.bf16.mxu0 %v423
    %2202 = vmatmul.mubr.bf16.gmra.mxu0 %v422
    %v2203 = vpop.f32.mrf.mxu0
    %v2204 = vadd.f32 %v2163, %v2203
    %v2205 = vpop.f32.mrf.mxu0
    %v2206 = vadd.f32 %v2165, %v2205
    %v2207 = vpop.f32.mrf.mxu0
    %v2208 = vpop.f32.mrf.mxu0
    %2209 = vdwg.mxu0
    %2210 = vmatprep.subr.bf16.mxu0 %v1611
    %2211 = vmatpush1.bf16.msra.mxu0 %v1610
    %2212 = vmatprep.subr.bf16.mxu0 %v1607
    %2213 = vmatpush1.bf16.msra.mxu0 %v1606
    %2214 = vmatprep.subr.bf16.mxu0 %v1603
    %2215 = vmatpush1.bf16.msra.mxu0 %v1602
    %2216 = vmatprep.subr.bf16.mxu0 %v1599
    %2217 = vmatpush1.bf16.msra.mxu0 %v1598
    %2218 = vmatprep.subr.bf16.mxu0 %v1595
    %2219 = vmatpush1.bf16.msra.mxu0 %v1594
    %2220 = vmatprep.subr.bf16.mxu0 %v1591
    %2221 = vmatpush1.bf16.msra.mxu0 %v1590
    %2222 = vmatprep.subr.bf16.mxu0 %v1587
    %2223 = vmatpush1.bf16.msra.mxu0 %v1586
    %2224 = vmatprep.subr.bf16.mxu0 %v1583
    %2225 = vmatpush1.bf16.msra.mxu0 %v1582
    %2226 = vmatprep.subr.bf16.mxu0 %v1643
    %2227 = vmatpush2.bf16.msra.mxu0 %v1642
    %2228 = vmatprep.subr.bf16.mxu0 %v1639
    %2229 = vmatpush2.bf16.msra.mxu0 %v1638
    %2230 = vmatprep.subr.bf16.mxu0 %v1635
    %2231 = vmatpush2.bf16.msra.mxu0 %v1634
    %2232 = vmatprep.subr.bf16.mxu0 %v1631
    %2233 = vmatpush2.bf16.msra.mxu0 %v1630
    %2234 = vmatprep.subr.bf16.mxu0 %v1627
    %2235 = vmatpush2.bf16.msra.mxu0 %v1626
    %2236 = vmatprep.subr.bf16.mxu0 %v1623
    %2237 = vmatpush2.bf16.msra.mxu0 %v1622
    %2238 = vmatprep.subr.bf16.mxu0 %v1619
    %2239 = vmatpush2.bf16.msra.mxu0 %v1618
    %2240 = vmatprep.subr.bf16.mxu0 %v1615
    %2241 = vmatpush2.bf16.msra.mxu0 %v1614
    %2242 = vmatprep.mubr.bf16.mxu0 %v425
    %2243 = vmatmul.mubr.bf16.gmra.mxu0 %v424
    %v2244 = vpop.f32.mrf.mxu0
    %v2245 = vadd.f32 %v2204, %v2244
    %v2246 = vpop.f32.mrf.mxu0
    %v2247 = vadd.f32 %v2206, %v2246
    %v2248 = vpop.f32.mrf.mxu0
    %v2249 = vpop.f32.mrf.mxu0
    %2250 = vdwg.mxu0
    %2251 = vmatprep.subr.bf16.mxu0 %v1675
    %2252 = vmatpush1.bf16.msra.mxu0 %v1674
    %2253 = vmatprep.subr.bf16.mxu0 %v1671
    %2254 = vmatpush1.bf16.msra.mxu0 %v1670
    %2255 = vmatprep.subr.bf16.mxu0 %v1667
    %2256 = vmatpush1.bf16.msra.mxu0 %v1666
    %2257 = vmatprep.subr.bf16.mxu0 %v1663
    %2258 = vmatpush1.bf16.msra.mxu0 %v1662
    %2259 = vmatprep.subr.bf16.mxu0 %v1659
    %2260 = vmatpush1.bf16.msra.mxu0 %v1658
    %2261 = vmatprep.subr.bf16.mxu0 %v1655
    %2262 = vmatpush1.bf16.msra.mxu0 %v1654
    %2263 = vmatprep.subr.bf16.mxu0 %v1651
    %2264 = vmatpush1.bf16.msra.mxu0 %v1650
    %2265 = vmatprep.subr.bf16.mxu0 %v1647
    %2266 = vmatpush1.bf16.msra.mxu0 %v1646
    %2267 = vmatprep.subr.bf16.mxu0 %v1707
    %2268 = vmatpush2.bf16.msra.mxu0 %v1706
    %2269 = vmatprep.subr.bf16.mxu0 %v1703
    %2270 = vmatpush2.bf16.msra.mxu0 %v1702
    %2271 = vmatprep.subr.bf16.mxu0 %v1699
    %2272 = vmatpush2.bf16.msra.mxu0 %v1698
    %2273 = vmatprep.subr.bf16.mxu0 %v1695
    %2274 = vmatpush2.bf16.msra.mxu0 %v1694
    %2275 = vmatprep.subr.bf16.mxu0 %v1691
    %2276 = vmatpush2.bf16.msra.mxu0 %v1690
    %2277 = vmatprep.subr.bf16.mxu0 %v1687
    %2278 = vmatpush2.bf16.msra.mxu0 %v1686
    %2279 = vmatprep.subr.bf16.mxu0 %v1683
    %2280 = vmatpush2.bf16.msra.mxu0 %v1682
    %2281 = vmatprep.subr.bf16.mxu0 %v1679
    %2282 = vmatpush2.bf16.msra.mxu0 %v1678
    %2283 = vmatprep.mubr.bf16.mxu0 %v427
    %2284 = vmatmul.mubr.bf16.gmra.mxu0 %v426
    %v2285 = vpop.f32.mrf.mxu0
    %v2286 = vadd.f32 %v2245, %v2285
    %v2287 = vpop.f32.mrf.mxu0
    %v2288 = vadd.f32 %v2247, %v2287
    %v2289 = vpop.f32.mrf.mxu0
    %v2290 = vpop.f32.mrf.mxu0
    %2291 = vdwg.mxu0
    %v2294 = vunpack.c.l.b16 %v418
    %v2295 = vunpack.c.h.b16 %v418
    %v2296 = vunpack.c.l.b16 %v419
    %v2297 = vunpack.c.h.b16 %v419
    %v2298 = vpack.c.b16 %v2294, %v2294
    %v2299 = vpack.c.b16 %v2295, %v2295
    %v2300 = vpack.c.b16 %v2296, %v2296
    %v2301 = vpack.c.b16 %v2297, %v2297
    %vm2302 = vcmask 64512
    %v2304 = vsel %vm2302, %v417, 0
    %vm2306 = vcmask 1043456
    %v2308 = vsel %vm2306, %v2298, 0
    %v2311 = vsel %vm2306, %v2299, 0
    %v2314 = vsel %vm2306, %v2300, 0
    %v2317 = vsel %vm2306, %v2301, 0
    %2319 = vmatprep.subr.bf16.mxu0 0
    %2320 = vmatpush1.bf16.msra.mxu0 0
    %2321 = vmatprep.subr.bf16.mxu0 0
    %2322 = vmatpush1.bf16.msra.mxu0 0
    %2323 = vmatprep.subr.bf16.mxu0 0
    %2324 = vmatpush1.bf16.msra.mxu0 0
    %2325 = vmatprep.subr.bf16.mxu0 0
    %2326 = vmatpush1.bf16.msra.mxu0 0
    %2327 = vmatprep.subr.bf16.mxu0 0
    %2328 = vmatpush1.bf16.msra.mxu0 0
    %2329 = vmatprep.subr.bf16.mxu0 0
    %2330 = vmatpush1.bf16.msra.mxu0 0
    %2331 = vmatprep.subr.bf16.mxu0 0
    %2332 = vmatpush1.bf16.msra.mxu0 0
    %2333 = vmatprep.subr.bf16.mxu0 %v2311
    %2334 = vmatpush1.bf16.msra.mxu0 %v2308
    %2335 = vmatprep.subr.bf16.mxu0 0
    %2336 = vmatpush2.bf16.msra.mxu0 0
    %2337 = vmatprep.subr.bf16.mxu0 0
    %2338 = vmatpush2.bf16.msra.mxu0 0
    %2339 = vmatprep.subr.bf16.mxu0 0
    %2340 = vmatpush2.bf16.msra.mxu0 0
    %2341 = vmatprep.subr.bf16.mxu0 0
    %2342 = vmatpush2.bf16.msra.mxu0 0
    %2343 = vmatprep.subr.bf16.mxu0 0
    %2344 = vmatpush2.bf16.msra.mxu0 0
    %2345 = vmatprep.subr.bf16.mxu0 0
    %2346 = vmatpush2.bf16.msra.mxu0 0
    %2347 = vmatprep.subr.bf16.mxu0 0
    %2348 = vmatpush2.bf16.msra.mxu0 0
    %2349 = vmatprep.subr.bf16.mxu0 0
    %2350 = vmatpush2.bf16.msra.mxu0 0
    %2351 = vmatprep.mubr.bf16.mxu0 0
    %2352 = vmatmul.mubr.bf16.gmra.mxu0 %v2304
    %v2353 = vpop.f32.mrf.mxu0
    %v2354 = vadd.f32 %v2122, %v2353
    %v2355 = vpop.f32.mrf.mxu0
    %v2356 = vadd.f32 %v2124, %v2355
    %v2357 = vpop.f32.mrf.mxu0
    %v2358 = vpop.f32.mrf.mxu0
    %2359 = vdwg.mxu0
    %2360 = vmatprep.subr.bf16.mxu0 0
    %2361 = vmatpush1.bf16.msra.mxu0 0
    %2362 = vmatprep.subr.bf16.mxu0 0
    %2363 = vmatpush1.bf16.msra.mxu0 0
    %2364 = vmatprep.subr.bf16.mxu0 0
    %2365 = vmatpush1.bf16.msra.mxu0 0
    %2366 = vmatprep.subr.bf16.mxu0 0
    %2367 = vmatpush1.bf16.msra.mxu0 0
    %2368 = vmatprep.subr.bf16.mxu0 0
    %2369 = vmatpush1.bf16.msra.mxu0 0
    %2370 = vmatprep.subr.bf16.mxu0 0
    %2371 = vmatpush1.bf16.msra.mxu0 0
    %2372 = vmatprep.subr.bf16.mxu0 0
    %2373 = vmatpush1.bf16.msra.mxu0 0
    %2374 = vmatprep.subr.bf16.mxu0 %v2317
    %2375 = vmatpush1.bf16.msra.mxu0 %v2314
    %2376 = vmatprep.subr.bf16.mxu0 0
    %2377 = vmatpush2.bf16.msra.mxu0 0
    %2378 = vmatprep.subr.bf16.mxu0 0
    %2379 = vmatpush2.bf16.msra.mxu0 0
    %2380 = vmatprep.subr.bf16.mxu0 0
    %2381 = vmatpush2.bf16.msra.mxu0 0
    %2382 = vmatprep.subr.bf16.mxu0 0
    %2383 = vmatpush2.bf16.msra.mxu0 0
    %2384 = vmatprep.subr.bf16.mxu0 0
    %2385 = vmatpush2.bf16.msra.mxu0 0
    %2386 = vmatprep.subr.bf16.mxu0 0
    %2387 = vmatpush2.bf16.msra.mxu0 0
    %2388 = vmatprep.subr.bf16.mxu0 0
    %2389 = vmatpush2.bf16.msra.mxu0 0
    %2390 = vmatprep.subr.bf16.mxu0 0
    %2391 = vmatpush2.bf16.msra.mxu0 0
    %2392 = vmatprep.mubr.bf16.mxu0 0
    %2393 = vmatmul.mubr.bf16.gmra.mxu0 %v2304
    %v2394 = vpop.f32.mrf.mxu0
    %v2395 = vadd.f32 %v2286, %v2394
    %v2396 = vpop.f32.mrf.mxu0
    %v2397 = vadd.f32 %v2288, %v2396
    %v2398 = vpop.f32.mrf.mxu0
    %v2399 = vpop.f32.mrf.mxu0
    %2400 = vdwg.mxu0
    %v2401 = vld [vmem:[%s6] sm:$0xf]
    %v2403 = vlaneseq
    %v2404 = vshrl.u32 %v2403, 7
    %v2405 = vsub.s32 0, %v2404
    %v2406 = vrot.slane %v2401, %v2405
    %v2407 = vlaneseq
    %v2408 = vshrl.u32 %v2407, 7
    %v2409 = vsub.s32 1, %v2408
    %v2410 = vrot.slane %v2401, %v2409
    %v2411 = vlaneseq
    %v2412 = vshrl.u32 %v2411, 7
    %v2413 = vsub.s32 2, %v2412
    %v2414 = vrot.slane %v2401, %v2413
    %v2415 = vlaneseq
    %v2416 = vshrl.u32 %v2415, 7
    %v2417 = vsub.s32 3, %v2416
    %v2418 = vrot.slane %v2401, %v2417
    %v2423 = vadd.f32 %v2354, %v2406
    %v2424 = vadd.f32 %v2356, %v2410
    %v2425 = vadd.f32 %v2395, %v2414
    %v2426 = vadd.f32 %v2397, %v2418
    %vm2427 = vcmp.gt.f32.partialorder %v2423, 0.0
    %vm2428 = vcmp.gt.f32.partialorder %v2424, 0.0
    %vm2429 = vcmp.gt.f32.partialorder %v2425, 0.0
    %vm2430 = vcmp.gt.f32.partialorder %v2426, 0.0
    %v2431 = vmul.f32 %v2423, 0.01
    %v2432 = vmul.f32 %v2424, 0.01
    %v2433 = vmul.f32 %v2425, 0.01
    %v2434 = vmul.f32 %v2426, 0.01
    %v2435 = vsel %vm2427, %v2423, %v2431
    %v2436 = vsel %vm2428, %v2424, %v2432
    %v2437 = vsel %vm2429, %v2425, %v2433
    %v2438 = vsel %vm2430, %v2426, %v2434
    %v2439 = vpack.c.bf16 %v2435, %v2435
    %v2440 = vpack.c.bf16 %v2436, %v2436
    %v2441 = vpack.c.bf16 %v2437, %v2437
    %v2442 = vpack.c.bf16 %v2438, %v2438
    %v2443 = vld [vmem:[#allocation14] sm:$0xff]
    %v2444 = vld [vmem:[#allocation14 + $0x8] sm:$0xff]
    %v2445 = vld [vmem:[#allocation14 + $0x10] sm:$0xff]
    %v2446 = vld [vmem:[#allocation14 + $0x18] sm:$0xff]
    %v2447 = vld [vmem:[#allocation14 + $0x20] sm:$0xff]
    %v2448 = vld [vmem:[#allocation14 + $0x28] sm:$0xff]
    %v2449 = vld [vmem:[#allocation14 + $0x30] sm:$0xff]
    %v2450 = vld [vmem:[#allocation14 + $0x38] sm:$0xff]
    %v2451 = vld [vmem:[#allocation14 + $0x40] sm:$0xff]
    %v2452 = vld [vmem:[#allocation14 + $0x48] sm:$0xff]
    %v2453 = vld [vmem:[#allocation14 + $0x50] sm:$0xff]
    %v2454 = vld [vmem:[#allocation14 + $0x58] sm:$0xff]
    %v2455 = vld [vmem:[#allocation14 + $0x60] sm:$0xff]
    %v2456 = vld [vmem:[#allocation14 + $0x68] sm:$0xff]
    %v2457 = vld [vmem:[#allocation14 + $0x70] sm:$0xff]
    %v2458 = vld [vmem:[#allocation14 + $0x78] sm:$0xff]
    %v2459 = vld [vmem:[#allocation14 + $0x80] sm:$0xff]
    %v2460 = vld [vmem:[#allocation14 + $0x88] sm:$0xff]
    %v2461 = vld [vmem:[#allocation14 + $0x90] sm:$0xff]
    %v2462 = vld [vmem:[#allocation14 + $0x98] sm:$0xff]
    %v2463 = vld [vmem:[#allocation14 + $0xa0] sm:$0xff]
    %v2464 = vld [vmem:[#allocation14 + $0xa8] sm:$0xff]
    %v2465 = vld [vmem:[#allocation14 + $0xb0] sm:$0xff]
    %v2466 = vld [vmem:[#allocation14 + $0xb8] sm:$0xff]
    %v2467 = vld [vmem:[#allocation14 + $0xc0] sm:$0xff]
    %v2468 = vld [vmem:[#allocation14 + $0xc8] sm:$0xff]
    %v2469 = vld [vmem:[#allocation14 + $0xd0] sm:$0xff]
    %v2470 = vld [vmem:[#allocation14 + $0xd8] sm:$0xff]
    %v2471 = vld [vmem:[#allocation14 + $0xe0] sm:$0xff]
    %v2472 = vld [vmem:[#allocation14 + $0xe8] sm:$0xff]
    %v2473 = vld [vmem:[#allocation14 + $0xf0] sm:$0xff]
    %v2474 = vld [vmem:[#allocation14 + $0xf8] sm:$0xff]
    %v2475 = vld [vmem:[#allocation14 + $0x100] sm:$0xff]
    %v2476 = vld [vmem:[#allocation14 + $0x108] sm:$0xff]
    %v2477 = vld [vmem:[#allocation14 + $0x110] sm:$0xff]
    %v2478 = vld [vmem:[#allocation14 + $0x118] sm:$0xff]
    %v2479 = vld [vmem:[#allocation14 + $0x120] sm:$0xff]
    %v2480 = vld [vmem:[#allocation14 + $0x128] sm:$0xff]
    %v2481 = vld [vmem:[#allocation14 + $0x130] sm:$0xff]
    %v2482 = vld [vmem:[#allocation14 + $0x138] sm:$0xff]
    %v2483 = vld [vmem:[#allocation14 + $0x140] sm:$0xff]
    %v2484 = vld [vmem:[#allocation14 + $0x148] sm:$0xff]
    %v2485 = vld [vmem:[#allocation14 + $0x150] sm:$0xff]
    %v2486 = vld [vmem:[#allocation14 + $0x158] sm:$0xff]
    %v2487 = vld [vmem:[#allocation14 + $0x160] sm:$0xff]
    %v2488 = vld [vmem:[#allocation14 + $0x168] sm:$0xff]
    %v2489 = vld [vmem:[#allocation14 + $0x170] sm:$0xff]
    %v2490 = vld [vmem:[#allocation14 + $0x178] sm:$0xff]
    %v2491 = vld [vmem:[#allocation14 + $0x180] sm:$0xff]
    %v2492 = vld [vmem:[#allocation14 + $0x188] sm:$0xff]
    %v2493 = vld [vmem:[#allocation14 + $0x190] sm:$0xff]
    %v2494 = vld [vmem:[#allocation14 + $0x198] sm:$0xff]
    %v2495 = vld [vmem:[#allocation14 + $0x1a0] sm:$0xff]
    %v2496 = vld [vmem:[#allocation14 + $0x1a8] sm:$0xff]
    %v2497 = vld [vmem:[#allocation14 + $0x1b0] sm:$0xff]
    %v2498 = vld [vmem:[#allocation14 + $0x1b8] sm:$0xff]
    %v2499 = vld [vmem:[#allocation14 + $0x1c0] sm:$0xff]
    %v2500 = vld [vmem:[#allocation14 + $0x1c8] sm:$0xff]
    %v2501 = vld [vmem:[#allocation14 + $0x1d0] sm:$0xff]
    %v2502 = vld [vmem:[#allocation14 + $0x1d8] sm:$0xff]
    %v2503 = vld [vmem:[#allocation14 + $0x1e0] sm:$0xff]
    %v2504 = vld [vmem:[#allocation14 + $0x1e8] sm:$0xff]
    %v2505 = vld [vmem:[#allocation14 + $0x1f0] sm:$0xff]
    %v2506 = vld [vmem:[#allocation14 + $0x1f8] sm:$0xff]
    %v2507 = vld [vmem:[%s8] sm:$0x3]
    %v2509 = vlaneseq
    %v2510 = vshrl.u32 %v2509, 7
    %v2511 = vsub.s32 0, %v2510
    %v2512 = vrot.slane %v2507, %v2511
    %v2513 = vlaneseq
    %v2514 = vshrl.u32 %v2513, 7
    %v2515 = vsub.s32 1, %v2514
    %v2516 = vrot.slane %v2507, %v2515
    %v2583 = vunpack.c.l.b16 %v2443
    %v2584 = vunpack.c.h.b16 %v2443
    %v2585 = vunpack.c.l.b16 %v2444
    %v2586 = vunpack.c.h.b16 %v2444
    %v2587 = vunpack.c.l.b16 %v2445
    %v2588 = vunpack.c.h.b16 %v2445
    %v2589 = vunpack.c.l.b16 %v2446
    %v2590 = vunpack.c.h.b16 %v2446
    %v2591 = vunpack.c.l.b16 %v2447
    %v2592 = vunpack.c.h.b16 %v2447
    %v2593 = vunpack.c.l.b16 %v2448
    %v2594 = vunpack.c.h.b16 %v2448
    %v2595 = vunpack.c.l.b16 %v2449
    %v2596 = vunpack.c.h.b16 %v2449
    %v2597 = vunpack.c.l.b16 %v2450
    %v2598 = vunpack.c.h.b16 %v2450
    %v2599 = vunpack.c.l.b16 %v2451
    %v2600 = vunpack.c.h.b16 %v2451
    %v2601 = vunpack.c.l.b16 %v2452
    %v2602 = vunpack.c.h.b16 %v2452
    %v2603 = vunpack.c.l.b16 %v2453
    %v2604 = vunpack.c.h.b16 %v2453
    %v2605 = vunpack.c.l.b16 %v2454
    %v2606 = vunpack.c.h.b16 %v2454
    %v2607 = vunpack.c.l.b16 %v2455
    %v2608 = vunpack.c.h.b16 %v2455
    %v2609 = vunpack.c.l.b16 %v2456
    %v2610 = vunpack.c.h.b16 %v2456
    %v2611 = vunpack.c.l.b16 %v2457
    %v2612 = vunpack.c.h.b16 %v2457
    %v2613 = vunpack.c.l.b16 %v2458
    %v2614 = vunpack.c.h.b16 %v2458
    %v2615 = vunpack.c.l.b16 %v2459
    %v2616 = vunpack.c.h.b16 %v2459
    %v2617 = vunpack.c.l.b16 %v2460
    %v2618 = vunpack.c.h.b16 %v2460
    %v2619 = vunpack.c.l.b16 %v2461
    %v2620 = vunpack.c.h.b16 %v2461
    %v2621 = vunpack.c.l.b16 %v2462
    %v2622 = vunpack.c.h.b16 %v2462
    %v2623 = vunpack.c.l.b16 %v2463
    %v2624 = vunpack.c.h.b16 %v2463
    %v2625 = vunpack.c.l.b16 %v2464
    %v2626 = vunpack.c.h.b16 %v2464
    %v2627 = vunpack.c.l.b16 %v2465
    %v2628 = vunpack.c.h.b16 %v2465
    %v2629 = vunpack.c.l.b16 %v2466
    %v2630 = vunpack.c.h.b16 %v2466
    %v2631 = vunpack.c.l.b16 %v2467
    %v2632 = vunpack.c.h.b16 %v2467
    %v2633 = vunpack.c.l.b16 %v2468
    %v2634 = vunpack.c.h.b16 %v2468
    %v2635 = vunpack.c.l.b16 %v2469
    %v2636 = vunpack.c.h.b16 %v2469
    %v2637 = vunpack.c.l.b16 %v2470
    %v2638 = vunpack.c.h.b16 %v2470
    %v2639 = vunpack.c.l.b16 %v2471
    %v2640 = vunpack.c.h.b16 %v2471
    %v2641 = vunpack.c.l.b16 %v2472
    %v2642 = vunpack.c.h.b16 %v2472
    %v2643 = vunpack.c.l.b16 %v2473
    %v2644 = vunpack.c.h.b16 %v2473
    %v2645 = vunpack.c.l.b16 %v2474
    %v2646 = vunpack.c.h.b16 %v2474
    %v2647 = vunpack.c.l.b16 %v2475
    %v2648 = vunpack.c.h.b16 %v2475
    %v2649 = vunpack.c.l.b16 %v2476
    %v2650 = vunpack.c.h.b16 %v2476
    %v2651 = vunpack.c.l.b16 %v2477
    %v2652 = vunpack.c.h.b16 %v2477
    %v2653 = vunpack.c.l.b16 %v2478
    %v2654 = vunpack.c.h.b16 %v2478
    %v2655 = vunpack.c.l.b16 %v2479
    %v2656 = vunpack.c.h.b16 %v2479
    %v2657 = vunpack.c.l.b16 %v2480
    %v2658 = vunpack.c.h.b16 %v2480
    %v2659 = vunpack.c.l.b16 %v2481
    %v2660 = vunpack.c.h.b16 %v2481
    %v2661 = vunpack.c.l.b16 %v2482
    %v2662 = vunpack.c.h.b16 %v2482
    %v2663 = vunpack.c.l.b16 %v2483
    %v2664 = vunpack.c.h.b16 %v2483
    %v2665 = vunpack.c.l.b16 %v2484
    %v2666 = vunpack.c.h.b16 %v2484
    %v2667 = vunpack.c.l.b16 %v2485
    %v2668 = vunpack.c.h.b16 %v2485
    %v2669 = vunpack.c.l.b16 %v2486
    %v2670 = vunpack.c.h.b16 %v2486
    %v2671 = vunpack.c.l.b16 %v2487
    %v2672 = vunpack.c.h.b16 %v2487
    %v2673 = vunpack.c.l.b16 %v2488
    %v2674 = vunpack.c.h.b16 %v2488
    %v2675 = vunpack.c.l.b16 %v2489
    %v2676 = vunpack.c.h.b16 %v2489
    %v2677 = vunpack.c.l.b16 %v2490
    %v2678 = vunpack.c.h.b16 %v2490
    %v2679 = vunpack.c.l.b16 %v2491
    %v2680 = vunpack.c.h.b16 %v2491
    %v2681 = vunpack.c.l.b16 %v2492
    %v2682 = vunpack.c.h.b16 %v2492
    %v2683 = vunpack.c.l.b16 %v2493
    %v2684 = vunpack.c.h.b16 %v2493
    %v2685 = vunpack.c.l.b16 %v2494
    %v2686 = vunpack.c.h.b16 %v2494
    %v2687 = vunpack.c.l.b16 %v2495
    %v2688 = vunpack.c.h.b16 %v2495
    %v2689 = vunpack.c.l.b16 %v2496
    %v2690 = vunpack.c.h.b16 %v2496
    %v2691 = vunpack.c.l.b16 %v2497
    %v2692 = vunpack.c.h.b16 %v2497
    %v2693 = vunpack.c.l.b16 %v2498
    %v2694 = vunpack.c.h.b16 %v2498
    %v2695 = vunpack.c.l.b16 %v2499
    %v2696 = vunpack.c.h.b16 %v2499
    %v2697 = vunpack.c.l.b16 %v2500
    %v2698 = vunpack.c.h.b16 %v2500
    %v2699 = vunpack.c.l.b16 %v2501
    %v2700 = vunpack.c.h.b16 %v2501
    %v2701 = vunpack.c.l.b16 %v2502
    %v2702 = vunpack.c.h.b16 %v2502
    %v2703 = vunpack.c.l.b16 %v2503
    %v2704 = vunpack.c.h.b16 %v2503
    %v2705 = vunpack.c.l.b16 %v2504
    %v2706 = vunpack.c.h.b16 %v2504
    %v2707 = vunpack.c.l.b16 %v2505
    %v2708 = vunpack.c.h.b16 %v2505
    %v2709 = vunpack.c.l.b16 %v2506
    %v2710 = vunpack.c.h.b16 %v2506
    %v2711 = vpack.c.b16 %v2585, %v2583
    %v2712 = vpack.c.b16 %v2586, %v2584
    %v2713 = vpack.c.b16 %v2589, %v2587
    %v2714 = vpack.c.b16 %v2590, %v2588
    %v2715 = vpack.c.b16 %v2593, %v2591
    %v2716 = vpack.c.b16 %v2594, %v2592
    %v2717 = vpack.c.b16 %v2597, %v2595
    %v2718 = vpack.c.b16 %v2598, %v2596
    %v2719 = vpack.c.b16 %v2601, %v2599
    %v2720 = vpack.c.b16 %v2602, %v2600
    %v2721 = vpack.c.b16 %v2605, %v2603
    %v2722 = vpack.c.b16 %v2606, %v2604
    %v2723 = vpack.c.b16 %v2609, %v2607
    %v2724 = vpack.c.b16 %v2610, %v2608
    %v2725 = vpack.c.b16 %v2613, %v2611
    %v2726 = vpack.c.b16 %v2614, %v2612
    %v2727 = vpack.c.b16 %v2617, %v2615
    %v2728 = vpack.c.b16 %v2618, %v2616
    %v2729 = vpack.c.b16 %v2621, %v2619
    %v2730 = vpack.c.b16 %v2622, %v2620
    %v2731 = vpack.c.b16 %v2625, %v2623
    %v2732 = vpack.c.b16 %v2626, %v2624
    %v2733 = vpack.c.b16 %v2629, %v2627
    %v2734 = vpack.c.b16 %v2630, %v2628
    %v2735 = vpack.c.b16 %v2633, %v2631
    %v2736 = vpack.c.b16 %v2634, %v2632
    %v2737 = vpack.c.b16 %v2637, %v2635
    %v2738 = vpack.c.b16 %v2638, %v2636
    %v2739 = vpack.c.b16 %v2641, %v2639
    %v2740 = vpack.c.b16 %v2642, %v2640
    %v2741 = vpack.c.b16 %v2645, %v2643
    %v2742 = vpack.c.b16 %v2646, %v2644
    %v2743 = vpack.c.b16 %v2649, %v2647
    %v2744 = vpack.c.b16 %v2650, %v2648
    %v2745 = vpack.c.b16 %v2653, %v2651
    %v2746 = vpack.c.b16 %v2654, %v2652
    %v2747 = vpack.c.b16 %v2657, %v2655
    %v2748 = vpack.c.b16 %v2658, %v2656
    %v2749 = vpack.c.b16 %v2661, %v2659
    %v2750 = vpack.c.b16 %v2662, %v2660
    %v2751 = vpack.c.b16 %v2665, %v2663
    %v2752 = vpack.c.b16 %v2666, %v2664
    %v2753 = vpack.c.b16 %v2669, %v2667
    %v2754 = vpack.c.b16 %v2670, %v2668
    %v2755 = vpack.c.b16 %v2673, %v2671
    %v2756 = vpack.c.b16 %v2674, %v2672
    %v2757 = vpack.c.b16 %v2677, %v2675
    %v2758 = vpack.c.b16 %v2678, %v2676
    %v2759 = vpack.c.b16 %v2681, %v2679
    %v2760 = vpack.c.b16 %v2682, %v2680
    %v2761 = vpack.c.b16 %v2685, %v2683
    %v2762 = vpack.c.b16 %v2686, %v2684
    %v2763 = vpack.c.b16 %v2689, %v2687
    %v2764 = vpack.c.b16 %v2690, %v2688
    %v2765 = vpack.c.b16 %v2693, %v2691
    %v2766 = vpack.c.b16 %v2694, %v2692
    %v2767 = vpack.c.b16 %v2697, %v2695
    %v2768 = vpack.c.b16 %v2698, %v2696
    %v2769 = vpack.c.b16 %v2701, %v2699
    %v2770 = vpack.c.b16 %v2702, %v2700
    %v2771 = vpack.c.b16 %v2705, %v2703
    %v2772 = vpack.c.b16 %v2706, %v2704
    %v2773 = vpack.c.b16 %v2709, %v2707
    %v2774 = vpack.c.b16 %v2710, %v2708
    %2839 = vmatprep.subr.bf16.mxu0 %v2726
    %2840 = vmatpush1.bf16.msra.mxu0 %v2725
    %2841 = vmatprep.subr.bf16.mxu0 %v2724
    %2842 = vmatpush1.bf16.msra.mxu0 %v2723
    %2843 = vmatprep.subr.bf16.mxu0 %v2722
    %2844 = vmatpush1.bf16.msra.mxu0 %v2721
    %2845 = vmatprep.subr.bf16.mxu0 %v2720
    %2846 = vmatpush1.bf16.msra.mxu0 %v2719
    %2847 = vmatprep.subr.bf16.mxu0 %v2718
    %2848 = vmatpush1.bf16.msra.mxu0 %v2717
    %2849 = vmatprep.subr.bf16.mxu0 %v2716
    %2850 = vmatpush1.bf16.msra.mxu0 %v2715
    %2851 = vmatprep.subr.bf16.mxu0 %v2714
    %2852 = vmatpush1.bf16.msra.mxu0 %v2713
    %2853 = vmatprep.subr.bf16.mxu0 %v2712
    %2854 = vmatpush1.bf16.msra.mxu0 %v2711
    %2855 = vmatprep.subr.bf16.mxu0 %v2742
    %2856 = vmatpush2.bf16.msra.mxu0 %v2741
    %2857 = vmatprep.subr.bf16.mxu0 %v2740
    %2858 = vmatpush2.bf16.msra.mxu0 %v2739
    %2859 = vmatprep.subr.bf16.mxu0 %v2738
    %2860 = vmatpush2.bf16.msra.mxu0 %v2737
    %2861 = vmatprep.subr.bf16.mxu0 %v2736
    %2862 = vmatpush2.bf16.msra.mxu0 %v2735
    %2863 = vmatprep.subr.bf16.mxu0 %v2734
    %2864 = vmatpush2.bf16.msra.mxu0 %v2733
    %2865 = vmatprep.subr.bf16.mxu0 %v2732
    %2866 = vmatpush2.bf16.msra.mxu0 %v2731
    %2867 = vmatprep.subr.bf16.mxu0 %v2730
    %2868 = vmatpush2.bf16.msra.mxu0 %v2729
    %2869 = vmatprep.subr.bf16.mxu0 %v2728
    %2870 = vmatpush2.bf16.msra.mxu0 %v2727
    %2871 = vmatprep.mubr.bf16.mxu0 %v2440
    %2872 = vmatmul.mubr.bf16.gmra.mxu0 %v2439
    %v2873 = vpop.f32.mrf.mxu0
    %v2874 = vadd.f32 %v2512, %v2873
    %v2875 = vpop.f32.mrf.mxu0
    %v2876 = vadd.f32 %v2516, %v2875
    %v2877 = vpop.f32.mrf.mxu0
    %v2878 = vpop.f32.mrf.mxu0
    %2879 = vdwg.mxu0
    %2880 = vmatprep.subr.bf16.mxu0 %v2758
    %2881 = vmatpush1.bf16.msra.mxu0 %v2757
    %2882 = vmatprep.subr.bf16.mxu0 %v2756
    %2883 = vmatpush1.bf16.msra.mxu0 %v2755
    %2884 = vmatprep.subr.bf16.mxu0 %v2754
    %2885 = vmatpush1.bf16.msra.mxu0 %v2753
    %2886 = vmatprep.subr.bf16.mxu0 %v2752
    %2887 = vmatpush1.bf16.msra.mxu0 %v2751
    %2888 = vmatprep.subr.bf16.mxu0 %v2750
    %2889 = vmatpush1.bf16.msra.mxu0 %v2749
    %2890 = vmatprep.subr.bf16.mxu0 %v2748
    %2891 = vmatpush1.bf16.msra.mxu0 %v2747
    %2892 = vmatprep.subr.bf16.mxu0 %v2746
    %2893 = vmatpush1.bf16.msra.mxu0 %v2745
    %2894 = vmatprep.subr.bf16.mxu0 %v2744
    %2895 = vmatpush1.bf16.msra.mxu0 %v2743
    %2896 = vmatprep.subr.bf16.mxu0 %v2774
    %2897 = vmatpush2.bf16.msra.mxu0 %v2773
    %2898 = vmatprep.subr.bf16.mxu0 %v2772
    %2899 = vmatpush2.bf16.msra.mxu0 %v2771
    %2900 = vmatprep.subr.bf16.mxu0 %v2770
    %2901 = vmatpush2.bf16.msra.mxu0 %v2769
    %2902 = vmatprep.subr.bf16.mxu0 %v2768
    %2903 = vmatpush2.bf16.msra.mxu0 %v2767
    %2904 = vmatprep.subr.bf16.mxu0 %v2766
    %2905 = vmatpush2.bf16.msra.mxu0 %v2765
    %2906 = vmatprep.subr.bf16.mxu0 %v2764
    %2907 = vmatpush2.bf16.msra.mxu0 %v2763
    %2908 = vmatprep.subr.bf16.mxu0 %v2762
    %2909 = vmatpush2.bf16.msra.mxu0 %v2761
    %2910 = vmatprep.subr.bf16.mxu0 %v2760
    %2911 = vmatpush2.bf16.msra.mxu0 %v2759
    %2912 = vmatprep.mubr.bf16.mxu0 %v2442
    %2913 = vmatmul.mubr.bf16.gmra.mxu0 %v2441
    %v2914 = vpop.f32.mrf.mxu0
    %v2915 = vadd.f32 %v2874, %v2914
    %v2916 = vpop.f32.mrf.mxu0
    %v2917 = vadd.f32 %v2876, %v2916
    %v2918 = vpop.f32.mrf.mxu0
    %v2919 = vpop.f32.mrf.mxu0
    %2920 = vdwg.mxu0
    %vm2921 = vcmp.gt.f32.partialorder %v2915, 0.0
    %vm2922 = vcmp.gt.f32.partialorder %v2917, 0.0
    %v2923 = vmul.f32 %v2915, 0.01
    %v2924 = vmul.f32 %v2917, 0.01
    %v2925 = vsel %vm2921, %v2915, %v2923
    %v2926 = vsel %vm2922, %v2917, %v2924
    %v2927 = vpack.c.bf16 %v2925, %v2925
    %v2928 = vpack.c.bf16 %v2926, %v2926
    %v2929 = vld [vmem:[#allocation15] sm:$0xf]
    %v2930 = vld [vmem:[#allocation15 + $0x4] sm:$0xf]
    %v2931 = vld [vmem:[#allocation15 + $0x8] sm:$0xf]
    %v2932 = vld [vmem:[#allocation15 + $0xc] sm:$0xf]
    %v2933 = vld [vmem:[#allocation15 + $0x10] sm:$0xf]
    %v2934 = vld [vmem:[#allocation15 + $0x14] sm:$0xf]
    %v2935 = vld [vmem:[#allocation15 + $0x18] sm:$0xf]
    %v2936 = vld [vmem:[#allocation15 + $0x1c] sm:$0xf]
    %v2937 = vld [vmem:[#allocation15 + $0x20] sm:$0xf]
    %v2938 = vld [vmem:[#allocation15 + $0x24] sm:$0xf]
    %v2939 = vld [vmem:[#allocation15 + $0x28] sm:$0xf]
    %v2940 = vld [vmem:[#allocation15 + $0x2c] sm:$0xf]
    %v2941 = vld [vmem:[#allocation15 + $0x30] sm:$0xf]
    %v2942 = vld [vmem:[#allocation15 + $0x34] sm:$0xf]
    %v2943 = vld [vmem:[#allocation15 + $0x38] sm:$0xf]
    %v2944 = vld [vmem:[#allocation15 + $0x3c] sm:$0xf]
    %v2945 = vld [vmem:[#allocation15 + $0x40] sm:$0xf]
    %v2946 = vld [vmem:[#allocation15 + $0x44] sm:$0xf]
    %v2947 = vld [vmem:[#allocation15 + $0x48] sm:$0xf]
    %v2948 = vld [vmem:[#allocation15 + $0x4c] sm:$0xf]
    %v2949 = vld [vmem:[#allocation15 + $0x50] sm:$0xf]
    %v2950 = vld [vmem:[#allocation15 + $0x54] sm:$0xf]
    %v2951 = vld [vmem:[#allocation15 + $0x58] sm:$0xf]
    %v2952 = vld [vmem:[#allocation15 + $0x5c] sm:$0xf]
    %v2953 = vld [vmem:[#allocation15 + $0x60] sm:$0xf]
    %v2954 = vld [vmem:[#allocation15 + $0x64] sm:$0xf]
    %v2955 = vld [vmem:[#allocation15 + $0x68] sm:$0xf]
    %v2956 = vld [vmem:[#allocation15 + $0x6c] sm:$0xf]
    %v2957 = vld [vmem:[#allocation15 + $0x70] sm:$0xf]
    %v2958 = vld [vmem:[#allocation15 + $0x74] sm:$0xf]
    %v2959 = vld [vmem:[#allocation15 + $0x78] sm:$0xf]
    %v2960 = vld [vmem:[#allocation15 + $0x7c] sm:$0xf]
    %v2961 = vld [vmem:[%s10] sm:$0x1]
    %v2963 = vlaneseq
    %v2964 = vshrl.u32 %v2963, 7
    %v2965 = vsub.s32 0, %v2964
    %v2966 = vrot.slane %v2961, %v2965
    %v3000 = vunpack.c.l.b16 %v2929
    %v3001 = vunpack.c.l.b16 %v2930
    %v3002 = vunpack.c.l.b16 %v2931
    %v3003 = vunpack.c.l.b16 %v2932
    %v3004 = vunpack.c.l.b16 %v2933
    %v3005 = vunpack.c.l.b16 %v2934
    %v3006 = vunpack.c.l.b16 %v2935
    %v3007 = vunpack.c.l.b16 %v2936
    %v3008 = vunpack.c.l.b16 %v2937
    %v3009 = vunpack.c.l.b16 %v2938
    %v3010 = vunpack.c.l.b16 %v2939
    %v3011 = vunpack.c.l.b16 %v2940
    %v3012 = vunpack.c.l.b16 %v2941
    %v3013 = vunpack.c.l.b16 %v2942
    %v3014 = vunpack.c.l.b16 %v2943
    %v3015 = vunpack.c.l.b16 %v2944
    %v3016 = vunpack.c.l.b16 %v2945
    %v3017 = vunpack.c.l.b16 %v2946
    %v3018 = vunpack.c.l.b16 %v2947
    %v3019 = vunpack.c.l.b16 %v2948
    %v3020 = vunpack.c.l.b16 %v2949
    %v3021 = vunpack.c.l.b16 %v2950
    %v3022 = vunpack.c.l.b16 %v2951
    %v3023 = vunpack.c.l.b16 %v2952
    %v3024 = vunpack.c.l.b16 %v2953
    %v3025 = vunpack.c.l.b16 %v2954
    %v3026 = vunpack.c.l.b16 %v2955
    %v3027 = vunpack.c.l.b16 %v2956
    %v3028 = vunpack.c.l.b16 %v2957
    %v3029 = vunpack.c.l.b16 %v2958
    %v3030 = vunpack.c.l.b16 %v2959
    %v3031 = vunpack.c.l.b16 %v2960
    %v3032 = vpack.c.b16 %v3001, %v3000
    %v3033 = vpack.c.b16 %v3003, %v3002
    %v3034 = vpack.c.b16 %v3005, %v3004
    %v3035 = vpack.c.b16 %v3007, %v3006
    %v3036 = vpack.c.b16 %v3009, %v3008
    %v3037 = vpack.c.b16 %v3011, %v3010
    %v3038 = vpack.c.b16 %v3013, %v3012
    %v3039 = vpack.c.b16 %v3015, %v3014
    %v3040 = vpack.c.b16 %v3017, %v3016
    %v3041 = vpack.c.b16 %v3019, %v3018
    %v3042 = vpack.c.b16 %v3021, %v3020
    %v3043 = vpack.c.b16 %v3023, %v3022
    %v3044 = vpack.c.b16 %v3025, %v3024
    %v3045 = vpack.c.b16 %v3027, %v3026
    %v3046 = vpack.c.b16 %v3029, %v3028
    %v3047 = vpack.c.b16 %v3031, %v3030
    %3064 = vmatprep.subr.bf16.mxu0 0
    %3065 = vmatpush1.bf16.msra.mxu0 %v3039
    %3066 = vmatprep.subr.bf16.mxu0 0
    %3067 = vmatpush1.bf16.msra.mxu0 %v3038
    %3068 = vmatprep.subr.bf16.mxu0 0
    %3069 = vmatpush1.bf16.msra.mxu0 %v3037
    %3070 = vmatprep.subr.bf16.mxu0 0
    %3071 = vmatpush1.bf16.msra.mxu0 %v3036
    %3072 = vmatprep.subr.bf16.mxu0 0
    %3073 = vmatpush1.bf16.msra.mxu0 %v3035
    %3074 = vmatprep.subr.bf16.mxu0 0
    %3075 = vmatpush1.bf16.msra.mxu0 %v3034
    %3076 = vmatprep.subr.bf16.mxu0 0
    %3077 = vmatpush1.bf16.msra.mxu0 %v3033
    %3078 = vmatprep.subr.bf16.mxu0 0
    %3079 = vmatpush1.bf16.msra.mxu0 %v3032
    %3080 = vmatprep.subr.bf16.mxu0 0
    %3081 = vmatpush2.bf16.msra.mxu0 %v3047
    %3082 = vmatprep.subr.bf16.mxu0 0
    %3083 = vmatpush2.bf16.msra.mxu0 %v3046
    %3084 = vmatprep.subr.bf16.mxu0 0
    %3085 = vmatpush2.bf16.msra.mxu0 %v3045
    %3086 = vmatprep.subr.bf16.mxu0 0
    %3087 = vmatpush2.bf16.msra.mxu0 %v3044
    %3088 = vmatprep.subr.bf16.mxu0 0
    %3089 = vmatpush2.bf16.msra.mxu0 %v3043
    %3090 = vmatprep.subr.bf16.mxu0 0
    %3091 = vmatpush2.bf16.msra.mxu0 %v3042
    %3092 = vmatprep.subr.bf16.mxu0 0
    %3093 = vmatpush2.bf16.msra.mxu0 %v3041
    %3094 = vmatprep.subr.bf16.mxu0 0
    %3095 = vmatpush2.bf16.msra.mxu0 %v3040
    %3096 = vmatprep.mubr.bf16.mxu0 %v2928
    %3097 = vmatmul.mubr.bf16.gmra.mxu0 %v2927
    %v3098 = vpop.f32.mrf.mxu0
    %v3099 = vadd.f32 %v2966, %v3098
    %v3100 = vpop.f32.mrf.mxu0
    %v3101 = vpop.f32.mrf.mxu0
    %v3102 = vpop.f32.mrf.mxu0
    %3103 = vdwg.mxu0
    %vm3104 = vcmp.gt.f32.partialorder %v3099, 0.0
    %v3105 = vmul.f32 %v3099, 0.01
    %v3106 = vsel %vm3104, %v3099, %v3105
    %v3107 = vld [vmem:[%s11] sm:$0x1]
    %v3109 = vlaneseq
    %v3110 = vshrl.u32 %v3109, 7
    %v3111 = vsub.s32 0, %v3110
    %v3112 = vrot.slane %v3107, %v3111
    %v3114 = vmul.f32 %v3106, %v3112
    %3115 = vadd.xlane.f32.xlu0 %v3114
    %v3116 = vpop.xlane.xlu0 %3115
    %s3117 = sld [smem:[#allocation2]]
    %v3118 = vstv %s3117
    %v3119 = vadd.f32 %v3116, %v3118
    %v3121 = vlaneseq
    %v3122 = vand.u32 %v3121, 127
    %v3123 = vlaneseq
    %v3124 = vshrl.u32 %v3123, 7
    %v3125 = vsub.s32 %v3122, %v3124
    %v3126 = vrot.slane %v3119, %v3125
    %vm3128 = vcmask 57344
    %3129 = vst.msk [vmem:[#allocation17] sm:$0x1] %vm3128, %v3126
    // Predicated region
    $region86: #{tpu_custom_call.1} parent=1 // pred_check
      _
    $region87: #{tpu_custom_call.1} parent=1 // pred_check_branch
      %3131 = sbr.rel (0) target = $region89
    $region88: #{tpu_custom_call.1} parent=1 // pred_region
      %s3133 = ssub.s32 16, 16
      %3134 = vsyncadd [#allocation5], %s3133
      %s3136 = sshll.u32 [#allocation17], 4
      %s3137 = int_to_ptr.vmem [resolvable:$true] %s3136
      %3139 = dma.vmem_to_hbm [thread:$0]  %s3137, 16, %s13, [#allocation5]
    $region89: #{tpu_custom_call.1} parent=1 // pred_fallthru
      _
    // Predicated region
    $region90: #{tpu_custom_call.1} parent=1 // pred_check
      _
    $region91: #{tpu_custom_call.1} parent=1 // pred_check_branch
      %3141 = sbr.rel (0) target = $region93
    $region92: #{tpu_custom_call.1} parent=1 // pred_region
      %3142 = dma.done [#allocation5], 16
    $region93: #{tpu_custom_call.1} parent=1 // pred_fallthru
      _
    %3143 = vsyncpa [#allocation4], 1
    %3144 = vsyncpa [#allocation7], 1
    %3145 = vsyncpa [#allocation10], 1
    %3146 = vsyncpa [#allocation13], 1
    %3147 = vsyncpa [#allocation16], 1
    %3148 = vsyncpa [#allocation5], 1

// kernel: tpu_custom_call.1
$region0: #{tpu_custom_call.1}
  #allocation0 [shape = 'u32[]', space=smem, size = 0x4, offset = 0x4, fixed_abs, tag = 'smem constant byte address 0x4 - core index']
  #allocation1 [shape = 'u32[144,128]{1,0:T(1,128)}', space=vmem, size = 0x12000, scoped, tag = 'internal scratch']
  #allocation2 [shape = 'f32[1,1]{1,0:T(1,128)S(6)}', space=smem, size = 0x200, scoped, tag = 'scoped memory for tpu_custom_call.1']
  %s0 = inlined_call_operand.hbm [shape: f32[8,16], index: 0, kind: input, shape index: {}]
  %s1 = inlined_call_operand.hbm [shape: f32[8,8], index: 1, kind: input, shape index: {}]
  %s2 = inlined_call_operand.hbm [shape: bf16[16,1024], index: 2, kind: input, shape index: {}]
  %s3 = inlined_call_operand.hbm [shape: f32[1,1024], index: 3, kind: input, shape index: {}]
  %s4 = inlined_call_operand.hbm [shape: bf16[8,512], index: 4, kind: input, shape index: {}]
  %s5 = inlined_call_operand.hbm [shape: bf16[1024,512], index: 5, kind: input, shape index: {}]
  %s6 = inlined_call_operand.vmem [shape: f32[1,512], index: 6, kind: input, shape index: {}]
  %s7 = inlined_call_operand.hbm [shape: bf16[512,256], index: 7, kind: input, shape index: {}]
  %s8 = inlined_call_operand.vmem [shape: f32[1,256], index: 8, kind: input, shape index: {}]
  %s9 = inlined_call_operand.hbm [shape: bf16[256,128], index: 9, kind: input, shape index: {}]
  %s10 = inlined_call_operand.vmem [shape: f32[1,128], index: 10, kind: input, shape index: {}]
  %s11 = inlined_call_operand.vmem [shape: f32[1,128], index: 11, kind: input, shape index: {}]
  %s12 = inlined_call_operand.<no memory space> [shape: f32[1,1], index: 12, kind: input, shape index: {}]
  %s13 = inlined_call_operand.hbm [shape: f32[1,1,8], index: 13, kind: output, shape index: {}]
  %s14 = sld [smem:[#allocation0]]
  $region94: #{tpu_custom_call.1} parent=0
    _
  %s16 = ssub.s32 1, %s14
  %s17 = scalar_select 0, %s16, %s14
  %18 = sst [smem:[#allocation2]] %s12
  $region1: #{tpu_custom_call.1} parent=0
    #allocation3 [shape = 'u8[4096]{0}', space=vmem, size = 0x1000, scoped, tag = 'input window, operand 0, single buffered']
    #allocation4 [shape = 's32[1]{0}', space=sflag, size = 0x4, scoped, tag = 'scoped memory for tpu_custom_call.1']
    #allocation5 [shape = 's32[1]{0}', space=sflag, size = 0x4, scoped, tag = 'scoped memory for tpu_custom_call.1']
    #allocation6 [shape = 'u8[4096]{0}', space=vmem, size = 0x1000, scoped, tag = 'input window, operand 1, single buffered']
    #allocation7 [shape = 's32[1]{0}', space=sflag, size = 0x4, scoped, tag = 'scoped memory for tpu_custom_call.1']
    #allocation8 [shape = 'u8[32768]{0}', space=vmem, size = 0x8000, scoped, tag = 'input window, operand 2, single buffered']
    #allocation9 [shape = 'u8[4096]{0}', space=vmem, size = 0x1000, scoped, tag = 'input window, operand 3, single buffered']
    #allocation10 [shape = 's32[1]{0}', space=sflag, size = 0x4, scoped, tag = 'scoped memory for tpu_custom_call.1']
    #allocation11 [shape = 'u8[8192]{0}', space=vmem, size = 0x2000, scoped, tag = 'input window, operand 4, single buffered']
    #allocation12 [shape = 'u8[1048576]{0}', space=vmem, size = 0x100000, scoped, tag = 'input window, operand 5, single buffered']
    #allocation13 [shape = 's32[1]{0}', space=sflag, size = 0x4, scoped, tag = 'scoped memory for tpu_custom_call.1']
    #allocation14 [shape = 'u8[262144]{0}', space=vmem, size = 0x40000, scoped, tag = 'input window, operand 7, single buffered']
    #allocation15 [shape = 'u8[65536]{0}', space=vmem, size = 0x10000, scoped, tag = 'input window, operand 9, single buffered']
    #allocation16 [shape = 's32[1]{0}', space=sflag, size = 0x4, scoped, tag = 'scoped memory for tpu_custom_call.1']
    #allocation17 [shape = 'u8[512]{0}', space=vmem, size = 0x400, scoped, tag = 'output window, operand 0, single buffered']
    %19 = vsyncpa [#allocation4], 0
    %20 = vsyncpa [#allocation7], 0
    %21 = vsyncpa [#allocation10], 0
    %22 = vsyncpa [#allocation13], 0
    %23 = vsyncpa [#allocation16], 0
    %24 = vsyncpa [#allocation5], 0
    // Predicated region
    $region2: #{tpu_custom_call.1} parent=1 // pred_check
      _
    $region3: #{tpu_custom_call.1} parent=1 // pred_check_branch
      %26 = sbr.rel (0) target = $region5
    $region4: #{tpu_custom_call.1} parent=1 // pred_region
      %s28 = ssub.s32 128, 128
      %29 = vsyncadd [#allocation4], %s28
      %s31 = sshll.u32 [#allocation3], 4
      %s32 = int_to_ptr.vmem [resolvable:$true] %s31
      %34 = dma.hbm_to_vmem [thread:$0]  %s0, 128, %s32, [#allocation4]
    $region5: #{tpu_custom_call.1} parent=1 // pred_fallthru
      _
    // Predicated region
    $region6: #{tpu_custom_call.1} parent=1 // pred_check
      _
    $region7: #{tpu_custom_call.1} parent=1 // pred_check_branch
      %36 = sbr.rel (0) target = $region9
    $region8: #{tpu_custom_call.1} parent=1 // pred_region
      %s38 = ssub.s32 128, 128
      %39 = vsyncadd [#allocation7], %s38
      %s41 = sshll.u32 [#allocation6], 4
      %s42 = int_to_ptr.vmem [resolvable:$true] %s41
      %44 = dma.hbm_to_vmem [thread:$0]  %s1, 128, %s42, [#allocation7]
    $region9: #{tpu_custom_call.1} parent=1 // pred_fallthru
      _
    // Predicated region
    $region10: #{tpu_custom_call.1} parent=1 // pred_check
      _
    $region11: #{tpu_custom_call.1} parent=1 // pred_check_branch
      %46 = sbr.rel (0) target = $region13
    $region12: #{tpu_custom_call.1} parent=1 // pred_region
      %s48 = ssub.s32 1024, 1024
      %49 = vsyncadd [#allocation7], %s48
      %s50 = sshll.u32 [#allocation8], 4
      %s51 = int_to_ptr.vmem [resolvable:$true] %s50
      %56 = dma.hbm_to_vmem [thread:$0]  %s2, 1024, %s51, [#allocation7], 512, 512, 32
    $region13: #{tpu_custom_call.1} parent=1 // pred_fallthru
      _
    // Predicated region
    $region14: #{tpu_custom_call.1} parent=1 // pred_check
      _
    $region15: #{tpu_custom_call.1} parent=1 // pred_check_branch
      %58 = sbr.rel (0) target = $region17
    $region16: #{tpu_custom_call.1} parent=1 // pred_region
      %s60 = ssub.s32 128, 128
      %61 = vsyncadd [#allocation10], %s60
      %s63 = sshll.u32 [#allocation9], 4
      %s64 = int_to_ptr.vmem [resolvable:$true] %s63
      %66 = dma.hbm_to_vmem [thread:$0]  %s3, 128, %s64, [#allocation10]
    $region17: #{tpu_custom_call.1} parent=1 // pred_fallthru
      _
    // Predicated region
    $region18: #{tpu_custom_call.1} parent=1 // pred_check
      _
    $region19: #{tpu_custom_call.1} parent=1 // pred_check_branch
      %68 = sbr.rel (0) target = $region21
    $region20: #{tpu_custom_call.1} parent=1 // pred_region
      %s70 = ssub.s32 256, 256
      %71 = vsyncadd [#allocation10], %s70
      %s73 = sshll.u32 [#allocation11], 4
      %s74 = int_to_ptr.vmem [resolvable:$true] %s73
      %76 = dma.hbm_to_vmem [thread:$0]  %s4, 256, %s74, [#allocation10]
    $region21: #{tpu_custom_call.1} parent=1 // pred_fallthru
      _
    // Predicated region
    $region22: #{tpu_custom_call.1} parent=1 // pred_check
      _
    $region23: #{tpu_custom_call.1} parent=1 // pred_check_branch
      %78 = sbr.rel (0) target = $region25
    $region24: #{tpu_custom_call.1} parent=1 // pred_region
      %s80 = ssub.s32 32768, 32768
      %81 = vsyncadd [#allocation13], %s80
      %s82 = sshll.u32 [#allocation12], 4
      %s83 = int_to_ptr.vmem [resolvable:$true] %s82
      %88 = dma.hbm_to_vmem [thread:$0]  %s5, 32768, %s83, [#allocation13], 256, 256, 16
    $region25: #{tpu_custom_call.1} parent=1 // pred_fallthru
      _
    // Predicated region
    $region26: #{tpu_custom_call.1} parent=1 // pred_check
      _
    $region27: #{tpu_custom_call.1} parent=1 // pred_check_branch
      %90 = sbr.rel (0) target = $region29
    $region28: #{tpu_custom_call.1} parent=1 // pred_region
      _
    $region29: #{tpu_custom_call.1} parent=1 // pred_fallthru
      _
    // Predicated region
    $region30: #{tpu_custom_call.1} parent=1 // pred_check
      _
    $region31: #{tpu_custom_call.1} parent=1 // pred_check_branch
      %92 = sbr.rel (0) target = $region33
    $region32: #{tpu_custom_call.1} parent=1 // pred_region
      %s94 = ssub.s32 8192, 8192
      %95 = vsyncadd [#allocation13], %s94
      %s96 = sshll.u32 [#allocation14], 4
      %s97 = int_to_ptr.vmem [resolvable:$true] %s96
      %102 = dma.hbm_to_vmem [thread:$0]  %s7, 8192, %s97, [#allocation13], 128, 128, 8
    $region33: #{tpu_custom_call.1} parent=1 // pred_fallthru
      _
    // Predicated region
    $region34: #{tpu_custom_call.1} parent=1 // pred_check
      _
    $region35: #{tpu_custom_call.1} parent=1 // pred_check_branch
      %104 = sbr.rel (0) target = $region37
    $region36: #{tpu_custom_call.1} parent=1 // pred_region
      _
    $region37: #{tpu_custom_call.1} parent=1 // pred_fallthru
      _
    // Predicated region
    $region38: #{tpu_custom_call.1} parent=1 // pred_check
      _
    $region39: #{tpu_custom_call.1} parent=1 // pred_check_branch
      %106 = sbr.rel (0) target = $region41
    $region40: #{tpu_custom_call.1} parent=1 // pred_region
      %s108 = ssub.s32 2048, 2048
      %109 = vsyncadd [#allocation16], %s108
      %s110 = sshll.u32 [#allocation15], 4
      %s111 = int_to_ptr.vmem [resolvable:$true] %s110
      %116 = dma.hbm_to_vmem [thread:$0]  %s9, 2048, %s111, [#allocation16], 64, 64, 4
    $region41: #{tpu_custom_call.1} parent=1 // pred_fallthru
      _
    // Predicated region
    $region42: #{tpu_custom_call.1} parent=1 // pred_check
      _
    $region43: #{tpu_custom_call.1} parent=1 // pred_check_branch
      %118 = sbr.rel (0) target = $region45
    $region44: #{tpu_custom_call.1} parent=1 // pred_region
      _
    $region45: #{tpu_custom_call.1} parent=1 // pred_fallthru
      _
    // Predicated region
    $region46: #{tpu_custom_call.1} parent=1 // pred_check
      _
    $region47: #{tpu_custom_call.1} parent=1 // pred_check_branch
      %120 = sbr.rel (0) target = $region49
    $region48: #{tpu_custom_call.1} parent=1 // pred_region
      _
    $region49: #{tpu_custom_call.1} parent=1 // pred_fallthru
      _
    // Predicated region
    $region50: #{tpu_custom_call.1} parent=1 // pred_check
      _
    $region51: #{tpu_custom_call.1} parent=1 // pred_check_branch
      %122 = sbr.rel (0) target = $region53
    $region52: #{tpu_custom_call.1} parent=1 // pred_region
      _
    $region53: #{tpu_custom_call.1} parent=1 // pred_fallthru
      _
    // Predicated region
    $region54: #{tpu_custom_call.1} parent=1 // pred_check
      _
    $region55: #{tpu_custom_call.1} parent=1 // pred_check_branch
      %124 = sbr.rel (0) target = $region57
    $region56: #{tpu_custom_call.1} parent=1 // pred_region
      %125 = dma.done [#allocation4], 128
    $region57: #{tpu_custom_call.1} parent=1 // pred_fallthru
      _
    // Predicated region
    $region58: #{tpu_custom_call.1} parent=1 // pred_check
      _
    $region59: #{tpu_custom_call.1} parent=1 // pred_check_branch
      %127 = sbr.rel (0) target = $region61
    $region60: #{tpu_custom_call.1} parent=1 // pred_region
      %128 = dma.done [#allocation7], 128
    $region61: #{tpu_custom_call.1} parent=1 // pred_fallthru
      _
    // Predicated region
    $region62: #{tpu_custom_call.1} parent=1 // pred_check
      _
    $region63: #{tpu_custom_call.1} parent=1 // pred_check_branch
      %130 = sbr.rel (0) target = $region65
    $region64: #{tpu_custom_call.1} parent=1 // pred_region
      %131 = dma.done [#allocation7], 1024
    $region65: #{tpu_custom_call.1} parent=1 // pred_fallthru
      _
    // Predicated region
    $region66: #{tpu_custom_call.1} parent=1 // pred_check
      _
    $region67: #{tpu_custom_call.1} parent=1 // pred_check_branch
      %133 = sbr.rel (0) target = $region69
    $region68: #{tpu_custom_call.1} parent=1 // pred_region
      %134 = dma.done [#allocation10], 128
    $region69: #{tpu_custom_call.1} parent=1 // pred_fallthru
      _
    // Predicated region
    $region70: #{tpu_custom_call.1} parent=1 // pred_check
      _
    $region71: #{tpu_custom_call.1} parent=1 // pred_check_branch
      %136 = sbr.rel (0) target = $region73
    $region72: #{tpu_custom_call.1} parent=1 // pred_region
      %137 = dma.done [#allocation10], 256
    $region73: #{tpu_custom_call.1} parent=1 // pred_fallthru
      _
    // Predicated region
    $region74: #{tpu_custom_call.1} parent=1 // pred_check
      _
    $region75: #{tpu_custom_call.1} parent=1 // pred_check_branch
      %139 = sbr.rel (0) target = $region77
    $region76: #{tpu_custom_call.1} parent=1 // pred_region
      %140 = dma.done [#allocation13], 32768
    $region77: #{tpu_custom_call.1} parent=1 // pred_fallthru
      _
    // Predicated region
    $region78: #{tpu_custom_call.1} parent=1 // pred_check
      _
    $region79: #{tpu_custom_call.1} parent=1 // pred_check_branch
      %142 = sbr.rel (0) target = $region81
    $region80: #{tpu_custom_call.1} parent=1 // pred_region
      %143 = dma.done [#allocation13], 8192
    $region81: #{tpu_custom_call.1} parent=1 // pred_fallthru
      _
    // Predicated region
    $region82: #{tpu_custom_call.1} parent=1 // pred_check
      _
    $region83: #{tpu_custom_call.1} parent=1 // pred_check_branch
      %145 = sbr.rel (0) target = $region85
    $region84: #{tpu_custom_call.1} parent=1 // pred_region
      %146 = dma.done [#allocation16], 2048
    $region85: #{tpu_custom_call.1} parent=1 // pred_fallthru
      _
    %v148 = vld [vmem:[#allocation3] sm:$0xff]
    %v149 = vpack.c.bf16 %v148, %v148
    %v150 = vld [vmem:[#allocation8] sm:$0xff]
    %v151 = vld [vmem:[#allocation8 + $0x8] sm:$0xff]
    %v152 = vld [vmem:[#allocation8 + $0x10] sm:$0xff]
    %v153 = vld [vmem:[#allocation8 + $0x18] sm:$0xff]
    %v154 = vld [vmem:[#allocation8 + $0x20] sm:$0xff]
    %v155 = vld [vmem:[#allocation8 + $0x28] sm:$0xff]
    %v156 = vld [vmem:[#allocation8 + $0x30] sm:$0xff]
    %v157 = vld [vmem:[#allocation8 + $0x38] sm:$0xff]
    %v158 = vld [vmem:[#allocation9] sm:$0xff]
    %v160 = vlaneseq
    %v161 = vshrl.u32 %v160, 7
    %v162 = vsub.s32 0, %v161
    %v163 = vrot.slane %v158, %v162
    %v164 = vlaneseq
    %v165 = vshrl.u32 %v164, 7
    %v166 = vsub.s32 1, %v165
    %v167 = vrot.slane %v158, %v166
    %v168 = vlaneseq
    %v169 = vshrl.u32 %v168, 7
    %v170 = vsub.s32 2, %v169
    %v171 = vrot.slane %v158, %v170
    %v172 = vlaneseq
    %v173 = vshrl.u32 %v172, 7
    %v174 = vsub.s32 3, %v173
    %v175 = vrot.slane %v158, %v174
    %v176 = vlaneseq
    %v177 = vshrl.u32 %v176, 7
    %v178 = vsub.s32 4, %v177
    %v179 = vrot.slane %v158, %v178
    %v180 = vlaneseq
    %v181 = vshrl.u32 %v180, 7
    %v182 = vsub.s32 5, %v181
    %v183 = vrot.slane %v158, %v182
    %v184 = vlaneseq
    %v185 = vshrl.u32 %v184, 7
    %v186 = vsub.s32 6, %v185
    %v187 = vrot.slane %v158, %v186
    %v188 = vlaneseq
    %v189 = vshrl.u32 %v188, 7
    %v190 = vsub.s32 7, %v189
    %v191 = vrot.slane %v158, %v190
    %v208 = vunpack.c.l.b16 %v150
    %v209 = vunpack.c.h.b16 %v150
    %v210 = vunpack.c.l.b16 %v151
    %v211 = vunpack.c.h.b16 %v151
    %v212 = vunpack.c.l.b16 %v152
    %v213 = vunpack.c.h.b16 %v152
    %v214 = vunpack.c.l.b16 %v153
    %v215 = vunpack.c.h.b16 %v153
    %v216 = vunpack.c.l.b16 %v154
    %v217 = vunpack.c.h.b16 %v154
    %v218 = vunpack.c.l.b16 %v155
    %v219 = vunpack.c.h.b16 %v155
    %v220 = vunpack.c.l.b16 %v156
    %v221 = vunpack.c.h.b16 %v156
    %v222 = vunpack.c.l.b16 %v157
    %v223 = vunpack.c.h.b16 %v157
    %v224 = vpack.c.b16 %v216, %v208
    %v225 = vpack.c.b16 %v217, %v209
    %v226 = vpack.c.b16 %v218, %v210
    %v227 = vpack.c.b16 %v219, %v211
    %v228 = vpack.c.b16 %v220, %v212
    %v229 = vpack.c.b16 %v221, %v213
    %v230 = vpack.c.b16 %v222, %v214
    %v231 = vpack.c.b16 %v223, %v215
    %vm240 = vcmask 130048
    %v242 = vsel %vm240, %v149, 0
    %244 = vmatprep.subr.bf16.mxu0 0
    %245 = vmatpush1.bf16.msra.mxu0 0
    %246 = vmatprep.subr.bf16.mxu0 0
    %247 = vmatpush1.bf16.msra.mxu0 0
    %248 = vmatprep.subr.bf16.mxu0 0
    %249 = vmatpush1.bf16.msra.mxu0 0
    %250 = vmatprep.subr.bf16.mxu0 0
    %251 = vmatpush1.bf16.msra.mxu0 0
    %252 = vmatprep.subr.bf16.mxu0 0
    %253 = vmatpush1.bf16.msra.mxu0 0
    %254 = vmatprep.subr.bf16.mxu0 0
    %255 = vmatpush1.bf16.msra.mxu0 0
    %256 = vmatprep.subr.bf16.mxu0 0
    %257 = vmatpush1.bf16.msra.mxu0 0
    %258 = vmatprep.subr.bf16.mxu0 %v225
    %259 = vmatpush1.bf16.msra.mxu0 %v224
    %260 = vmatprep.subr.bf16.mxu0 0
    %261 = vmatpush2.bf16.msra.mxu0 0
    %262 = vmatprep.subr.bf16.mxu0 0
    %263 = vmatpush2.bf16.msra.mxu0 0
    %264 = vmatprep.subr.bf16.mxu0 0
    %265 = vmatpush2.bf16.msra.mxu0 0
    %266 = vmatprep.subr.bf16.mxu0 0
    %267 = vmatpush2.bf16.msra.mxu0 0
    %268 = vmatprep.subr.bf16.mxu0 0
    %269 = vmatpush2.bf16.msra.mxu0 0
    %270 = vmatprep.subr.bf16.mxu0 0
    %271 = vmatpush2.bf16.msra.mxu0 0
    %272 = vmatprep.subr.bf16.mxu0 0
    %273 = vmatpush2.bf16.msra.mxu0 0
    %274 = vmatprep.subr.bf16.mxu0 0
    %275 = vmatpush2.bf16.msra.mxu0 0
    %276 = vmatprep.mubr.bf16.mxu0 0
    %277 = vmatmul.mubr.bf16.gmra.mxu0 %v242
    %v278 = vpop.f32.mrf.mxu0
    %v279 = vadd.f32 %v163, %v278
    %v280 = vpop.f32.mrf.mxu0
    %v281 = vadd.f32 %v167, %v280
    %v282 = vpop.f32.mrf.mxu0
    %v283 = vpop.f32.mrf.mxu0
    %284 = vdwg.mxu0
    %285 = vmatprep.subr.bf16.mxu0 0
    %286 = vmatpush1.bf16.msra.mxu0 0
    %287 = vmatprep.subr.bf16.mxu0 0
    %288 = vmatpush1.bf16.msra.mxu0 0
    %289 = vmatprep.subr.bf16.mxu0 0
    %290 = vmatpush1.bf16.msra.mxu0 0
    %291 = vmatprep.subr.bf16.mxu0 0
    %292 = vmatpush1.bf16.msra.mxu0 0
    %293 = vmatprep.subr.bf16.mxu0 0
    %294 = vmatpush1.bf16.msra.mxu0 0
    %295 = vmatprep.subr.bf16.mxu0 0
    %296 = vmatpush1.bf16.msra.mxu0 0
    %297 = vmatprep.subr.bf16.mxu0 0
    %298 = vmatpush1.bf16.msra.mxu0 0
    %299 = vmatprep.subr.bf16.mxu0 %v227
    %300 = vmatpush1.bf16.msra.mxu0 %v226
    %301 = vmatprep.subr.bf16.mxu0 0
    %302 = vmatpush2.bf16.msra.mxu0 0
    %303 = vmatprep.subr.bf16.mxu0 0
    %304 = vmatpush2.bf16.msra.mxu0 0
    %305 = vmatprep.subr.bf16.mxu0 0
    %306 = vmatpush2.bf16.msra.mxu0 0
    %307 = vmatprep.subr.bf16.mxu0 0
    %308 = vmatpush2.bf16.msra.mxu0 0
    %309 = vmatprep.subr.bf16.mxu0 0
    %310 = vmatpush2.bf16.msra.mxu0 0
    %311 = vmatprep.subr.bf16.mxu0 0
    %312 = vmatpush2.bf16.msra.mxu0 0
    %313 = vmatprep.subr.bf16.mxu0 0
    %314 = vmatpush2.bf16.msra.mxu0 0
    %315 = vmatprep.subr.bf16.mxu0 0
    %316 = vmatpush2.bf16.msra.mxu0 0
    %317 = vmatprep.mubr.bf16.mxu0 0
    %318 = vmatmul.mubr.bf16.gmra.mxu0 %v242
    %v319 = vpop.f32.mrf.mxu0
    %v320 = vadd.f32 %v171, %v319
    %v321 = vpop.f32.mrf.mxu0
    %v322 = vadd.f32 %v175, %v321
    %v323 = vpop.f32.mrf.mxu0
    %v324 = vpop.f32.mrf.mxu0
    %325 = vdwg.mxu0
    %326 = vmatprep.subr.bf16.mxu0 0
    %327 = vmatpush1.bf16.msra.mxu0 0
    %328 = vmatprep.subr.bf16.mxu0 0
    %329 = vmatpush1.bf16.msra.mxu0 0
    %330 = vmatprep.subr.bf16.mxu0 0
    %331 = vmatpush1.bf16.msra.mxu0 0
    %332 = vmatprep.subr.bf16.mxu0 0
    %333 = vmatpush1.bf16.msra.mxu0 0
    %334 = vmatprep.subr.bf16.mxu0 0
    %335 = vmatpush1.bf16.msra.mxu0 0
    %336 = vmatprep.subr.bf16.mxu0 0
    %337 = vmatpush1.bf16.msra.mxu0 0
    %338 = vmatprep.subr.bf16.mxu0 0
    %339 = vmatpush1.bf16.msra.mxu0 0
    %340 = vmatprep.subr.bf16.mxu0 %v229
    %341 = vmatpush1.bf16.msra.mxu0 %v228
    %342 = vmatprep.subr.bf16.mxu0 0
    %343 = vmatpush2.bf16.msra.mxu0 0
    %344 = vmatprep.subr.bf16.mxu0 0
    %345 = vmatpush2.bf16.msra.mxu0 0
    %346 = vmatprep.subr.bf16.mxu0 0
    %347 = vmatpush2.bf16.msra.mxu0 0
    %348 = vmatprep.subr.bf16.mxu0 0
    %349 = vmatpush2.bf16.msra.mxu0 0
    %350 = vmatprep.subr.bf16.mxu0 0
    %351 = vmatpush2.bf16.msra.mxu0 0
    %352 = vmatprep.subr.bf16.mxu0 0
    %353 = vmatpush2.bf16.msra.mxu0 0
    %354 = vmatprep.subr.bf16.mxu0 0
    %355 = vmatpush2.bf16.msra.mxu0 0
    %356 = vmatprep.subr.bf16.mxu0 0
    %357 = vmatpush2.bf16.msra.mxu0 0
    %358 = vmatprep.mubr.bf16.mxu0 0
    %359 = vmatmul.mubr.bf16.gmra.mxu0 %v242
    %v360 = vpop.f32.mrf.mxu0
    %v361 = vadd.f32 %v179, %v360
    %v362 = vpop.f32.mrf.mxu0
    %v363 = vadd.f32 %v183, %v362
    %v364 = vpop.f32.mrf.mxu0
    %v365 = vpop.f32.mrf.mxu0
    %366 = vdwg.mxu0
    %367 = vmatprep.subr.bf16.mxu0 0
    %368 = vmatpush1.bf16.msra.mxu0 0
    %369 = vmatprep.subr.bf16.mxu0 0
    %370 = vmatpush1.bf16.msra.mxu0 0
    %371 = vmatprep.subr.bf16.mxu0 0
    %372 = vmatpush1.bf16.msra.mxu0 0
    %373 = vmatprep.subr.bf16.mxu0 0
    %374 = vmatpush1.bf16.msra.mxu0 0
    %375 = vmatprep.subr.bf16.mxu0 0
    %376 = vmatpush1.bf16.msra.mxu0 0
    %377 = vmatprep.subr.bf16.mxu0 0
    %378 = vmatpush1.bf16.msra.mxu0 0
    %379 = vmatprep.subr.bf16.mxu0 0
    %380 = vmatpush1.bf16.msra.mxu0 0
    %381 = vmatprep.subr.bf16.mxu0 %v231
    %382 = vmatpush1.bf16.msra.mxu0 %v230
    %383 = vmatprep.subr.bf16.mxu0 0
    %384 = vmatpush2.bf16.msra.mxu0 0
    %385 = vmatprep.subr.bf16.mxu0 0
    %386 = vmatpush2.bf16.msra.mxu0 0
    %387 = vmatprep.subr.bf16.mxu0 0
    %388 = vmatpush2.bf16.msra.mxu0 0
    %389 = vmatprep.subr.bf16.mxu0 0
    %390 = vmatpush2.bf16.msra.mxu0 0
    %391 = vmatprep.subr.bf16.mxu0 0
    %392 = vmatpush2.bf16.msra.mxu0 0
    %393 = vmatprep.subr.bf16.mxu0 0
    %394 = vmatpush2.bf16.msra.mxu0 0
    %395 = vmatprep.subr.bf16.mxu0 0
    %396 = vmatpush2.bf16.msra.mxu0 0
    %397 = vmatprep.subr.bf16.mxu0 0
    %398 = vmatpush2.bf16.msra.mxu0 0
    %399 = vmatprep.mubr.bf16.mxu0 0
    %400 = vmatmul.mubr.bf16.gmra.mxu0 %v242
    %v401 = vpop.f32.mrf.mxu0
    %v402 = vadd.f32 %v187, %v401
    %v403 = vpop.f32.mrf.mxu0
    %v404 = vadd.f32 %v191, %v403
    %v405 = vpop.f32.mrf.mxu0
    %v406 = vpop.f32.mrf.mxu0
    %407 = vdwg.mxu0
    %v408 = vmax.f32 %v279, 0.0
    %v409 = vmax.f32 %v281, 0.0
    %v410 = vmax.f32 %v320, 0.0
    %v411 = vmax.f32 %v322, 0.0
    %v412 = vmax.f32 %v361, 0.0
    %v413 = vmax.f32 %v363, 0.0
    %v414 = vmax.f32 %v402, 0.0
    %v415 = vmax.f32 %v404, 0.0
    %v416 = vld [vmem:[#allocation6] sm:$0xff]
    %v417 = vpack.c.bf16 %v416, %v416
    %v418 = vld [vmem:[#allocation11] sm:$0xff]
    %v419 = vld [vmem:[#allocation11 + $0x8] sm:$0xff]
    %v420 = vpack.c.bf16 %v408, %v408
    %v421 = vpack.c.bf16 %v409, %v409
    %v422 = vpack.c.bf16 %v410, %v410
    %v423 = vpack.c.bf16 %v411, %v411
    %v424 = vpack.c.bf16 %v412, %v412
    %v425 = vpack.c.bf16 %v413, %v413
    %v426 = vpack.c.bf16 %v414, %v414
    %v427 = vpack.c.bf16 %v415, %v415
    %v428 = vld [vmem:[#allocation12] sm:$0xff]
    %v429 = vld [vmem:[#allocation12 + $0x8] sm:$0xff]
    %v430 = vld [vmem:[#allocation12 + $0x10] sm:$0xff]
    %v431 = vld [vmem:[#allocation12 + $0x18] sm:$0xff]
    %v432 = vld [vmem:[#allocation12 + $0x20] sm:$0xff]
    %v433 = vld [vmem:[#allocation12 + $0x28] sm:$0xff]
    %v434 = vld [vmem:[#allocation12 + $0x30] sm:$0xff]
    %v435 = vld [vmem:[#allocation12 + $0x38] sm:$0xff]
    %v436 = vld [vmem:[#allocation12 + $0x40] sm:$0xff]
    %v437 = vld [vmem:[#allocation12 + $0x48] sm:$0xff]
    %v438 = vld [vmem:[#allocation12 + $0x50] sm:$0xff]
    %v439 = vld [vmem:[#allocation12 + $0x58] sm:$0xff]
    %v440 = vld [vmem:[#allocation12 + $0x60] sm:$0xff]
    %v441 = vld [vmem:[#allocation12 + $0x68] sm:$0xff]
    %v442 = vld [vmem:[#allocation12 + $0x70] sm:$0xff]
    %v443 = vld [vmem:[#allocation12 + $0x78] sm:$0xff]
    %v444 = vld [vmem:[#allocation12 + $0x80] sm:$0xff]
    %v445 = vld [vmem:[#allocation12 + $0x88] sm:$0xff]
    %v446 = vld [vmem:[#allocation12 + $0x90] sm:$0xff]
    %v447 = vld [vmem:[#allocation12 + $0x98] sm:$0xff]
    %v448 = vld [vmem:[#allocation12 + $0xa0] sm:$0xff]
    %v449 = vld [vmem:[#allocation12 + $0xa8] sm:$0xff]
    %v450 = vld [vmem:[#allocation12 + $0xb0] sm:$0xff]
    %v451 = vld [vmem:[#allocation12 + $0xb8] sm:$0xff]
    %v452 = vld [vmem:[#allocation12 + $0xc0] sm:$0xff]
    %v453 = vld [vmem:[#allocation12 + $0xc8] sm:$0xff]
    %v454 = vld [vmem:[#allocation12 + $0xd0] sm:$0xff]
    %v455 = vld [vmem:[#allocation12 + $0xd8] sm:$0xff]
    %v456 = vld [vmem:[#allocation12 + $0xe0] sm:$0xff]
    %v457 = vld [vmem:[#allocation12 + $0xe8] sm:$0xff]
    %v458 = vld [vmem:[#allocation12 + $0xf0] sm:$0xff]
    %v459 = vld [vmem:[#allocation12 + $0xf8] sm:$0xff]
    %v460 = vld [vmem:[#allocation12 + $0x100] sm:$0xff]
    %v461 = vld [vmem:[#allocation12 + $0x108] sm:$0xff]
    %v462 = vld [vmem:[#allocation12 + $0x110] sm:$0xff]
    %v463 = vld [vmem:[#allocation12 + $0x118] sm:$0xff]
    %v464 = vld [vmem:[#allocation12 + $0x120] sm:$0xff]
    %v465 = vld [vmem:[#allocation12 + $0x128] sm:$0xff]
    %v466 = vld [vmem:[#allocation12 + $0x130] sm:$0xff]
    %v467 = vld [vmem:[#allocation12 + $0x138] sm:$0xff]
    %v468 = vld [vmem:[#allocation12 + $0x140] sm:$0xff]
    %v469 = vld [vmem:[#allocation12 + $0x148] sm:$0xff]
    %v470 = vld [vmem:[#allocation12 + $0x150] sm:$0xff]
    %v471 = vld [vmem:[#allocation12 + $0x158] sm:$0xff]
    %v472 = vld [vmem:[#allocation12 + $0x160] sm:$0xff]
    %v473 = vld [vmem:[#allocation12 + $0x168] sm:$0xff]
    %v474 = vld [vmem:[#allocation12 + $0x170] sm:$0xff]
    %v475 = vld [vmem:[#allocation12 + $0x178] sm:$0xff]
    %v476 = vld [vmem:[#allocation12 + $0x180] sm:$0xff]
    %v477 = vld [vmem:[#allocation12 + $0x188] sm:$0xff]
    %v478 = vld [vmem:[#allocation12 + $0x190] sm:$0xff]
    %v479 = vld [vmem:[#allocation12 + $0x198] sm:$0xff]
    %v480 = vld [vmem:[#allocation12 + $0x1a0] sm:$0xff]
    %v481 = vld [vmem:[#allocation12 + $0x1a8] sm:$0xff]
    %v482 = vld [vmem:[#allocation12 + $0x1b0] sm:$0xff]
    %v483 = vld [vmem:[#allocation12 + $0x1b8] sm:$0xff]
    %v484 = vld [vmem:[#allocation12 + $0x1c0] sm:$0xff]
    %v485 = vld [vmem:[#allocation12 + $0x1c8] sm:$0xff]
    %v486 = vld [vmem:[#allocation12 + $0x1d0] sm:$0xff]
    %v487 = vld [vmem:[#allocation12 + $0x1d8] sm:$0xff]
    %v488 = vld [vmem:[#allocation12 + $0x1e0] sm:$0xff]
    %v489 = vld [vmem:[#allocation12 + $0x1e8] sm:$0xff]
    %v490 = vld [vmem:[#allocation12 + $0x1f0] sm:$0xff]
    %v491 = vld [vmem:[#allocation12 + $0x1f8] sm:$0xff]
    %v492 = vld [vmem:[#allocation12 + $0x200] sm:$0xff]
    %v493 = vld [vmem:[#allocation12 + $0x208] sm:$0xff]
    %v494 = vld [vmem:[#allocation12 + $0x210] sm:$0xff]
    %v495 = vld [vmem:[#allocation12 + $0x218] sm:$0xff]
    %v496 = vld [vmem:[#allocation12 + $0x220] sm:$0xff]
    %v497 = vld [vmem:[#allocation12 + $0x228] sm:$0xff]
    %v498 = vld [vmem:[#allocation12 + $0x230] sm:$0xff]
    %v499 = vld [vmem:[#allocation12 + $0x238] sm:$0xff]
    %v500 = vld [vmem:[#allocation12 + $0x240] sm:$0xff]
    %v501 = vld [vmem:[#allocation12 + $0x248] sm:$0xff]
    %v502 = vld [vmem:[#allocation12 + $0x250] sm:$0xff]
    %v503 = vld [vmem:[#allocation12 + $0x258] sm:$0xff]
    %v504 = vld [vmem:[#allocation12 + $0x260] sm:$0xff]
    %v505 = vld [vmem:[#allocation12 + $0x268] sm:$0xff]
    %v506 = vld [vmem:[#allocation12 + $0x270] sm:$0xff]
    %v507 = vld [vmem:[#allocation12 + $0x278] sm:$0xff]
    %v508 = vld [vmem:[#allocation12 + $0x280] sm:$0xff]
    %v509 = vld [vmem:[#allocation12 + $0x288] sm:$0xff]
    %v510 = vld [vmem:[#allocation12 + $0x290] sm:$0xff]
    %v511 = vld [vmem:[#allocation12 + $0x298] sm:$0xff]
    %v512 = vld [vmem:[#allocation12 + $0x2a0] sm:$0xff]
    %v513 = vld [vmem:[#allocation12 + $0x2a8] sm:$0xff]
    %v514 = vld [vmem:[#allocation12 + $0x2b0] sm:$0xff]
    %v515 = vld [vmem:[#allocation12 + $0x2b8] sm:$0xff]
    %v516 = vld [vmem:[#allocation12 + $0x2c0] sm:$0xff]
    %v517 = vld [vmem:[#allocation12 + $0x2c8] sm:$0xff]
    %v518 = vld [vmem:[#allocation12 + $0x2d0] sm:$0xff]
    %v519 = vld [vmem:[#allocation12 + $0x2d8] sm:$0xff]
    %v520 = vld [vmem:[#allocation12 + $0x2e0] sm:$0xff]
    %v521 = vld [vmem:[#allocation12 + $0x2e8] sm:$0xff]
    %v522 = vld [vmem:[#allocation12 + $0x2f0] sm:$0xff]
    %v523 = vld [vmem:[#allocation12 + $0x2f8] sm:$0xff]
    %v524 = vld [vmem:[#allocation12 + $0x300] sm:$0xff]
    %v525 = vld [vmem:[#allocation12 + $0x308] sm:$0xff]
    %v526 = vld [vmem:[#allocation12 + $0x310] sm:$0xff]
    %v527 = vld [vmem:[#allocation12 + $0x318] sm:$0xff]
    %v528 = vld [vmem:[#allocation12 + $0x320] sm:$0xff]
    %v529 = vld [vmem:[#allocation12 + $0x328] sm:$0xff]
    %v530 = vld [vmem:[#allocation12 + $0x330] sm:$0xff]
    %v531 = vld [vmem:[#allocation12 + $0x338] sm:$0xff]
    %v532 = vld [vmem:[#allocation12 + $0x340] sm:$0xff]
    %v533 = vld [vmem:[#allocation12 + $0x348] sm:$0xff]
    %v534 = vld [vmem:[#allocation12 + $0x350] sm:$0xff]
    %v535 = vld [vmem:[#allocation12 + $0x358] sm:$0xff]
    %v536 = vld [vmem:[#allocation12 + $0x360] sm:$0xff]
    %v537 = vld [vmem:[#allocation12 + $0x368] sm:$0xff]
    %v538 = vld [vmem:[#allocation12 + $0x370] sm:$0xff]
    %v539 = vld [vmem:[#allocation12 + $0x378] sm:$0xff]
    %v540 = vld [vmem:[#allocation12 + $0x380] sm:$0xff]
    %v541 = vld [vmem:[#allocation12 + $0x388] sm:$0xff]
    %v542 = vld [vmem:[#allocation12 + $0x390] sm:$0xff]
    %v543 = vld [vmem:[#allocation12 + $0x398] sm:$0xff]
    %v544 = vld [vmem:[#allocation12 + $0x3a0] sm:$0xff]
    %v545 = vld [vmem:[#allocation12 + $0x3a8] sm:$0xff]
    %v546 = vld [vmem:[#allocation12 + $0x3b0] sm:$0xff]
    %v547 = vld [vmem:[#allocation12 + $0x3b8] sm:$0xff]
    %v548 = vld [vmem:[#allocation12 + $0x3c0] sm:$0xff]
    %v549 = vld [vmem:[#allocation12 + $0x3c8] sm:$0xff]
    %v550 = vld [vmem:[#allocation12 + $0x3d0] sm:$0xff]
    %v551 = vld [vmem:[#allocation12 + $0x3d8] sm:$0xff]
    %v552 = vld [vmem:[#allocation12 + $0x3e0] sm:$0xff]
    %v553 = vld [vmem:[#allocation12 + $0x3e8] sm:$0xff]
    %v554 = vld [vmem:[#allocation12 + $0x3f0] sm:$0xff]
    %v555 = vld [vmem:[#allocation12 + $0x3f8] sm:$0xff]
    %v556 = vld [vmem:[#allocation12 + $0x400] sm:$0xff]
    %v557 = vld [vmem:[#allocation12 + $0x408] sm:$0xff]
    %v558 = vld [vmem:[#allocation12 + $0x410] sm:$0xff]
    %v559 = vld [vmem:[#allocation12 + $0x418] sm:$0xff]
    %v560 = vld [vmem:[#allocation12 + $0x420] sm:$0xff]
    %v561 = vld [vmem:[#allocation12 + $0x428] sm:$0xff]
    %v562 = vld [vmem:[#allocation12 + $0x430] sm:$0xff]
    %v563 = vld [vmem:[#allocation12 + $0x438] sm:$0xff]
    %v564 = vld [vmem:[#allocation12 + $0x440] sm:$0xff]
    %v565 = vld [vmem:[#allocation12 + $0x448] sm:$0xff]
    %v566 = vld [vmem:[#allocation12 + $0x450] sm:$0xff]
    %v567 = vld [vmem:[#allocation12 + $0x458] sm:$0xff]
    %v568 = vld [vmem:[#allocation12 + $0x460] sm:$0xff]
    %v569 = vld [vmem:[#allocation12 + $0x468] sm:$0xff]
    %v570 = vld [vmem:[#allocation12 + $0x470] sm:$0xff]
    %v571 = vld [vmem:[#allocation12 + $0x478] sm:$0xff]
    %v572 = vld [vmem:[#allocation12 + $0x480] sm:$0xff]
    %v573 = vld [vmem:[#allocation12 + $0x488] sm:$0xff]
    %v574 = vld [vmem:[#allocation12 + $0x490] sm:$0xff]
    %v575 = vld [vmem:[#allocation12 + $0x498] sm:$0xff]
    %v576 = vld [vmem:[#allocation12 + $0x4a0] sm:$0xff]
    %v577 = vld [vmem:[#allocation12 + $0x4a8] sm:$0xff]
    %v578 = vld [vmem:[#allocation12 + $0x4b0] sm:$0xff]
    %v579 = vld [vmem:[#allocation12 + $0x4b8] sm:$0xff]
    %v580 = vld [vmem:[#allocation12 + $0x4c0] sm:$0xff]
    %v581 = vld [vmem:[#allocation12 + $0x4c8] sm:$0xff]
    %v582 = vld [vmem:[#allocation12 + $0x4d0] sm:$0xff]
    %v583 = vld [vmem:[#allocation12 + $0x4d8] sm:$0xff]
    %v584 = vld [vmem:[#allocation12 + $0x4e0] sm:$0xff]
    %v585 = vld [vmem:[#allocation12 + $0x4e8] sm:$0xff]
    %v586 = vld [vmem:[#allocation12 + $0x4f0] sm:$0xff]
    %v587 = vld [vmem:[#allocation12 + $0x4f8] sm:$0xff]
    %v588 = vld [vmem:[#allocation12 + $0x500] sm:$0xff]
    %v589 = vld [vmem:[#allocation12 + $0x508] sm:$0xff]
    %v590 = vld [vmem:[#allocation12 + $0x510] sm:$0xff]
    %v591 = vld [vmem:[#allocation12 + $0x518] sm:$0xff]
    %v592 = vld [vmem:[#allocation12 + $0x520] sm:$0xff]
    %v593 = vld [vmem:[#allocation12 + $0x528] sm:$0xff]
    %v594 = vld [vmem:[#allocation12 + $0x530] sm:$0xff]
    %v595 = vld [vmem:[#allocation12 + $0x538] sm:$0xff]
    %v596 = vld [vmem:[#allocation12 + $0x540] sm:$0xff]
    %v597 = vld [vmem:[#allocation12 + $0x548] sm:$0xff]
    %v598 = vld [vmem:[#allocation12 + $0x550] sm:$0xff]
    %v599 = vld [vmem:[#allocation12 + $0x558] sm:$0xff]
    %v600 = vld [vmem:[#allocation12 + $0x560] sm:$0xff]
    %v601 = vld [vmem:[#allocation12 + $0x568] sm:$0xff]
    %v602 = vld [vmem:[#allocation12 + $0x570] sm:$0xff]
    %v603 = vld [vmem:[#allocation12 + $0x578] sm:$0xff]
    %v604 = vld [vmem:[#allocation12 + $0x580] sm:$0xff]
    %v605 = vld [vmem:[#allocation12 + $0x588] sm:$0xff]
    %v606 = vld [vmem:[#allocation12 + $0x590] sm:$0xff]
    %v607 = vld [vmem:[#allocation12 + $0x598] sm:$0xff]
    %v608 = vld [vmem:[#allocation12 + $0x5a0] sm:$0xff]
    %v609 = vld [vmem:[#allocation12 + $0x5a8] sm:$0xff]
    %v610 = vld [vmem:[#allocation12 + $0x5b0] sm:$0xff]
    %v611 = vld [vmem:[#allocation12 + $0x5b8] sm:$0xff]
    %v612 = vld [vmem:[#allocation12 + $0x5c0] sm:$0xff]
    %v613 = vld [vmem:[#allocation12 + $0x5c8] sm:$0xff]
    %v614 = vld [vmem:[#allocation12 + $0x5d0] sm:$0xff]
    %v615 = vld [vmem:[#allocation12 + $0x5d8] sm:$0xff]
    %v616 = vld [vmem:[#allocation12 + $0x5e0] sm:$0xff]
    %v617 = vld [vmem:[#allocation12 + $0x5e8] sm:$0xff]
    %v618 = vld [vmem:[#allocation12 + $0x5f0] sm:$0xff]
    %v619 = vld [vmem:[#allocation12 + $0x5f8] sm:$0xff]
    %v620 = vld [vmem:[#allocation12 + $0x600] sm:$0xff]
    %v621 = vld [vmem:[#allocation12 + $0x608] sm:$0xff]
    %v622 = vld [vmem:[#allocation12 + $0x610] sm:$0xff]
    %v623 = vld [vmem:[#allocation12 + $0x618] sm:$0xff]
    %v624 = vld [vmem:[#allocation12 + $0x620] sm:$0xff]
    %v625 = vld [vmem:[#allocation12 + $0x628] sm:$0xff]
    %v626 = vld [vmem:[#allocation12 + $0x630] sm:$0xff]
    %v627 = vld [vmem:[#allocation12 + $0x638] sm:$0xff]
    %v628 = vld [vmem:[#allocation12 + $0x640] sm:$0xff]
    %v629 = vld [vmem:[#allocation12 + $0x648] sm:$0xff]
    %v630 = vld [vmem:[#allocation12 + $0x650] sm:$0xff]
    %v631 = vld [vmem:[#allocation12 + $0x658] sm:$0xff]
    %v632 = vld [vmem:[#allocation12 + $0x660] sm:$0xff]
    %v633 = vld [vmem:[#allocation12 + $0x668] sm:$0xff]
    %v634 = vld [vmem:[#allocation12 + $0x670] sm:$0xff]
    %v635 = vld [vmem:[#allocation12 + $0x678] sm:$0xff]
    %v636 = vld [vmem:[#allocation12 + $0x680] sm:$0xff]
    %v637 = vld [vmem:[#allocation12 + $0x688] sm:$0xff]
    %v638 = vld [vmem:[#allocation12 + $0x690] sm:$0xff]
    %v639 = vld [vmem:[#allocation12 + $0x698] sm:$0xff]
    %v640 = vld [vmem:[#allocation12 + $0x6a0] sm:$0xff]
    %v641 = vld [vmem:[#allocation12 + $0x6a8] sm:$0xff]
    %v642 = vld [vmem:[#allocation12 + $0x6b0] sm:$0xff]
    %v643 = vld [vmem:[#allocation12 + $0x6b8] sm:$0xff]
    %v644 = vld [vmem:[#allocation12 + $0x6c0] sm:$0xff]
    %v645 = vld [vmem:[#allocation12 + $0x6c8] sm:$0xff]
    %v646 = vld [vmem:[#allocation12 + $0x6d0] sm:$0xff]
    %v647 = vld [vmem:[#allocation12 + $0x6d8] sm:$0xff]
    %v648 = vld [vmem:[#allocation12 + $0x6e0] sm:$0xff]
    %v649 = vld [vmem:[#allocation12 + $0x6e8] sm:$0xff]
    %v650 = vld [vmem:[#allocation12 + $0x6f0] sm:$0xff]
    %v651 = vld [vmem:[#allocation12 + $0x6f8] sm:$0xff]
    %v652 = vld [vmem:[#allocation12 + $0x700] sm:$0xff]
    %v653 = vld [vmem:[#allocation12 + $0x708] sm:$0xff]
    %v654 = vld [vmem:[#allocation12 + $0x710] sm:$0xff]
    %v655 = vld [vmem:[#allocation12 + $0x718] sm:$0xff]
    %v656 = vld [vmem:[#allocation12 + $0x720] sm:$0xff]
    %v657 = vld [vmem:[#allocation12 + $0x728] sm:$0xff]
    %v658 = vld [vmem:[#allocation12 + $0x730] sm:$0xff]
    %v659 = vld [vmem:[#allocation12 + $0x738] sm:$0xff]
    %v660 = vld [vmem:[#allocation12 + $0x740] sm:$0xff]
    %v661 = vld [vmem:[#allocation12 + $0x748] sm:$0xff]
    %v662 = vld [vmem:[#allocation12 + $0x750] sm:$0xff]
    %v663 = vld [vmem:[#allocation12 + $0x758] sm:$0xff]
    %v664 = vld [vmem:[#allocation12 + $0x760] sm:$0xff]
    %v665 = vld [vmem:[#allocation12 + $0x768] sm:$0xff]
    %v666 = vld [vmem:[#allocation12 + $0x770] sm:$0xff]
    %v667 = vld [vmem:[#allocation12 + $0x778] sm:$0xff]
    %v668 = vld [vmem:[#allocation12 + $0x780] sm:$0xff]
    %v669 = vld [vmem:[#allocation12 + $0x788] sm:$0xff]
    %v670 = vld [vmem:[#allocation12 + $0x790] sm:$0xff]
    %v671 = vld [vmem:[#allocation12 + $0x798] sm:$0xff]
    %v672 = vld [vmem:[#allocation12 + $0x7a0] sm:$0xff]
    %v673 = vld [vmem:[#allocation12 + $0x7a8] sm:$0xff]
    %v674 = vld [vmem:[#allocation12 + $0x7b0] sm:$0xff]
    %v675 = vld [vmem:[#allocation12 + $0x7b8] sm:$0xff]
    %v676 = vld [vmem:[#allocation12 + $0x7c0] sm:$0xff]
    %v677 = vld [vmem:[#allocation12 + $0x7c8] sm:$0xff]
    %v678 = vld [vmem:[#allocation12 + $0x7d0] sm:$0xff]
    %v679 = vld [vmem:[#allocation12 + $0x7d8] sm:$0xff]
    %v680 = vld [vmem:[#allocation12 + $0x7e0] sm:$0xff]
    %v681 = vld [vmem:[#allocation12 + $0x7e8] sm:$0xff]
    %v682 = vld [vmem:[#allocation12 + $0x7f0] sm:$0xff]
    %v683 = vld [vmem:[#allocation12 + $0x7f8] sm:$0xff]
    %v940 = vunpack.c.l.b16 %v428
    %v941 = vunpack.c.h.b16 %v428
    %v942 = vunpack.c.l.b16 %v429
    %v943 = vunpack.c.h.b16 %v429
    %v944 = vunpack.c.l.b16 %v430
    %v945 = vunpack.c.h.b16 %v430
    %v946 = vunpack.c.l.b16 %v431
    %v947 = vunpack.c.h.b16 %v431
    %v948 = vunpack.c.l.b16 %v432
    %v949 = vunpack.c.h.b16 %v432
    %v950 = vunpack.c.l.b16 %v433
    %v951 = vunpack.c.h.b16 %v433
    %v952 = vunpack.c.l.b16 %v434
    %v953 = vunpack.c.h.b16 %v434
    %v954 = vunpack.c.l.b16 %v435
    %v955 = vunpack.c.h.b16 %v435
    %v956 = vunpack.c.l.b16 %v436
    %v957 = vunpack.c.h.b16 %v436
    %v958 = vunpack.c.l.b16 %v437
    %v959 = vunpack.c.h.b16 %v437
    %v960 = vunpack.c.l.b16 %v438
    %v961 = vunpack.c.h.b16 %v438
    %v962 = vunpack.c.l.b16 %v439
    %v963 = vunpack.c.h.b16 %v439
    %v964 = vunpack.c.l.b16 %v440
    %v965 = vunpack.c.h.b16 %v440
    %v966 = vunpack.c.l.b16 %v441
    %v967 = vunpack.c.h.b16 %v441
    %v968 = vunpack.c.l.b16 %v442
    %v969 = vunpack.c.h.b16 %v442
    %v970 = vunpack.c.l.b16 %v443
    %v971 = vunpack.c.h.b16 %v443
    %v972 = vunpack.c.l.b16 %v444
    %v973 = vunpack.c.h.b16 %v444
    %v974 = vunpack.c.l.b16 %v445
    %v975 = vunpack.c.h.b16 %v445
    %v976 = vunpack.c.l.b16 %v446
    %v977 = vunpack.c.h.b16 %v446
    %v978 = vunpack.c.l.b16 %v447
    %v979 = vunpack.c.h.b16 %v447
    %v980 = vunpack.c.l.b16 %v448
    %v981 = vunpack.c.h.b16 %v448
    %v982 = vunpack.c.l.b16 %v449
    %v983 = vunpack.c.h.b16 %v449
    %v984 = vunpack.c.l.b16 %v450
    %v985 = vunpack.c.h.b16 %v450
    %v986 = vunpack.c.l.b16 %v451
    %v987 = vunpack.c.h.b16 %v451
    %v988 = vunpack.c.l.b16 %v452
    %v989 = vunpack.c.h.b16 %v452
    %v990 = vunpack.c.l.b16 %v453
    %v991 = vunpack.c.h.b16 %v453
    %v992 = vunpack.c.l.b16 %v454
    %v993 = vunpack.c.h.b16 %v454
    %v994 = vunpack.c.l.b16 %v455
    %v995 = vunpack.c.h.b16 %v455
    %v996 = vunpack.c.l.b16 %v456
    %v997 = vunpack.c.h.b16 %v456
    %v998 = vunpack.c.l.b16 %v457
    %v999 = vunpack.c.h.b16 %v457
    %v1000 = vunpack.c.l.b16 %v458
    %v1001 = vunpack.c.h.b16 %v458
    %v1002 = vunpack.c.l.b16 %v459
    %v1003 = vunpack.c.h.b16 %v459
    %v1004 = vunpack.c.l.b16 %v460
    %v1005 = vunpack.c.h.b16 %v460
    %v1006 = vunpack.c.l.b16 %v461
    %v1007 = vunpack.c.h.b16 %v461
    %v1008 = vunpack.c.l.b16 %v462
    %v1009 = vunpack.c.h.b16 %v462
    %v1010 = vunpack.c.l.b16 %v463
    %v1011 = vunpack.c.h.b16 %v463
    %v1012 = vunpack.c.l.b16 %v464
    %v1013 = vunpack.c.h.b16 %v464
    %v1014 = vunpack.c.l.b16 %v465
    %v1015 = vunpack.c.h.b16 %v465
    %v1016 = vunpack.c.l.b16 %v466
    %v1017 = vunpack.c.h.b16 %v466
    %v1018 = vunpack.c.l.b16 %v467
    %v1019 = vunpack.c.h.b16 %v467
    %v1020 = vunpack.c.l.b16 %v468
    %v1021 = vunpack.c.h.b16 %v468
    %v1022 = vunpack.c.l.b16 %v469
    %v1023 = vunpack.c.h.b16 %v469
    %v1024 = vunpack.c.l.b16 %v470
    %v1025 = vunpack.c.h.b16 %v470
    %v1026 = vunpack.c.l.b16 %v471
    %v1027 = vunpack.c.h.b16 %v471
    %v1028 = vunpack.c.l.b16 %v472
    %v1029 = vunpack.c.h.b16 %v472
    %v1030 = vunpack.c.l.b16 %v473
    %v1031 = vunpack.c.h.b16 %v473
    %v1032 = vunpack.c.l.b16 %v474
    %v1033 = vunpack.c.h.b16 %v474
    %v1034 = vunpack.c.l.b16 %v475
    %v1035 = vunpack.c.h.b16 %v475
    %v1036 = vunpack.c.l.b16 %v476
    %v1037 = vunpack.c.h.b16 %v476
    %v1038 = vunpack.c.l.b16 %v477
    %v1039 = vunpack.c.h.b16 %v477
    %v1040 = vunpack.c.l.b16 %v478
    %v1041 = vunpack.c.h.b16 %v478
    %v1042 = vunpack.c.l.b16 %v479
    %v1043 = vunpack.c.h.b16 %v479
    %v1044 = vunpack.c.l.b16 %v480
    %v1045 = vunpack.c.h.b16 %v480
    %v1046 = vunpack.c.l.b16 %v481
    %v1047 = vunpack.c.h.b16 %v481
    %v1048 = vunpack.c.l.b16 %v482
    %v1049 = vunpack.c.h.b16 %v482
    %v1050 = vunpack.c.l.b16 %v483
    %v1051 = vunpack.c.h.b16 %v483
    %v1052 = vunpack.c.l.b16 %v484
    %v1053 = vunpack.c.h.b16 %v484
    %v1054 = vunpack.c.l.b16 %v485
    %v1055 = vunpack.c.h.b16 %v485
    %v1056 = vunpack.c.l.b16 %v486
    %v1057 = vunpack.c.h.b16 %v486
    %v1058 = vunpack.c.l.b16 %v487
    %v1059 = vunpack.c.h.b16 %v487
    %v1060 = vunpack.c.l.b16 %v488
    %v1061 = vunpack.c.h.b16 %v488
    %v1062 = vunpack.c.l.b16 %v489
    %v1063 = vunpack.c.h.b16 %v489
    %v1064 = vunpack.c.l.b16 %v490
    %v1065 = vunpack.c.h.b16 %v490
    %v1066 = vunpack.c.l.b16 %v491
    %v1067 = vunpack.c.h.b16 %v491
    %v1068 = vunpack.c.l.b16 %v492
    %v1069 = vunpack.c.h.b16 %v492
    %v1070 = vunpack.c.l.b16 %v493
    %v1071 = vunpack.c.h.b16 %v493
    %v1072 = vunpack.c.l.b16 %v494
    %v1073 = vunpack.c.h.b16 %v494
    %v1074 = vunpack.c.l.b16 %v495
    %v1075 = vunpack.c.h.b16 %v495
    %v1076 = vunpack.c.l.b16 %v496
    %v1077 = vunpack.c.h.b16 %v496
    %v1078 = vunpack.c.l.b16 %v497
    %v1079 = vunpack.c.h.b16 %v497
    %v1080 = vunpack.c.l.b16 %v498
    %v1081 = vunpack.c.h.b16 %v498
    %v1082 = vunpack.c.l.b16 %v499
    %v1083 = vunpack.c.h.b16 %v499
    %v1084 = vunpack.c.l.b16 %v500
    %v1085 = vunpack.c.h.b16 %v500
    %v1086 = vunpack.c.l.b16 %v501
    %v1087 = vunpack.c.h.b16 %v501
    %v1088 = vunpack.c.l.b16 %v502
    %v1089 = vunpack.c.h.b16 %v502
    %v1090 = vunpack.c.l.b16 %v503
    %v1091 = vunpack.c.h.b16 %v503
    %v1092 = vunpack.c.l.b16 %v504
    %v1093 = vunpack.c.h.b16 %v504
    %v1094 = vunpack.c.l.b16 %v505
    %v1095 = vunpack.c.h.b16 %v505
    %v1096 = vunpack.c.l.b16 %v506
    %v1097 = vunpack.c.h.b16 %v506
    %v1098 = vunpack.c.l.b16 %v507
    %v1099 = vunpack.c.h.b16 %v507
    %v1100 = vunpack.c.l.b16 %v508
    %v1101 = vunpack.c.h.b16 %v508
    %v1102 = vunpack.c.l.b16 %v509
    %v1103 = vunpack.c.h.b16 %v509
    %v1104 = vunpack.c.l.b16 %v510
    %v1105 = vunpack.c.h.b16 %v510
    %v1106 = vunpack.c.l.b16 %v511
    %v1107 = vunpack.c.h.b16 %v511
    %v1108 = vunpack.c.l.b16 %v512
    %v1109 = vunpack.c.h.b16 %v512
    %v1110 = vunpack.c.l.b16 %v513
    %v1111 = vunpack.c.h.b16 %v513
    %v1112 = vunpack.c.l.b16 %v514
    %v1113 = vunpack.c.h.b16 %v514
    %v1114 = vunpack.c.l.b16 %v515
    %v1115 = vunpack.c.h.b16 %v515
    %v1116 = vunpack.c.l.b16 %v516
    %v1117 = vunpack.c.h.b16 %v516
    %v1118 = vunpack.c.l.b16 %v517
    %v1119 = vunpack.c.h.b16 %v517
    %v1120 = vunpack.c.l.b16 %v518
    %v1121 = vunpack.c.h.b16 %v518
    %v1122 = vunpack.c.l.b16 %v519
    %v1123 = vunpack.c.h.b16 %v519
    %v1124 = vunpack.c.l.b16 %v520
    %v1125 = vunpack.c.h.b16 %v520
    %v1126 = vunpack.c.l.b16 %v521
    %v1127 = vunpack.c.h.b16 %v521
    %v1128 = vunpack.c.l.b16 %v522
    %v1129 = vunpack.c.h.b16 %v522
    %v1130 = vunpack.c.l.b16 %v523
    %v1131 = vunpack.c.h.b16 %v523
    %v1132 = vunpack.c.l.b16 %v524
    %v1133 = vunpack.c.h.b16 %v524
    %v1134 = vunpack.c.l.b16 %v525
    %v1135 = vunpack.c.h.b16 %v525
    %v1136 = vunpack.c.l.b16 %v526
    %v1137 = vunpack.c.h.b16 %v526
    %v1138 = vunpack.c.l.b16 %v527
    %v1139 = vunpack.c.h.b16 %v527
    %v1140 = vunpack.c.l.b16 %v528
    %v1141 = vunpack.c.h.b16 %v528
    %v1142 = vunpack.c.l.b16 %v529
    %v1143 = vunpack.c.h.b16 %v529
    %v1144 = vunpack.c.l.b16 %v530
    %v1145 = vunpack.c.h.b16 %v530
    %v1146 = vunpack.c.l.b16 %v531
    %v1147 = vunpack.c.h.b16 %v531
    %v1148 = vunpack.c.l.b16 %v532
    %v1149 = vunpack.c.h.b16 %v532
    %v1150 = vunpack.c.l.b16 %v533
    %v1151 = vunpack.c.h.b16 %v533
    %v1152 = vunpack.c.l.b16 %v534
    %v1153 = vunpack.c.h.b16 %v534
    %v1154 = vunpack.c.l.b16 %v535
    %v1155 = vunpack.c.h.b16 %v535
    %v1156 = vunpack.c.l.b16 %v536
    %v1157 = vunpack.c.h.b16 %v536
    %v1158 = vunpack.c.l.b16 %v537
    %v1159 = vunpack.c.h.b16 %v537
    %v1160 = vunpack.c.l.b16 %v538
    %v1161 = vunpack.c.h.b16 %v538
    %v1162 = vunpack.c.l.b16 %v539
    %v1163 = vunpack.c.h.b16 %v539
    %v1164 = vunpack.c.l.b16 %v540
    %v1165 = vunpack.c.h.b16 %v540
    %v1166 = vunpack.c.l.b16 %v541
    %v1167 = vunpack.c.h.b16 %v541
    %v1168 = vunpack.c.l.b16 %v542
    %v1169 = vunpack.c.h.b16 %v542
    %v1170 = vunpack.c.l.b16 %v543
    %v1171 = vunpack.c.h.b16 %v543
    %v1172 = vunpack.c.l.b16 %v544
    %v1173 = vunpack.c.h.b16 %v544
    %v1174 = vunpack.c.l.b16 %v545
    %v1175 = vunpack.c.h.b16 %v545
    %v1176 = vunpack.c.l.b16 %v546
    %v1177 = vunpack.c.h.b16 %v546
    %v1178 = vunpack.c.l.b16 %v547
    %v1179 = vunpack.c.h.b16 %v547
    %v1180 = vunpack.c.l.b16 %v548
    %v1181 = vunpack.c.h.b16 %v548
    %v1182 = vunpack.c.l.b16 %v549
    %v1183 = vunpack.c.h.b16 %v549
    %v1184 = vunpack.c.l.b16 %v550
    %v1185 = vunpack.c.h.b16 %v550
    %v1186 = vunpack.c.l.b16 %v551
    %v1187 = vunpack.c.h.b16 %v551
    %v1188 = vunpack.c.l.b16 %v552
    %v1189 = vunpack.c.h.b16 %v552
    %v1190 = vunpack.c.l.b16 %v553
    %v1191 = vunpack.c.h.b16 %v553
    %v1192 = vunpack.c.l.b16 %v554
    %v1193 = vunpack.c.h.b16 %v554
    %v1194 = vunpack.c.l.b16 %v555
    %v1195 = vunpack.c.h.b16 %v555
    %v1196 = vunpack.c.l.b16 %v556
    %v1197 = vunpack.c.h.b16 %v556
    %v1198 = vunpack.c.l.b16 %v557
    %v1199 = vunpack.c.h.b16 %v557
    %v1200 = vunpack.c.l.b16 %v558
    %v1201 = vunpack.c.h.b16 %v558
    %v1202 = vunpack.c.l.b16 %v559
    %v1203 = vunpack.c.h.b16 %v559
    %v1204 = vunpack.c.l.b16 %v560
    %v1205 = vunpack.c.h.b16 %v560
    %v1206 = vunpack.c.l.b16 %v561
    %v1207 = vunpack.c.h.b16 %v561
    %v1208 = vunpack.c.l.b16 %v562
    %v1209 = vunpack.c.h.b16 %v562
    %v1210 = vunpack.c.l.b16 %v563
    %v1211 = vunpack.c.h.b16 %v563
    %v1212 = vunpack.c.l.b16 %v564
    %v1213 = vunpack.c.h.b16 %v564
    %v1214 = vunpack.c.l.b16 %v565
    %v1215 = vunpack.c.h.b16 %v565
    %v1216 = vunpack.c.l.b16 %v566
    %v1217 = vunpack.c.h.b16 %v566
    %v1218 = vunpack.c.l.b16 %v567
    %v1219 = vunpack.c.h.b16 %v567
    %v1220 = vunpack.c.l.b16 %v568
    %v1221 = vunpack.c.h.b16 %v568
    %v1222 = vunpack.c.l.b16 %v569
    %v1223 = vunpack.c.h.b16 %v569
    %v1224 = vunpack.c.l.b16 %v570
    %v1225 = vunpack.c.h.b16 %v570
    %v1226 = vunpack.c.l.b16 %v571
    %v1227 = vunpack.c.h.b16 %v571
    %v1228 = vunpack.c.l.b16 %v572
    %v1229 = vunpack.c.h.b16 %v572
    %v1230 = vunpack.c.l.b16 %v573
    %v1231 = vunpack.c.h.b16 %v573
    %v1232 = vunpack.c.l.b16 %v574
    %v1233 = vunpack.c.h.b16 %v574
    %v1234 = vunpack.c.l.b16 %v575
    %v1235 = vunpack.c.h.b16 %v575
    %v1236 = vunpack.c.l.b16 %v576
    %v1237 = vunpack.c.h.b16 %v576
    %v1238 = vunpack.c.l.b16 %v577
    %v1239 = vunpack.c.h.b16 %v577
    %v1240 = vunpack.c.l.b16 %v578
    %v1241 = vunpack.c.h.b16 %v578
    %v1242 = vunpack.c.l.b16 %v579
    %v1243 = vunpack.c.h.b16 %v579
    %v1244 = vunpack.c.l.b16 %v580
    %v1245 = vunpack.c.h.b16 %v580
    %v1246 = vunpack.c.l.b16 %v581
    %v1247 = vunpack.c.h.b16 %v581
    %v1248 = vunpack.c.l.b16 %v582
    %v1249 = vunpack.c.h.b16 %v582
    %v1250 = vunpack.c.l.b16 %v583
    %v1251 = vunpack.c.h.b16 %v583
    %v1252 = vunpack.c.l.b16 %v584
    %v1253 = vunpack.c.h.b16 %v584
    %v1254 = vunpack.c.l.b16 %v585
    %v1255 = vunpack.c.h.b16 %v585
    %v1256 = vunpack.c.l.b16 %v586
    %v1257 = vunpack.c.h.b16 %v586
    %v1258 = vunpack.c.l.b16 %v587
    %v1259 = vunpack.c.h.b16 %v587
    %v1260 = vunpack.c.l.b16 %v588
    %v1261 = vunpack.c.h.b16 %v588
    %v1262 = vunpack.c.l.b16 %v589
    %v1263 = vunpack.c.h.b16 %v589
    %v1264 = vunpack.c.l.b16 %v590
    %v1265 = vunpack.c.h.b16 %v590
    %v1266 = vunpack.c.l.b16 %v591
    %v1267 = vunpack.c.h.b16 %v591
    %v1268 = vunpack.c.l.b16 %v592
    %v1269 = vunpack.c.h.b16 %v592
    %v1270 = vunpack.c.l.b16 %v593
    %v1271 = vunpack.c.h.b16 %v593
    %v1272 = vunpack.c.l.b16 %v594
    %v1273 = vunpack.c.h.b16 %v594
    %v1274 = vunpack.c.l.b16 %v595
    %v1275 = vunpack.c.h.b16 %v595
    %v1276 = vunpack.c.l.b16 %v596
    %v1277 = vunpack.c.h.b16 %v596
    %v1278 = vunpack.c.l.b16 %v597
    %v1279 = vunpack.c.h.b16 %v597
    %v1280 = vunpack.c.l.b16 %v598
    %v1281 = vunpack.c.h.b16 %v598
    %v1282 = vunpack.c.l.b16 %v599
    %v1283 = vunpack.c.h.b16 %v599
    %v1284 = vunpack.c.l.b16 %v600
    %v1285 = vunpack.c.h.b16 %v600
    %v1286 = vunpack.c.l.b16 %v601
    %v1287 = vunpack.c.h.b16 %v601
    %v1288 = vunpack.c.l.b16 %v602
    %v1289 = vunpack.c.h.b16 %v602
    %v1290 = vunpack.c.l.b16 %v603
    %v1291 = vunpack.c.h.b16 %v603
    %v1292 = vunpack.c.l.b16 %v604
    %v1293 = vunpack.c.h.b16 %v604
    %v1294 = vunpack.c.l.b16 %v605
    %v1295 = vunpack.c.h.b16 %v605
    %v1296 = vunpack.c.l.b16 %v606
    %v1297 = vunpack.c.h.b16 %v606
    %v1298 = vunpack.c.l.b16 %v607
    %v1299 = vunpack.c.h.b16 %v607
    %v1300 = vunpack.c.l.b16 %v608
    %v1301 = vunpack.c.h.b16 %v608
    %v1302 = vunpack.c.l.b16 %v609
    %v1303 = vunpack.c.h.b16 %v609
    %v1304 = vunpack.c.l.b16 %v610
    %v1305 = vunpack.c.h.b16 %v610
    %v1306 = vunpack.c.l.b16 %v611
    %v1307 = vunpack.c.h.b16 %v611
    %v1308 = vunpack.c.l.b16 %v612
    %v1309 = vunpack.c.h.b16 %v612
    %v1310 = vunpack.c.l.b16 %v613
    %v1311 = vunpack.c.h.b16 %v613
    %v1312 = vunpack.c.l.b16 %v614
    %v1313 = vunpack.c.h.b16 %v614
    %v1314 = vunpack.c.l.b16 %v615
    %v1315 = vunpack.c.h.b16 %v615
    %v1316 = vunpack.c.l.b16 %v616
    %v1317 = vunpack.c.h.b16 %v616
    %v1318 = vunpack.c.l.b16 %v617
    %v1319 = vunpack.c.h.b16 %v617
    %v1320 = vunpack.c.l.b16 %v618
    %v1321 = vunpack.c.h.b16 %v618
    %v1322 = vunpack.c.l.b16 %v619
    %v1323 = vunpack.c.h.b16 %v619
    %v1324 = vunpack.c.l.b16 %v620
    %v1325 = vunpack.c.h.b16 %v620
    %v1326 = vunpack.c.l.b16 %v621
    %v1327 = vunpack.c.h.b16 %v621
    %v1328 = vunpack.c.l.b16 %v622
    %v1329 = vunpack.c.h.b16 %v622
    %v1330 = vunpack.c.l.b16 %v623
    %v1331 = vunpack.c.h.b16 %v623
    %v1332 = vunpack.c.l.b16 %v624
    %v1333 = vunpack.c.h.b16 %v624
    %v1334 = vunpack.c.l.b16 %v625
    %v1335 = vunpack.c.h.b16 %v625
    %v1336 = vunpack.c.l.b16 %v626
    %v1337 = vunpack.c.h.b16 %v626
    %v1338 = vunpack.c.l.b16 %v627
    %v1339 = vunpack.c.h.b16 %v627
    %v1340 = vunpack.c.l.b16 %v628
    %v1341 = vunpack.c.h.b16 %v628
    %v1342 = vunpack.c.l.b16 %v629
    %v1343 = vunpack.c.h.b16 %v629
    %v1344 = vunpack.c.l.b16 %v630
    %v1345 = vunpack.c.h.b16 %v630
    %v1346 = vunpack.c.l.b16 %v631
    %v1347 = vunpack.c.h.b16 %v631
    %v1348 = vunpack.c.l.b16 %v632
    %v1349 = vunpack.c.h.b16 %v632
    %v1350 = vunpack.c.l.b16 %v633
    %v1351 = vunpack.c.h.b16 %v633
    %v1352 = vunpack.c.l.b16 %v634
    %v1353 = vunpack.c.h.b16 %v634
    %v1354 = vunpack.c.l.b16 %v635
    %v1355 = vunpack.c.h.b16 %v635
    %v1356 = vunpack.c.l.b16 %v636
    %v1357 = vunpack.c.h.b16 %v636
    %v1358 = vunpack.c.l.b16 %v637
    %v1359 = vunpack.c.h.b16 %v637
    %v1360 = vunpack.c.l.b16 %v638
    %v1361 = vunpack.c.h.b16 %v638
    %v1362 = vunpack.c.l.b16 %v639
    %v1363 = vunpack.c.h.b16 %v639
    %v1364 = vunpack.c.l.b16 %v640
    %v1365 = vunpack.c.h.b16 %v640
    %v1366 = vunpack.c.l.b16 %v641
    %v1367 = vunpack.c.h.b16 %v641
    %v1368 = vunpack.c.l.b16 %v642
    %v1369 = vunpack.c.h.b16 %v642
    %v1370 = vunpack.c.l.b16 %v643
    %v1371 = vunpack.c.h.b16 %v643
    %v1372 = vunpack.c.l.b16 %v644
    %v1373 = vunpack.c.h.b16 %v644
    %v1374 = vunpack.c.l.b16 %v645
    %v1375 = vunpack.c.h.b16 %v645
    %v1376 = vunpack.c.l.b16 %v646
    %v1377 = vunpack.c.h.b16 %v646
    %v1378 = vunpack.c.l.b16 %v647
    %v1379 = vunpack.c.h.b16 %v647
    %v1380 = vunpack.c.l.b16 %v648
    %v1381 = vunpack.c.h.b16 %v648
    %v1382 = vunpack.c.l.b16 %v649
    %v1383 = vunpack.c.h.b16 %v649
    %v1384 = vunpack.c.l.b16 %v650
    %v1385 = vunpack.c.h.b16 %v650
    %v1386 = vunpack.c.l.b16 %v651
    %v1387 = vunpack.c.h.b16 %v651
    %v1388 = vunpack.c.l.b16 %v652
    %v1389 = vunpack.c.h.b16 %v652
    %v1390 = vunpack.c.l.b16 %v653
    %v1391 = vunpack.c.h.b16 %v653
    %v1392 = vunpack.c.l.b16 %v654
    %v1393 = vunpack.c.h.b16 %v654
    %v1394 = vunpack.c.l.b16 %v655
    %v1395 = vunpack.c.h.b16 %v655
    %v1396 = vunpack.c.l.b16 %v656
    %v1397 = vunpack.c.h.b16 %v656
    %v1398 = vunpack.c.l.b16 %v657
    %v1399 = vunpack.c.h.b16 %v657
    %v1400 = vunpack.c.l.b16 %v658
    %v1401 = vunpack.c.h.b16 %v658
    %v1402 = vunpack.c.l.b16 %v659
    %v1403 = vunpack.c.h.b16 %v659
    %v1404 = vunpack.c.l.b16 %v660
    %v1405 = vunpack.c.h.b16 %v660
    %v1406 = vunpack.c.l.b16 %v661
    %v1407 = vunpack.c.h.b16 %v661
    %v1408 = vunpack.c.l.b16 %v662
    %v1409 = vunpack.c.h.b16 %v662
    %v1410 = vunpack.c.l.b16 %v663
    %v1411 = vunpack.c.h.b16 %v663
    %v1412 = vunpack.c.l.b16 %v664
    %v1413 = vunpack.c.h.b16 %v664
    %v1414 = vunpack.c.l.b16 %v665
    %v1415 = vunpack.c.h.b16 %v665
    %v1416 = vunpack.c.l.b16 %v666
    %v1417 = vunpack.c.h.b16 %v666
    %v1418 = vunpack.c.l.b16 %v667
    %v1419 = vunpack.c.h.b16 %v667
    %v1420 = vunpack.c.l.b16 %v668
    %v1421 = vunpack.c.h.b16 %v668
    %v1422 = vunpack.c.l.b16 %v669
    %v1423 = vunpack.c.h.b16 %v669
    %v1424 = vunpack.c.l.b16 %v670
    %v1425 = vunpack.c.h.b16 %v670
    %v1426 = vunpack.c.l.b16 %v671
    %v1427 = vunpack.c.h.b16 %v671
    %v1428 = vunpack.c.l.b16 %v672
    %v1429 = vunpack.c.h.b16 %v672
    %v1430 = vunpack.c.l.b16 %v673
    %v1431 = vunpack.c.h.b16 %v673
    %v1432 = vunpack.c.l.b16 %v674
    %v1433 = vunpack.c.h.b16 %v674
    %v1434 = vunpack.c.l.b16 %v675
    %v1435 = vunpack.c.h.b16 %v675
    %v1436 = vunpack.c.l.b16 %v676
    %v1437 = vunpack.c.h.b16 %v676
    %v1438 = vunpack.c.l.b16 %v677
    %v1439 = vunpack.c.h.b16 %v677
    %v1440 = vunpack.c.l.b16 %v678
    %v1441 = vunpack.c.h.b16 %v678
    %v1442 = vunpack.c.l.b16 %v679
    %v1443 = vunpack.c.h.b16 %v679
    %v1444 = vunpack.c.l.b16 %v680
    %v1445 = vunpack.c.h.b16 %v680
    %v1446 = vunpack.c.l.b16 %v681
    %v1447 = vunpack.c.h.b16 %v681
    %v1448 = vunpack.c.l.b16 %v682
    %v1449 = vunpack.c.h.b16 %v682
    %v1450 = vunpack.c.l.b16 %v683
    %v1451 = vunpack.c.h.b16 %v683
    %v1452 = vpack.c.b16 %v944, %v940
    %v1453 = vpack.c.b16 %v945, %v941
    %v1454 = vpack.c.b16 %v946, %v942
    %v1455 = vpack.c.b16 %v947, %v943
    %v1456 = vpack.c.b16 %v952, %v948
    %v1457 = vpack.c.b16 %v953, %v949
    %v1458 = vpack.c.b16 %v954, %v950
    %v1459 = vpack.c.b16 %v955, %v951
    %v1460 = vpack.c.b16 %v960, %v956
    %v1461 = vpack.c.b16 %v961, %v957
    %v1462 = vpack.c.b16 %v962, %v958
    %v1463 = vpack.c.b16 %v963, %v959
    %v1464 = vpack.c.b16 %v968, %v964
    %v1465 = vpack.c.b16 %v969, %v965
    %v1466 = vpack.c.b16 %v970, %v966
    %v1467 = vpack.c.b16 %v971, %v967
    %v1468 = vpack.c.b16 %v976, %v972
    %v1469 = vpack.c.b16 %v977, %v973
    %v1470 = vpack.c.b16 %v978, %v974
    %v1471 = vpack.c.b16 %v979, %v975
    %v1472 = vpack.c.b16 %v984, %v980
    %v1473 = vpack.c.b16 %v985, %v981
    %v1474 = vpack.c.b16 %v986, %v982
    %v1475 = vpack.c.b16 %v987, %v983
    %v1476 = vpack.c.b16 %v992, %v988
    %v1477 = vpack.c.b16 %v993, %v989
    %v1478 = vpack.c.b16 %v994, %v990
    %v1479 = vpack.c.b16 %v995, %v991
    %v1480 = vpack.c.b16 %v1000, %v996
    %v1481 = vpack.c.b16 %v1001, %v997
    %v1482 = vpack.c.b16 %v1002, %v998
    %v1483 = vpack.c.b16 %v1003, %v999
    %v1484 = vpack.c.b16 %v1008, %v1004
    %v1485 = vpack.c.b16 %v1009, %v1005
    %v1486 = vpack.c.b16 %v1010, %v1006
    %v1487 = vpack.c.b16 %v1011, %v1007
    %v1488 = vpack.c.b16 %v1016, %v1012
    %v1489 = vpack.c.b16 %v1017, %v1013
    %v1490 = vpack.c.b16 %v1018, %v1014
    %v1491 = vpack.c.b16 %v1019, %v1015
    %v1492 = vpack.c.b16 %v1024, %v1020
    %v1493 = vpack.c.b16 %v1025, %v1021
    %v1494 = vpack.c.b16 %v1026, %v1022
    %v1495 = vpack.c.b16 %v1027, %v1023
    %v1496 = vpack.c.b16 %v1032, %v1028
    %v1497 = vpack.c.b16 %v1033, %v1029
    %v1498 = vpack.c.b16 %v1034, %v1030
    %v1499 = vpack.c.b16 %v1035, %v1031
    %v1500 = vpack.c.b16 %v1040, %v1036
    %v1501 = vpack.c.b16 %v1041, %v1037
    %v1502 = vpack.c.b16 %v1042, %v1038
    %v1503 = vpack.c.b16 %v1043, %v1039
    %v1504 = vpack.c.b16 %v1048, %v1044
    %v1505 = vpack.c.b16 %v1049, %v1045
    %v1506 = vpack.c.b16 %v1050, %v1046
    %v1507 = vpack.c.b16 %v1051, %v1047
    %v1508 = vpack.c.b16 %v1056, %v1052
    %v1509 = vpack.c.b16 %v1057, %v1053
    %v1510 = vpack.c.b16 %v1058, %v1054
    %v1511 = vpack.c.b16 %v1059, %v1055
    %v1512 = vpack.c.b16 %v1064, %v1060
    %v1513 = vpack.c.b16 %v1065, %v1061
    %v1514 = vpack.c.b16 %v1066, %v1062
    %v1515 = vpack.c.b16 %v1067, %v1063
    %v1516 = vpack.c.b16 %v1072, %v1068
    %v1517 = vpack.c.b16 %v1073, %v1069
    %v1518 = vpack.c.b16 %v1074, %v1070
    %v1519 = vpack.c.b16 %v1075, %v1071
    %v1520 = vpack.c.b16 %v1080, %v1076
    %v1521 = vpack.c.b16 %v1081, %v1077
    %v1522 = vpack.c.b16 %v1082, %v1078
    %v1523 = vpack.c.b16 %v1083, %v1079
    %v1524 = vpack.c.b16 %v1088, %v1084
    %v1525 = vpack.c.b16 %v1089, %v1085
    %v1526 = vpack.c.b16 %v1090, %v1086
    %v1527 = vpack.c.b16 %v1091, %v1087
    %v1528 = vpack.c.b16 %v1096, %v1092
    %v1529 = vpack.c.b16 %v1097, %v1093
    %v1530 = vpack.c.b16 %v1098, %v1094
    %v1531 = vpack.c.b16 %v1099, %v1095
    %v1532 = vpack.c.b16 %v1104, %v1100
    %v1533 = vpack.c.b16 %v1105, %v1101
    %v1534 = vpack.c.b16 %v1106, %v1102
    %v1535 = vpack.c.b16 %v1107, %v1103
    %v1536 = vpack.c.b16 %v1112, %v1108
    %v1537 = vpack.c.b16 %v1113, %v1109
    %v1538 = vpack.c.b16 %v1114, %v1110
    %v1539 = vpack.c.b16 %v1115, %v1111
    %v1540 = vpack.c.b16 %v1120, %v1116
    %v1541 = vpack.c.b16 %v1121, %v1117
    %v1542 = vpack.c.b16 %v1122, %v1118
    %v1543 = vpack.c.b16 %v1123, %v1119
    %v1544 = vpack.c.b16 %v1128, %v1124
    %v1545 = vpack.c.b16 %v1129, %v1125
    %v1546 = vpack.c.b16 %v1130, %v1126
    %v1547 = vpack.c.b16 %v1131, %v1127
    %v1548 = vpack.c.b16 %v1136, %v1132
    %v1549 = vpack.c.b16 %v1137, %v1133
    %v1550 = vpack.c.b16 %v1138, %v1134
    %v1551 = vpack.c.b16 %v1139, %v1135
    %v1552 = vpack.c.b16 %v1144, %v1140
    %v1553 = vpack.c.b16 %v1145, %v1141
    %v1554 = vpack.c.b16 %v1146, %v1142
    %v1555 = vpack.c.b16 %v1147, %v1143
    %v1556 = vpack.c.b16 %v1152, %v1148
    %v1557 = vpack.c.b16 %v1153, %v1149
    %v1558 = vpack.c.b16 %v1154, %v1150
    %v1559 = vpack.c.b16 %v1155, %v1151
    %v1560 = vpack.c.b16 %v1160, %v1156
    %v1561 = vpack.c.b16 %v1161, %v1157
    %v1562 = vpack.c.b16 %v1162, %v1158
    %v1563 = vpack.c.b16 %v1163, %v1159
    %v1564 = vpack.c.b16 %v1168, %v1164
    %v1565 = vpack.c.b16 %v1169, %v1165
    %v1566 = vpack.c.b16 %v1170, %v1166
    %v1567 = vpack.c.b16 %v1171, %v1167
    %v1568 = vpack.c.b16 %v1176, %v1172
    %v1569 = vpack.c.b16 %v1177, %v1173
    %v1570 = vpack.c.b16 %v1178, %v1174
    %v1571 = vpack.c.b16 %v1179, %v1175
    %v1572 = vpack.c.b16 %v1184, %v1180
    %v1573 = vpack.c.b16 %v1185, %v1181
    %v1574 = vpack.c.b16 %v1186, %v1182
    %v1575 = vpack.c.b16 %v1187, %v1183
    %v1576 = vpack.c.b16 %v1192, %v1188
    %v1577 = vpack.c.b16 %v1193, %v1189
    %v1578 = vpack.c.b16 %v1194, %v1190
    %v1579 = vpack.c.b16 %v1195, %v1191
    %v1580 = vpack.c.b16 %v1200, %v1196
    %v1581 = vpack.c.b16 %v1201, %v1197
    %v1582 = vpack.c.b16 %v1202, %v1198
    %v1583 = vpack.c.b16 %v1203, %v1199
    %v1584 = vpack.c.b16 %v1208, %v1204
    %v1585 = vpack.c.b16 %v1209, %v1205
    %v1586 = vpack.c.b16 %v1210, %v1206
    %v1587 = vpack.c.b16 %v1211, %v1207
    %v1588 = vpack.c.b16 %v1216, %v1212
    %v1589 = vpack.c.b16 %v1217, %v1213
    %v1590 = vpack.c.b16 %v1218, %v1214
    %v1591 = vpack.c.b16 %v1219, %v1215
    %v1592 = vpack.c.b16 %v1224, %v1220
    %v1593 = vpack.c.b16 %v1225, %v1221
    %v1594 = vpack.c.b16 %v1226, %v1222
    %v1595 = vpack.c.b16 %v1227, %v1223
    %v1596 = vpack.c.b16 %v1232, %v1228
    %v1597 = vpack.c.b16 %v1233, %v1229
    %v1598 = vpack.c.b16 %v1234, %v1230
    %v1599 = vpack.c.b16 %v1235, %v1231
    %v1600 = vpack.c.b16 %v1240, %v1236
    %v1601 = vpack.c.b16 %v1241, %v1237
    %v1602 = vpack.c.b16 %v1242, %v1238
    %v1603 = vpack.c.b16 %v1243, %v1239
    %v1604 = vpack.c.b16 %v1248, %v1244
    %v1605 = vpack.c.b16 %v1249, %v1245
    %v1606 = vpack.c.b16 %v1250, %v1246
    %v1607 = vpack.c.b16 %v1251, %v1247
    %v1608 = vpack.c.b16 %v1256, %v1252
    %v1609 = vpack.c.b16 %v1257, %v1253
    %v1610 = vpack.c.b16 %v1258, %v1254
    %v1611 = vpack.c.b16 %v1259, %v1255
    %v1612 = vpack.c.b16 %v1264, %v1260
    %v1613 = vpack.c.b16 %v1265, %v1261
    %v1614 = vpack.c.b16 %v1266, %v1262
    %v1615 = vpack.c.b16 %v1267, %v1263
    %v1616 = vpack.c.b16 %v1272, %v1268
    %v1617 = vpack.c.b16 %v1273, %v1269
    %v1618 = vpack.c.b16 %v1274, %v1270
    %v1619 = vpack.c.b16 %v1275, %v1271
    %v1620 = vpack.c.b16 %v1280, %v1276
    %v1621 = vpack.c.b16 %v1281, %v1277
    %v1622 = vpack.c.b16 %v1282, %v1278
    %v1623 = vpack.c.b16 %v1283, %v1279
    %v1624 = vpack.c.b16 %v1288, %v1284
    %v1625 = vpack.c.b16 %v1289, %v1285
    %v1626 = vpack.c.b16 %v1290, %v1286
    %v1627 = vpack.c.b16 %v1291, %v1287
    %v1628 = vpack.c.b16 %v1296, %v1292
    %v1629 = vpack.c.b16 %v1297, %v1293
    %v1630 = vpack.c.b16 %v1298, %v1294
    %v1631 = vpack.c.b16 %v1299, %v1295
    %v1632 = vpack.c.b16 %v1304, %v1300
    %v1633 = vpack.c.b16 %v1305, %v1301
    %v1634 = vpack.c.b16 %v1306, %v1302
    %v1635 = vpack.c.b16 %v1307, %v1303
    %v1636 = vpack.c.b16 %v1312, %v1308
    %v1637 = vpack.c.b16 %v1313, %v1309
    %v1638 = vpack.c.b16 %v1314, %v1310
    %v1639 = vpack.c.b16 %v1315, %v1311
    %v1640 = vpack.c.b16 %v1320, %v1316
    %v1641 = vpack.c.b16 %v1321, %v1317
    %v1642 = vpack.c.b16 %v1322, %v1318
    %v1643 = vpack.c.b16 %v1323, %v1319
    %v1644 = vpack.c.b16 %v1328, %v1324
    %v1645 = vpack.c.b16 %v1329, %v1325
    %v1646 = vpack.c.b16 %v1330, %v1326
    %v1647 = vpack.c.b16 %v1331, %v1327
    %v1648 = vpack.c.b16 %v1336, %v1332
    %v1649 = vpack.c.b16 %v1337, %v1333
    %v1650 = vpack.c.b16 %v1338, %v1334
    %v1651 = vpack.c.b16 %v1339, %v1335
    %v1652 = vpack.c.b16 %v1344, %v1340
    %v1653 = vpack.c.b16 %v1345, %v1341
    %v1654 = vpack.c.b16 %v1346, %v1342
    %v1655 = vpack.c.b16 %v1347, %v1343
    %v1656 = vpack.c.b16 %v1352, %v1348
    %v1657 = vpack.c.b16 %v1353, %v1349
    %v1658 = vpack.c.b16 %v1354, %v1350
    %v1659 = vpack.c.b16 %v1355, %v1351
    %v1660 = vpack.c.b16 %v1360, %v1356
    %v1661 = vpack.c.b16 %v1361, %v1357
    %v1662 = vpack.c.b16 %v1362, %v1358
    %v1663 = vpack.c.b16 %v1363, %v1359
    %v1664 = vpack.c.b16 %v1368, %v1364
    %v1665 = vpack.c.b16 %v1369, %v1365
    %v1666 = vpack.c.b16 %v1370, %v1366
    %v1667 = vpack.c.b16 %v1371, %v1367
    %v1668 = vpack.c.b16 %v1376, %v1372
    %v1669 = vpack.c.b16 %v1377, %v1373
    %v1670 = vpack.c.b16 %v1378, %v1374
    %v1671 = vpack.c.b16 %v1379, %v1375
    %v1672 = vpack.c.b16 %v1384, %v1380
    %v1673 = vpack.c.b16 %v1385, %v1381
    %v1674 = vpack.c.b16 %v1386, %v1382
    %v1675 = vpack.c.b16 %v1387, %v1383
    %v1676 = vpack.c.b16 %v1392, %v1388
    %v1677 = vpack.c.b16 %v1393, %v1389
    %v1678 = vpack.c.b16 %v1394, %v1390
    %v1679 = vpack.c.b16 %v1395, %v1391
    %v1680 = vpack.c.b16 %v1400, %v1396
    %v1681 = vpack.c.b16 %v1401, %v1397
    %v1682 = vpack.c.b16 %v1402, %v1398
    %v1683 = vpack.c.b16 %v1403, %v1399
    %v1684 = vpack.c.b16 %v1408, %v1404
    %v1685 = vpack.c.b16 %v1409, %v1405
    %v1686 = vpack.c.b16 %v1410, %v1406
    %v1687 = vpack.c.b16 %v1411, %v1407
    %v1688 = vpack.c.b16 %v1416, %v1412
    %v1689 = vpack.c.b16 %v1417, %v1413
    %v1690 = vpack.c.b16 %v1418, %v1414
    %v1691 = vpack.c.b16 %v1419, %v1415
    %v1692 = vpack.c.b16 %v1424, %v1420
    %v1693 = vpack.c.b16 %v1425, %v1421
    %v1694 = vpack.c.b16 %v1426, %v1422
    %v1695 = vpack.c.b16 %v1427, %v1423
    %v1696 = vpack.c.b16 %v1432, %v1428
    %v1697 = vpack.c.b16 %v1433, %v1429
    %v1698 = vpack.c.b16 %v1434, %v1430
    %v1699 = vpack.c.b16 %v1435, %v1431
    %v1700 = vpack.c.b16 %v1440, %v1436
    %v1701 = vpack.c.b16 %v1441, %v1437
    %v1702 = vpack.c.b16 %v1442, %v1438
    %v1703 = vpack.c.b16 %v1443, %v1439
    %v1704 = vpack.c.b16 %v1448, %v1444
    %v1705 = vpack.c.b16 %v1449, %v1445
    %v1706 = vpack.c.b16 %v1450, %v1446
    %v1707 = vpack.c.b16 %v1451, %v1447
    %1964 = vmatprep.subr.bf16.mxu0 %v1481
    %1965 = vmatpush1.bf16.msra.mxu0 %v1480
    %1966 = vmatprep.subr.bf16.mxu0 %v1477
    %1967 = vmatpush1.bf16.msra.mxu0 %v1476
    %1968 = vmatprep.subr.bf16.mxu0 %v1473
    %1969 = vmatpush1.bf16.msra.mxu0 %v1472
    %1970 = vmatprep.subr.bf16.mxu0 %v1469
    %1971 = vmatpush1.bf16.msra.mxu0 %v1468
    %1972 = vmatprep.subr.bf16.mxu0 %v1465
    %1973 = vmatpush1.bf16.msra.mxu0 %v1464
    %1974 = vmatprep.subr.bf16.mxu0 %v1461
    %1975 = vmatpush1.bf16.msra.mxu0 %v1460
    %1976 = vmatprep.subr.bf16.mxu0 %v1457
    %1977 = vmatpush1.bf16.msra.mxu0 %v1456
    %1978 = vmatprep.subr.bf16.mxu0 %v1453
    %1979 = vmatpush1.bf16.msra.mxu0 %v1452
    %1980 = vmatprep.subr.bf16.mxu0 %v1513
    %1981 = vmatpush2.bf16.msra.mxu0 %v1512
    %1982 = vmatprep.subr.bf16.mxu0 %v1509
    %1983 = vmatpush2.bf16.msra.mxu0 %v1508
    %1984 = vmatprep.subr.bf16.mxu0 %v1505
    %1985 = vmatpush2.bf16.msra.mxu0 %v1504
    %1986 = vmatprep.subr.bf16.mxu0 %v1501
    %1987 = vmatpush2.bf16.msra.mxu0 %v1500
    %1988 = vmatprep.subr.bf16.mxu0 %v1497
    %1989 = vmatpush2.bf16.msra.mxu0 %v1496
    %1990 = vmatprep.subr.bf16.mxu0 %v1493
    %1991 = vmatpush2.bf16.msra.mxu0 %v1492
    %1992 = vmatprep.subr.bf16.mxu0 %v1489
    %1993 = vmatpush2.bf16.msra.mxu0 %v1488
    %1994 = vmatprep.subr.bf16.mxu0 %v1485
    %1995 = vmatpush2.bf16.msra.mxu0 %v1484
    %1996 = vmatprep.mubr.bf16.mxu0 %v421
    %1997 = vmatmul.mubr.bf16.gmra.mxu0 %v420
    %v1998 = vpop.f32.mrf.mxu0
    %v1999 = vadd.f32 0.0, %v1998
    %v2000 = vpop.f32.mrf.mxu0
    %v2001 = vadd.f32 0.0, %v2000
    %v2002 = vpop.f32.mrf.mxu0
    %v2003 = vpop.f32.mrf.mxu0
    %2004 = vdwg.mxu0
    %2005 = vmatprep.subr.bf16.mxu0 %v1545
    %2006 = vmatpush1.bf16.msra.mxu0 %v1544
    %2007 = vmatprep.subr.bf16.mxu0 %v1541
    %2008 = vmatpush1.bf16.msra.mxu0 %v1540
    %2009 = vmatprep.subr.bf16.mxu0 %v1537
    %2010 = vmatpush1.bf16.msra.mxu0 %v1536
    %2011 = vmatprep.subr.bf16.mxu0 %v1533
    %2012 = vmatpush1.bf16.msra.mxu0 %v1532
    %2013 = vmatprep.subr.bf16.mxu0 %v1529
    %2014 = vmatpush1.bf16.msra.mxu0 %v1528
    %2015 = vmatprep.subr.bf16.mxu0 %v1525
    %2016 = vmatpush1.bf16.msra.mxu0 %v1524
    %2017 = vmatprep.subr.bf16.mxu0 %v1521
    %2018 = vmatpush1.bf16.msra.mxu0 %v1520
    %2019 = vmatprep.subr.bf16.mxu0 %v1517
    %2020 = vmatpush1.bf16.msra.mxu0 %v1516
    %2021 = vmatprep.subr.bf16.mxu0 %v1577
    %2022 = vmatpush2.bf16.msra.mxu0 %v1576
    %2023 = vmatprep.subr.bf16.mxu0 %v1573
    %2024 = vmatpush2.bf16.msra.mxu0 %v1572
    %2025 = vmatprep.subr.bf16.mxu0 %v1569
    %2026 = vmatpush2.bf16.msra.mxu0 %v1568
    %2027 = vmatprep.subr.bf16.mxu0 %v1565
    %2028 = vmatpush2.bf16.msra.mxu0 %v1564
    %2029 = vmatprep.subr.bf16.mxu0 %v1561
    %2030 = vmatpush2.bf16.msra.mxu0 %v1560
    %2031 = vmatprep.subr.bf16.mxu0 %v1557
    %2032 = vmatpush2.bf16.msra.mxu0 %v1556
    %2033 = vmatprep.subr.bf16.mxu0 %v1553
    %2034 = vmatpush2.bf16.msra.mxu0 %v1552
    %2035 = vmatprep.subr.bf16.mxu0 %v1549
    %2036 = vmatpush2.bf16.msra.mxu0 %v1548
    %2037 = vmatprep.mubr.bf16.mxu0 %v423
    %2038 = vmatmul.mubr.bf16.gmra.mxu0 %v422
    %v2039 = vpop.f32.mrf.mxu0
    %v2040 = vadd.f32 %v1999, %v2039
    %v2041 = vpop.f32.mrf.mxu0
    %v2042 = vadd.f32 %v2001, %v2041
    %v2043 = vpop.f32.mrf.mxu0
    %v2044 = vpop.f32.mrf.mxu0
    %2045 = vdwg.mxu0
    %2046 = vmatprep.subr.bf16.mxu0 %v1609
    %2047 = vmatpush1.bf16.msra.mxu0 %v1608
    %2048 = vmatprep.subr.bf16.mxu0 %v1605
    %2049 = vmatpush1.bf16.msra.mxu0 %v1604
    %2050 = vmatprep.subr.bf16.mxu0 %v1601
    %2051 = vmatpush1.bf16.msra.mxu0 %v1600
    %2052 = vmatprep.subr.bf16.mxu0 %v1597
    %2053 = vmatpush1.bf16.msra.mxu0 %v1596
    %2054 = vmatprep.subr.bf16.mxu0 %v1593
    %2055 = vmatpush1.bf16.msra.mxu0 %v1592
    %2056 = vmatprep.subr.bf16.mxu0 %v1589
    %2057 = vmatpush1.bf16.msra.mxu0 %v1588
    %2058 = vmatprep.subr.bf16.mxu0 %v1585
    %2059 = vmatpush1.bf16.msra.mxu0 %v1584
    %2060 = vmatprep.subr.bf16.mxu0 %v1581
    %2061 = vmatpush1.bf16.msra.mxu0 %v1580
    %2062 = vmatprep.subr.bf16.mxu0 %v1641
    %2063 = vmatpush2.bf16.msra.mxu0 %v1640
    %2064 = vmatprep.subr.bf16.mxu0 %v1637
    %2065 = vmatpush2.bf16.msra.mxu0 %v1636
    %2066 = vmatprep.subr.bf16.mxu0 %v1633
    %2067 = vmatpush2.bf16.msra.mxu0 %v1632
    %2068 = vmatprep.subr.bf16.mxu0 %v1629
    %2069 = vmatpush2.bf16.msra.mxu0 %v1628
    %2070 = vmatprep.subr.bf16.mxu0 %v1625
    %2071 = vmatpush2.bf16.msra.mxu0 %v1624
    %2072 = vmatprep.subr.bf16.mxu0 %v1621
    %2073 = vmatpush2.bf16.msra.mxu0 %v1620
    %2074 = vmatprep.subr.bf16.mxu0 %v1617
    %2075 = vmatpush2.bf16.msra.mxu0 %v1616
    %2076 = vmatprep.subr.bf16.mxu0 %v1613
    %2077 = vmatpush2.bf16.msra.mxu0 %v1612
    %2078 = vmatprep.mubr.bf16.mxu0 %v425
    %2079 = vmatmul.mubr.bf16.gmra.mxu0 %v424
    %v2080 = vpop.f32.mrf.mxu0
    %v2081 = vadd.f32 %v2040, %v2080
    %v2082 = vpop.f32.mrf.mxu0
    %v2083 = vadd.f32 %v2042, %v2082
    %v2084 = vpop.f32.mrf.mxu0
    %v2085 = vpop.f32.mrf.mxu0
    %2086 = vdwg.mxu0
    %2087 = vmatprep.subr.bf16.mxu0 %v1673
    %2088 = vmatpush1.bf16.msra.mxu0 %v1672
    %2089 = vmatprep.subr.bf16.mxu0 %v1669
    %2090 = vmatpush1.bf16.msra.mxu0 %v1668
    %2091 = vmatprep.subr.bf16.mxu0 %v1665
    %2092 = vmatpush1.bf16.msra.mxu0 %v1664
    %2093 = vmatprep.subr.bf16.mxu0 %v1661
    %2094 = vmatpush1.bf16.msra.mxu0 %v1660
    %2095 = vmatprep.subr.bf16.mxu0 %v1657
    %2096 = vmatpush1.bf16.msra.mxu0 %v1656
    %2097 = vmatprep.subr.bf16.mxu0 %v1653
    %2098 = vmatpush1.bf16.msra.mxu0 %v1652
    %2099 = vmatprep.subr.bf16.mxu0 %v1649
    %2100 = vmatpush1.bf16.msra.mxu0 %v1648
    %2101 = vmatprep.subr.bf16.mxu0 %v1645
    %2102 = vmatpush1.bf16.msra.mxu0 %v1644
    %2103 = vmatprep.subr.bf16.mxu0 %v1705
    %2104 = vmatpush2.bf16.msra.mxu0 %v1704
    %2105 = vmatprep.subr.bf16.mxu0 %v1701
    %2106 = vmatpush2.bf16.msra.mxu0 %v1700
    %2107 = vmatprep.subr.bf16.mxu0 %v1697
    %2108 = vmatpush2.bf16.msra.mxu0 %v1696
    %2109 = vmatprep.subr.bf16.mxu0 %v1693
    %2110 = vmatpush2.bf16.msra.mxu0 %v1692
    %2111 = vmatprep.subr.bf16.mxu0 %v1689
    %2112 = vmatpush2.bf16.msra.mxu0 %v1688
    %2113 = vmatprep.subr.bf16.mxu0 %v1685
    %2114 = vmatpush2.bf16.msra.mxu0 %v1684
    %2115 = vmatprep.subr.bf16.mxu0 %v1681
    %2116 = vmatpush2.bf16.msra.mxu0 %v1680
    %2117 = vmatprep.subr.bf16.mxu0 %v1677
    %2118 = vmatpush2.bf16.msra.mxu0 %v1676
    %2119 = vmatprep.mubr.bf16.mxu0 %v427
    %2120 = vmatmul.mubr.bf16.gmra.mxu0 %v426
    %v2121 = vpop.f32.mrf.mxu0
    %v2122 = vadd.f32 %v2081, %v2121
    %v2123 = vpop.f32.mrf.mxu0
    %v2124 = vadd.f32 %v2083, %v2123
    %v2125 = vpop.f32.mrf.mxu0
    %v2126 = vpop.f32.mrf.mxu0
    %2127 = vdwg.mxu0
    %2128 = vmatprep.subr.bf16.mxu0 %v1483
    %2129 = vmatpush1.bf16.msra.mxu0 %v1482
    %2130 = vmatprep.subr.bf16.mxu0 %v1479
    %2131 = vmatpush1.bf16.msra.mxu0 %v1478
    %2132 = vmatprep.subr.bf16.mxu0 %v1475
    %2133 = vmatpush1.bf16.msra.mxu0 %v1474
    %2134 = vmatprep.subr.bf16.mxu0 %v1471
    %2135 = vmatpush1.bf16.msra.mxu0 %v1470
    %2136 = vmatprep.subr.bf16.mxu0 %v1467
    %2137 = vmatpush1.bf16.msra.mxu0 %v1466
    %2138 = vmatprep.subr.bf16.mxu0 %v1463
    %2139 = vmatpush1.bf16.msra.mxu0 %v1462
    %2140 = vmatprep.subr.bf16.mxu0 %v1459
    %2141 = vmatpush1.bf16.msra.mxu0 %v1458
    %2142 = vmatprep.subr.bf16.mxu0 %v1455
    %2143 = vmatpush1.bf16.msra.mxu0 %v1454
    %2144 = vmatprep.subr.bf16.mxu0 %v1515
    %2145 = vmatpush2.bf16.msra.mxu0 %v1514
    %2146 = vmatprep.subr.bf16.mxu0 %v1511
    %2147 = vmatpush2.bf16.msra.mxu0 %v1510
    %2148 = vmatprep.subr.bf16.mxu0 %v1507
    %2149 = vmatpush2.bf16.msra.mxu0 %v1506
    %2150 = vmatprep.subr.bf16.mxu0 %v1503
    %2151 = vmatpush2.bf16.msra.mxu0 %v1502
    %2152 = vmatprep.subr.bf16.mxu0 %v1499
    %2153 = vmatpush2.bf16.msra.mxu0 %v1498
    %2154 = vmatprep.subr.bf16.mxu0 %v1495
    %2155 = vmatpush2.bf16.msra.mxu0 %v1494
    %2156 = vmatprep.subr.bf16.mxu0 %v1491
    %2157 = vmatpush2.bf16.msra.mxu0 %v1490
    %2158 = vmatprep.subr.bf16.mxu0 %v1487
    %2159 = vmatpush2.bf16.msra.mxu0 %v1486
    %2160 = vmatprep.mubr.bf16.mxu0 %v421
    %2161 = vmatmul.mubr.bf16.gmra.mxu0 %v420
    %v2162 = vpop.f32.mrf.mxu0
    %v2163 = vadd.f32 0.0, %v2162
    %v2164 = vpop.f32.mrf.mxu0
    %v2165 = vadd.f32 0.0, %v2164
    %v2166 = vpop.f32.mrf.mxu0
    %v2167 = vpop.f32.mrf.mxu0
    %2168 = vdwg.mxu0
    %2169 = vmatprep.subr.bf16.mxu0 %v1547
    %2170 = vmatpush1.bf16.msra.mxu0 %v1546
    %2171 = vmatprep.subr.bf16.mxu0 %v1543
    %2172 = vmatpush1.bf16.msra.mxu0 %v1542
    %2173 = vmatprep.subr.bf16.mxu0 %v1539
    %2174 = vmatpush1.bf16.msra.mxu0 %v1538
    %2175 = vmatprep.subr.bf16.mxu0 %v1535
    %2176 = vmatpush1.bf16.msra.mxu0 %v1534
    %2177 = vmatprep.subr.bf16.mxu0 %v1531
    %2178 = vmatpush1.bf16.msra.mxu0 %v1530
    %2179 = vmatprep.subr.bf16.mxu0 %v1527
    %2180 = vmatpush1.bf16.msra.mxu0 %v1526
    %2181 = vmatprep.subr.bf16.mxu0 %v1523
    %2182 = vmatpush1.bf16.msra.mxu0 %v1522
    %2183 = vmatprep.subr.bf16.mxu0 %v1519
    %2184 = vmatpush1.bf16.msra.mxu0 %v1518
    %2185 = vmatprep.subr.bf16.mxu0 %v1579
    %2186 = vmatpush2.bf16.msra.mxu0 %v1578
    %2187 = vmatprep.subr.bf16.mxu0 %v1575
    %2188 = vmatpush2.bf16.msra.mxu0 %v1574
    %2189 = vmatprep.subr.bf16.mxu0 %v1571
    %2190 = vmatpush2.bf16.msra.mxu0 %v1570
    %2191 = vmatprep.subr.bf16.mxu0 %v1567
    %2192 = vmatpush2.bf16.msra.mxu0 %v1566
    %2193 = vmatprep.subr.bf16.mxu0 %v1563
    %2194 = vmatpush2.bf16.msra.mxu0 %v1562
    %2195 = vmatprep.subr.bf16.mxu0 %v1559
    %2196 = vmatpush2.bf16.msra.mxu0 %v1558
    %2197 = vmatprep.subr.bf16.mxu0 %v1555
    %2198 = vmatpush2.bf16.msra.mxu0 %v1554
    %2199 = vmatprep.subr.bf16.mxu0 %v1551
    %2200 = vmatpush2.bf16.msra.mxu0 %v1550
    %2201 = vmatprep.mubr.bf16.mxu0 %v423
    %2202 = vmatmul.mubr.bf16.gmra.mxu0 %v422
    %v2203 = vpop.f32.mrf.mxu0
    %v2204 = vadd.f32 %v2163, %v2203
    %v2205 = vpop.f32.mrf.mxu0
    %v2206 = vadd.f32 %v2165, %v2205
    %v2207 = vpop.f32.mrf.mxu0
    %v2208 = vpop.f32.mrf.mxu0
    %2209 = vdwg.mxu0
    %2210 = vmatprep.subr.bf16.mxu0 %v1611
    %2211 = vmatpush1.bf16.msra.mxu0 %v1610
    %2212 = vmatprep.subr.bf16.mxu0 %v1607
    %2213 = vmatpush1.bf16.msra.mxu0 %v1606
    %2214 = vmatprep.subr.bf16.mxu0 %v1603
    %2215 = vmatpush1.bf16.msra.mxu0 %v1602
    %2216 = vmatprep.subr.bf16.mxu0 %v1599
    %2217 = vmatpush1.bf16.msra.mxu0 %v1598
    %2218 = vmatprep.subr.bf16.mxu0 %v1595
    %2219 = vmatpush1.bf16.msra.mxu0 %v1594
    %2220 = vmatprep.subr.bf16.mxu0 %v1591
    %2221 = vmatpush1.bf16.msra.mxu0 %v1590
    %2222 = vmatprep.subr.bf16.mxu0 %v1587
    %2223 = vmatpush1.bf16.msra.mxu0 %v1586
    %2224 = vmatprep.subr.bf16.mxu0 %v1583
    %2225 = vmatpush1.bf16.msra.mxu0 %v1582
    %2226 = vmatprep.subr.bf16.mxu0 %v1643
    %2227 = vmatpush2.bf16.msra.mxu0 %v1642
    %2228 = vmatprep.subr.bf16.mxu0 %v1639
    %2229 = vmatpush2.bf16.msra.mxu0 %v1638
    %2230 = vmatprep.subr.bf16.mxu0 %v1635
    %2231 = vmatpush2.bf16.msra.mxu0 %v1634
    %2232 = vmatprep.subr.bf16.mxu0 %v1631
    %2233 = vmatpush2.bf16.msra.mxu0 %v1630
    %2234 = vmatprep.subr.bf16.mxu0 %v1627
    %2235 = vmatpush2.bf16.msra.mxu0 %v1626
    %2236 = vmatprep.subr.bf16.mxu0 %v1623
    %2237 = vmatpush2.bf16.msra.mxu0 %v1622
    %2238 = vmatprep.subr.bf16.mxu0 %v1619
    %2239 = vmatpush2.bf16.msra.mxu0 %v1618
    %2240 = vmatprep.subr.bf16.mxu0 %v1615
    %2241 = vmatpush2.bf16.msra.mxu0 %v1614
    %2242 = vmatprep.mubr.bf16.mxu0 %v425
    %2243 = vmatmul.mubr.bf16.gmra.mxu0 %v424
    %v2244 = vpop.f32.mrf.mxu0
    %v2245 = vadd.f32 %v2204, %v2244
    %v2246 = vpop.f32.mrf.mxu0
    %v2247 = vadd.f32 %v2206, %v2246
    %v2248 = vpop.f32.mrf.mxu0
    %v2249 = vpop.f32.mrf.mxu0
    %2250 = vdwg.mxu0
    %2251 = vmatprep.subr.bf16.mxu0 %v1675
    %2252 = vmatpush1.bf16.msra.mxu0 %v1674
    %2253 = vmatprep.subr.bf16.mxu0 %v1671
    %2254 = vmatpush1.bf16.msra.mxu0 %v1670
    %2255 = vmatprep.subr.bf16.mxu0 %v1667
    %2256 = vmatpush1.bf16.msra.mxu0 %v1666
    %2257 = vmatprep.subr.bf16.mxu0 %v1663
    %2258 = vmatpush1.bf16.msra.mxu0 %v1662
    %2259 = vmatprep.subr.bf16.mxu0 %v1659
    %2260 = vmatpush1.bf16.msra.mxu0 %v1658
    %2261 = vmatprep.subr.bf16.mxu0 %v1655
    %2262 = vmatpush1.bf16.msra.mxu0 %v1654
    %2263 = vmatprep.subr.bf16.mxu0 %v1651
    %2264 = vmatpush1.bf16.msra.mxu0 %v1650
    %2265 = vmatprep.subr.bf16.mxu0 %v1647
    %2266 = vmatpush1.bf16.msra.mxu0 %v1646
    %2267 = vmatprep.subr.bf16.mxu0 %v1707
    %2268 = vmatpush2.bf16.msra.mxu0 %v1706
    %2269 = vmatprep.subr.bf16.mxu0 %v1703
    %2270 = vmatpush2.bf16.msra.mxu0 %v1702
    %2271 = vmatprep.subr.bf16.mxu0 %v1699
    %2272 = vmatpush2.bf16.msra.mxu0 %v1698
    %2273 = vmatprep.subr.bf16.mxu0 %v1695
    %2274 = vmatpush2.bf16.msra.mxu0 %v1694
    %2275 = vmatprep.subr.bf16.mxu0 %v1691
    %2276 = vmatpush2.bf16.msra.mxu0 %v1690
    %2277 = vmatprep.subr.bf16.mxu0 %v1687
    %2278 = vmatpush2.bf16.msra.mxu0 %v1686
    %2279 = vmatprep.subr.bf16.mxu0 %v1683
    %2280 = vmatpush2.bf16.msra.mxu0 %v1682
    %2281 = vmatprep.subr.bf16.mxu0 %v1679
    %2282 = vmatpush2.bf16.msra.mxu0 %v1678
    %2283 = vmatprep.mubr.bf16.mxu0 %v427
    %2284 = vmatmul.mubr.bf16.gmra.mxu0 %v426
    %v2285 = vpop.f32.mrf.mxu0
    %v2286 = vadd.f32 %v2245, %v2285
    %v2287 = vpop.f32.mrf.mxu0
    %v2288 = vadd.f32 %v2247, %v2287
    %v2289 = vpop.f32.mrf.mxu0
    %v2290 = vpop.f32.mrf.mxu0
    %2291 = vdwg.mxu0
    %v2294 = vunpack.c.l.b16 %v418
    %v2295 = vunpack.c.h.b16 %v418
    %v2296 = vunpack.c.l.b16 %v419
    %v2297 = vunpack.c.h.b16 %v419
    %v2298 = vpack.c.b16 %v2294, %v2294
    %v2299 = vpack.c.b16 %v2295, %v2295
    %v2300 = vpack.c.b16 %v2296, %v2296
    %v2301 = vpack.c.b16 %v2297, %v2297
    %vm2302 = vcmask 64512
    %v2304 = vsel %vm2302, %v417, 0
    %vm2306 = vcmask 1043456
    %v2308 = vsel %vm2306, %v2298, 0
    %v2311 = vsel %vm2306, %v2299, 0
    %v2314 = vsel %vm2306, %v2300, 0
    %v2317 = vsel %vm2306, %v2301, 0
    %2319 = vmatprep.subr.bf16.mxu0 0
    %2320 = vmatpush1.bf16.msra.mxu0 0
    %2321 = vmatprep.subr.bf16.mxu0 0
    %2322 = vmatpush1.bf16.msra.mxu0 0
    %2323 = vmatprep.subr.bf16.mxu0 0
    %2324 = vmatpush1.bf16.msra.mxu0 0
    %2325 = vmatprep.subr.bf16.mxu0 0
    %2326 = vmatpush1.bf16.msra.mxu0 0
    %2327 = vmatprep.subr.bf16.mxu0 0
    %2328 = vmatpush1.bf16.msra.mxu0 0
    %2329 = vmatprep.subr.bf16.mxu0 0
    %2330 = vmatpush1.bf16.msra.mxu0 0
    %2331 = vmatprep.subr.bf16.mxu0 0
    %2332 = vmatpush1.bf16.msra.mxu0 0
    %2333 = vmatprep.subr.bf16.mxu0 %v2311
    %2334 = vmatpush1.bf16.msra.mxu0 %v2308
    %2335 = vmatprep.subr.bf16.mxu0 0
    %2336 = vmatpush2.bf16.msra.mxu0 0
    %2337 = vmatprep.subr.bf16.mxu0 0
    %2338 = vmatpush2.bf16.msra.mxu0 0
    %2339 = vmatprep.subr.bf16.mxu0 0
    %2340 = vmatpush2.bf16.msra.mxu0 0
    %2341 = vmatprep.subr.bf16.mxu0 0
    %2342 = vmatpush2.bf16.msra.mxu0 0
    %2343 = vmatprep.subr.bf16.mxu0 0
    %2344 = vmatpush2.bf16.msra.mxu0 0
    %2345 = vmatprep.subr.bf16.mxu0 0
    %2346 = vmatpush2.bf16.msra.mxu0 0
    %2347 = vmatprep.subr.bf16.mxu0 0
    %2348 = vmatpush2.bf16.msra.mxu0 0
    %2349 = vmatprep.subr.bf16.mxu0 0
    %2350 = vmatpush2.bf16.msra.mxu0 0
    %2351 = vmatprep.mubr.bf16.mxu0 0
    %2352 = vmatmul.mubr.bf16.gmra.mxu0 %v2304
    %v2353 = vpop.f32.mrf.mxu0
    %v2354 = vadd.f32 %v2122, %v2353
    %v2355 = vpop.f32.mrf.mxu0
    %v2356 = vadd.f32 %v2124, %v2355
    %v2357 = vpop.f32.mrf.mxu0
    %v2358 = vpop.f32.mrf.mxu0
    %2359 = vdwg.mxu0
    %2360 = vmatprep.subr.bf16.mxu0 0
    %2361 = vmatpush1.bf16.msra.mxu0 0
    %2362 = vmatprep.subr.bf16.mxu0 0
    %2363 = vmatpush1.bf16.msra.mxu0 0
    %2364 = vmatprep.subr.bf16.mxu0 0
    %2365 = vmatpush1.bf16.msra.mxu0 0
    %2366 = vmatprep.subr.bf16.mxu0 0
    %2367 = vmatpush1.bf16.msra.mxu0 0
    %2368 = vmatprep.subr.bf16.mxu0 0
    %2369 = vmatpush1.bf16.msra.mxu0 0
    %2370 = vmatprep.subr.bf16.mxu0 0
    %2371 = vmatpush1.bf16.msra.mxu0 0
    %2372 = vmatprep.subr.bf16.mxu0 0
    %2373 = vmatpush1.bf16.msra.mxu0 0
    %2374 = vmatprep.subr.bf16.mxu0 %v2317
    %2375 = vmatpush1.bf16.msra.mxu0 %v2314
    %2376 = vmatprep.subr.bf16.mxu0 0
    %2377 = vmatpush2.bf16.msra.mxu0 0
    %2378 = vmatprep.subr.bf16.mxu0 0
    %2379 = vmatpush2.bf16.msra.mxu0 0
    %2380 = vmatprep.subr.bf16.mxu0 0
    %2381 = vmatpush2.bf16.msra.mxu0 0
    %2382 = vmatprep.subr.bf16.mxu0 0
    %2383 = vmatpush2.bf16.msra.mxu0 0
    %2384 = vmatprep.subr.bf16.mxu0 0
    %2385 = vmatpush2.bf16.msra.mxu0 0
    %2386 = vmatprep.subr.bf16.mxu0 0
    %2387 = vmatpush2.bf16.msra.mxu0 0
    %2388 = vmatprep.subr.bf16.mxu0 0
    %2389 = vmatpush2.bf16.msra.mxu0 0
    %2390 = vmatprep.subr.bf16.mxu0 0
    %2391 = vmatpush2.bf16.msra.mxu0 0
    %2392 = vmatprep.mubr.bf16.mxu0 0
    %2393 = vmatmul.mubr.bf16.gmra.mxu0 %v2304
    %v2394 = vpop.f32.mrf.mxu0
    %v2395 = vadd.f32 %v2286, %v2394
    %v2396 = vpop.f32.mrf.mxu0
    %v2397 = vadd.f32 %v2288, %v2396
    %v2398 = vpop.f32.mrf.mxu0
    %v2399 = vpop.f32.mrf.mxu0
    %2400 = vdwg.mxu0
    %v2401 = vld [vmem:[%s6] sm:$0xf]
    %v2403 = vlaneseq
    %v2404 = vshrl.u32 %v2403, 7
    %v2405 = vsub.s32 0, %v2404
    %v2406 = vrot.slane %v2401, %v2405
    %v2407 = vlaneseq
    %v2408 = vshrl.u32 %v2407, 7
    %v2409 = vsub.s32 1, %v2408
    %v2410 = vrot.slane %v2401, %v2409
    %v2411 = vlaneseq
    %v2412 = vshrl.u32 %v2411, 7
    %v2413 = vsub.s32 2, %v2412
    %v2414 = vrot.slane %v2401, %v2413
    %v2415 = vlaneseq
    %v2416 = vshrl.u32 %v2415, 7
    %v2417 = vsub.s32 3, %v2416
    %v2418 = vrot.slane %v2401, %v2417
    %v2423 = vadd.f32 %v2354, %v2406
    %v2424 = vadd.f32 %v2356, %v2410
    %v2425 = vadd.f32 %v2395, %v2414
    %v2426 = vadd.f32 %v2397, %v2418
    %vm2427 = vcmp.gt.f32.partialorder %v2423, 0.0
    %vm2428 = vcmp.gt.f32.partialorder %v2424, 0.0
    %vm2429 = vcmp.gt.f32.partialorder %v2425, 0.0
    %vm2430 = vcmp.gt.f32.partialorder %v2426, 0.0
    %v2431 = vmul.f32 %v2423, 0.01
    %v2432 = vmul.f32 %v2424, 0.01
    %v2433 = vmul.f32 %v2425, 0.01
    %v2434 = vmul.f32 %v2426, 0.01
    %v2435 = vsel %vm2427, %v2423, %v2431
    %v2436 = vsel %vm2428, %v2424, %v2432
    %v2437 = vsel %vm2429, %v2425, %v2433
    %v2438 = vsel %vm2430, %v2426, %v2434
    %v2439 = vpack.c.bf16 %v2435, %v2435
    %v2440 = vpack.c.bf16 %v2436, %v2436
    %v2441 = vpack.c.bf16 %v2437, %v2437
    %v2442 = vpack.c.bf16 %v2438, %v2438
    %v2443 = vld [vmem:[#allocation14] sm:$0xff]
    %v2444 = vld [vmem:[#allocation14 + $0x8] sm:$0xff]
    %v2445 = vld [vmem:[#allocation14 + $0x10] sm:$0xff]
    %v2446 = vld [vmem:[#allocation14 + $0x18] sm:$0xff]
    %v2447 = vld [vmem:[#allocation14 + $0x20] sm:$0xff]
    %v2448 = vld [vmem:[#allocation14 + $0x28] sm:$0xff]
    %v2449 = vld [vmem:[#allocation14 + $0x30] sm:$0xff]
    %v2450 = vld [vmem:[#allocation14 + $0x38] sm:$0xff]
    %v2451 = vld [vmem:[#allocation14 + $0x40] sm:$0xff]
    %v2452 = vld [vmem:[#allocation14 + $0x48] sm:$0xff]
    %v2453 = vld [vmem:[#allocation14 + $0x50] sm:$0xff]
    %v2454 = vld [vmem:[#allocation14 + $0x58] sm:$0xff]
    %v2455 = vld [vmem:[#allocation14 + $0x60] sm:$0xff]
    %v2456 = vld [vmem:[#allocation14 + $0x68] sm:$0xff]
    %v2457 = vld [vmem:[#allocation14 + $0x70] sm:$0xff]
    %v2458 = vld [vmem:[#allocation14 + $0x78] sm:$0xff]
    %v2459 = vld [vmem:[#allocation14 + $0x80] sm:$0xff]
    %v2460 = vld [vmem:[#allocation14 + $0x88] sm:$0xff]
    %v2461 = vld [vmem:[#allocation14 + $0x90] sm:$0xff]
    %v2462 = vld [vmem:[#allocation14 + $0x98] sm:$0xff]
    %v2463 = vld [vmem:[#allocation14 + $0xa0] sm:$0xff]
    %v2464 = vld [vmem:[#allocation14 + $0xa8] sm:$0xff]
    %v2465 = vld [vmem:[#allocation14 + $0xb0] sm:$0xff]
    %v2466 = vld [vmem:[#allocation14 + $0xb8] sm:$0xff]
    %v2467 = vld [vmem:[#allocation14 + $0xc0] sm:$0xff]
    %v2468 = vld [vmem:[#allocation14 + $0xc8] sm:$0xff]
    %v2469 = vld [vmem:[#allocation14 + $0xd0] sm:$0xff]
    %v2470 = vld [vmem:[#allocation14 + $0xd8] sm:$0xff]
    %v2471 = vld [vmem:[#allocation14 + $0xe0] sm:$0xff]
    %v2472 = vld [vmem:[#allocation14 + $0xe8] sm:$0xff]
    %v2473 = vld [vmem:[#allocation14 + $0xf0] sm:$0xff]
    %v2474 = vld [vmem:[#allocation14 + $0xf8] sm:$0xff]
    %v2475 = vld [vmem:[#allocation14 + $0x100] sm:$0xff]
    %v2476 = vld [vmem:[#allocation14 + $0x108] sm:$0xff]
    %v2477 = vld [vmem:[#allocation14 + $0x110] sm:$0xff]
    %v2478 = vld [vmem:[#allocation14 + $0x118] sm:$0xff]
    %v2479 = vld [vmem:[#allocation14 + $0x120] sm:$0xff]
    %v2480 = vld [vmem:[#allocation14 + $0x128] sm:$0xff]
    %v2481 = vld [vmem:[#allocation14 + $0x130] sm:$0xff]
    %v2482 = vld [vmem:[#allocation14 + $0x138] sm:$0xff]
    %v2483 = vld [vmem:[#allocation14 + $0x140] sm:$0xff]
    %v2484 = vld [vmem:[#allocation14 + $0x148] sm:$0xff]
    %v2485 = vld [vmem:[#allocation14 + $0x150] sm:$0xff]
    %v2486 = vld [vmem:[#allocation14 + $0x158] sm:$0xff]
    %v2487 = vld [vmem:[#allocation14 + $0x160] sm:$0xff]
    %v2488 = vld [vmem:[#allocation14 + $0x168] sm:$0xff]
    %v2489 = vld [vmem:[#allocation14 + $0x170] sm:$0xff]
    %v2490 = vld [vmem:[#allocation14 + $0x178] sm:$0xff]
    %v2491 = vld [vmem:[#allocation14 + $0x180] sm:$0xff]
    %v2492 = vld [vmem:[#allocation14 + $0x188] sm:$0xff]
    %v2493 = vld [vmem:[#allocation14 + $0x190] sm:$0xff]
    %v2494 = vld [vmem:[#allocation14 + $0x198] sm:$0xff]
    %v2495 = vld [vmem:[#allocation14 + $0x1a0] sm:$0xff]
    %v2496 = vld [vmem:[#allocation14 + $0x1a8] sm:$0xff]
    %v2497 = vld [vmem:[#allocation14 + $0x1b0] sm:$0xff]
    %v2498 = vld [vmem:[#allocation14 + $0x1b8] sm:$0xff]
    %v2499 = vld [vmem:[#allocation14 + $0x1c0] sm:$0xff]
    %v2500 = vld [vmem:[#allocation14 + $0x1c8] sm:$0xff]
    %v2501 = vld [vmem:[#allocation14 + $0x1d0] sm:$0xff]
    %v2502 = vld [vmem:[#allocation14 + $0x1d8] sm:$0xff]
    %v2503 = vld [vmem:[#allocation14 + $0x1e0] sm:$0xff]
    %v2504 = vld [vmem:[#allocation14 + $0x1e8] sm:$0xff]
    %v2505 = vld [vmem:[#allocation14 + $0x1f0] sm:$0xff]
    %v2506 = vld [vmem:[#allocation14 + $0x1f8] sm:$0xff]
    %v2507 = vld [vmem:[%s8] sm:$0x3]
    %v2509 = vlaneseq
    %v2510 = vshrl.u32 %v2509, 7
    %v2511 = vsub.s32 0, %v2510
    %v2512 = vrot.slane %v2507, %v2511
    %v2513 = vlaneseq
    %v2514 = vshrl.u32 %v2513, 7
    %v2515 = vsub.s32 1, %v2514
    %v2516 = vrot.slane %v2507, %v2515
    %v2583 = vunpack.c.l.b16 %v2443
    %v2584 = vunpack.c.h.b16 %v2443
    %v2585 = vunpack.c.l.b16 %v2444
    %v2586 = vunpack.c.h.b16 %v2444
    %v2587 = vunpack.c.l.b16 %v2445
    %v2588 = vunpack.c.h.b16 %v2445
    %v2589 = vunpack.c.l.b16 %v2446
    %v2590 = vunpack.c.h.b16 %v2446
    %v2591 = vunpack.c.l.b16 %v2447
    %v2592 = vunpack.c.h.b16 %v2447
    %v2593 = vunpack.c.l.b16 %v2448
    %v2594 = vunpack.c.h.b16 %v2448
    %v2595 = vunpack.c.l.b16 %v2449
    %v2596 = vunpack.c.h.b16 %v2449
    %v2597 = vunpack.c.l.b16 %v2450
    %v2598 = vunpack.c.h.b16 %v2450
    %v2599 = vunpack.c.l.b16 %v2451
    %v2600 = vunpack.c.h.b16 %v2451
    %v2601 = vunpack.c.l.b16 %v2452
    %v2602 = vunpack.c.h.b16 %v2452
    %v2603 = vunpack.c.l.b16 %v2453
    %v2604 = vunpack.c.h.b16 %v2453
    %v2605 = vunpack.c.l.b16 %v2454
    %v2606 = vunpack.c.h.b16 %v2454
    %v2607 = vunpack.c.l.b16 %v2455
    %v2608 = vunpack.c.h.b16 %v2455
    %v2609 = vunpack.c.l.b16 %v2456
    %v2610 = vunpack.c.h.b16 %v2456
    %v2611 = vunpack.c.l.b16 %v2457
    %v2612 = vunpack.c.h.b16 %v2457
    %v2613 = vunpack.c.l.b16 %v2458
    %v2614 = vunpack.c.h.b16 %v2458
    %v2615 = vunpack.c.l.b16 %v2459
    %v2616 = vunpack.c.h.b16 %v2459
    %v2617 = vunpack.c.l.b16 %v2460
    %v2618 = vunpack.c.h.b16 %v2460
    %v2619 = vunpack.c.l.b16 %v2461
    %v2620 = vunpack.c.h.b16 %v2461
    %v2621 = vunpack.c.l.b16 %v2462
    %v2622 = vunpack.c.h.b16 %v2462
    %v2623 = vunpack.c.l.b16 %v2463
    %v2624 = vunpack.c.h.b16 %v2463
    %v2625 = vunpack.c.l.b16 %v2464
    %v2626 = vunpack.c.h.b16 %v2464
    %v2627 = vunpack.c.l.b16 %v2465
    %v2628 = vunpack.c.h.b16 %v2465
    %v2629 = vunpack.c.l.b16 %v2466
    %v2630 = vunpack.c.h.b16 %v2466
    %v2631 = vunpack.c.l.b16 %v2467
    %v2632 = vunpack.c.h.b16 %v2467
    %v2633 = vunpack.c.l.b16 %v2468
    %v2634 = vunpack.c.h.b16 %v2468
    %v2635 = vunpack.c.l.b16 %v2469
    %v2636 = vunpack.c.h.b16 %v2469
    %v2637 = vunpack.c.l.b16 %v2470
    %v2638 = vunpack.c.h.b16 %v2470
    %v2639 = vunpack.c.l.b16 %v2471
    %v2640 = vunpack.c.h.b16 %v2471
    %v2641 = vunpack.c.l.b16 %v2472
    %v2642 = vunpack.c.h.b16 %v2472
    %v2643 = vunpack.c.l.b16 %v2473
    %v2644 = vunpack.c.h.b16 %v2473
    %v2645 = vunpack.c.l.b16 %v2474
    %v2646 = vunpack.c.h.b16 %v2474
    %v2647 = vunpack.c.l.b16 %v2475
    %v2648 = vunpack.c.h.b16 %v2475
    %v2649 = vunpack.c.l.b16 %v2476
    %v2650 = vunpack.c.h.b16 %v2476
    %v2651 = vunpack.c.l.b16 %v2477
    %v2652 = vunpack.c.h.b16 %v2477
    %v2653 = vunpack.c.l.b16 %v2478
    %v2654 = vunpack.c.h.b16 %v2478
    %v2655 = vunpack.c.l.b16 %v2479
    %v2656 = vunpack.c.h.b16 %v2479
    %v2657 = vunpack.c.l.b16 %v2480
    %v2658 = vunpack.c.h.b16 %v2480
    %v2659 = vunpack.c.l.b16 %v2481
    %v2660 = vunpack.c.h.b16 %v2481
    %v2661 = vunpack.c.l.b16 %v2482
    %v2662 = vunpack.c.h.b16 %v2482
    %v2663 = vunpack.c.l.b16 %v2483
    %v2664 = vunpack.c.h.b16 %v2483
    %v2665 = vunpack.c.l.b16 %v2484
    %v2666 = vunpack.c.h.b16 %v2484
    %v2667 = vunpack.c.l.b16 %v2485
    %v2668 = vunpack.c.h.b16 %v2485
    %v2669 = vunpack.c.l.b16 %v2486
    %v2670 = vunpack.c.h.b16 %v2486
    %v2671 = vunpack.c.l.b16 %v2487
    %v2672 = vunpack.c.h.b16 %v2487
    %v2673 = vunpack.c.l.b16 %v2488
    %v2674 = vunpack.c.h.b16 %v2488
    %v2675 = vunpack.c.l.b16 %v2489
    %v2676 = vunpack.c.h.b16 %v2489
    %v2677 = vunpack.c.l.b16 %v2490
    %v2678 = vunpack.c.h.b16 %v2490
    %v2679 = vunpack.c.l.b16 %v2491
    %v2680 = vunpack.c.h.b16 %v2491
    %v2681 = vunpack.c.l.b16 %v2492
    %v2682 = vunpack.c.h.b16 %v2492
    %v2683 = vunpack.c.l.b16 %v2493
    %v2684 = vunpack.c.h.b16 %v2493
    %v2685 = vunpack.c.l.b16 %v2494
    %v2686 = vunpack.c.h.b16 %v2494
    %v2687 = vunpack.c.l.b16 %v2495
    %v2688 = vunpack.c.h.b16 %v2495
    %v2689 = vunpack.c.l.b16 %v2496
    %v2690 = vunpack.c.h.b16 %v2496
    %v2691 = vunpack.c.l.b16 %v2497
    %v2692 = vunpack.c.h.b16 %v2497
    %v2693 = vunpack.c.l.b16 %v2498
    %v2694 = vunpack.c.h.b16 %v2498
    %v2695 = vunpack.c.l.b16 %v2499
    %v2696 = vunpack.c.h.b16 %v2499
    %v2697 = vunpack.c.l.b16 %v2500
    %v2698 = vunpack.c.h.b16 %v2500
    %v2699 = vunpack.c.l.b16 %v2501
    %v2700 = vunpack.c.h.b16 %v2501
    %v2701 = vunpack.c.l.b16 %v2502
    %v2702 = vunpack.c.h.b16 %v2502
    %v2703 = vunpack.c.l.b16 %v2503
    %v2704 = vunpack.c.h.b16 %v2503
    %v2705 = vunpack.c.l.b16 %v2504
    %v2706 = vunpack.c.h.b16 %v2504
    %v2707 = vunpack.c.l.b16 %v2505
    %v2708 = vunpack.c.h.b16 %v2505
    %v2709 = vunpack.c.l.b16 %v2506
    %v2710 = vunpack.c.h.b16 %v2506
    %v2711 = vpack.c.b16 %v2585, %v2583
    %v2712 = vpack.c.b16 %v2586, %v2584
    %v2713 = vpack.c.b16 %v2589, %v2587
    %v2714 = vpack.c.b16 %v2590, %v2588
    %v2715 = vpack.c.b16 %v2593, %v2591
    %v2716 = vpack.c.b16 %v2594, %v2592
    %v2717 = vpack.c.b16 %v2597, %v2595
    %v2718 = vpack.c.b16 %v2598, %v2596
    %v2719 = vpack.c.b16 %v2601, %v2599
    %v2720 = vpack.c.b16 %v2602, %v2600
    %v2721 = vpack.c.b16 %v2605, %v2603
    %v2722 = vpack.c.b16 %v2606, %v2604
    %v2723 = vpack.c.b16 %v2609, %v2607
    %v2724 = vpack.c.b16 %v2610, %v2608
    %v2725 = vpack.c.b16 %v2613, %v2611
    %v2726 = vpack.c.b16 %v2614, %v2612
    %v2727 = vpack.c.b16 %v2617, %v2615
    %v2728 = vpack.c.b16 %v2618, %v2616
    %v2729 = vpack.c.b16 %v2621, %v2619
    %v2730 = vpack.c.b16 %v2622, %v2620
    %v2731 = vpack.c.b16 %v2625, %v2623
    %v2732 = vpack.c.b16 %v2626, %v2624
    %v2733 = vpack.c.b16 %v2629, %v2627
    %v2734 = vpack.c.b16 %v2630, %v2628
    %v2735 = vpack.c.b16 %v2633, %v2631
    %v2736 = vpack.c.b16 %v2634, %v2632
    %v2737 = vpack.c.b16 %v2637, %v2635
    %v2738 = vpack.c.b16 %v2638, %v2636
    %v2739 = vpack.c.b16 %v2641, %v2639
    %v2740 = vpack.c.b16 %v2642, %v2640
    %v2741 = vpack.c.b16 %v2645, %v2643
    %v2742 = vpack.c.b16 %v2646, %v2644
    %v2743 = vpack.c.b16 %v2649, %v2647
    %v2744 = vpack.c.b16 %v2650, %v2648
    %v2745 = vpack.c.b16 %v2653, %v2651
    %v2746 = vpack.c.b16 %v2654, %v2652
    %v2747 = vpack.c.b16 %v2657, %v2655
    %v2748 = vpack.c.b16 %v2658, %v2656
    %v2749 = vpack.c.b16 %v2661, %v2659
    %v2750 = vpack.c.b16 %v2662, %v2660
    %v2751 = vpack.c.b16 %v2665, %v2663
    %v2752 = vpack.c.b16 %v2666, %v2664
    %v2753 = vpack.c.b16 %v2669, %v2667
    %v2754 = vpack.c.b16 %v2670, %v2668
    %v2755 = vpack.c.b16 %v2673, %v2671
    %v2756 = vpack.c.b16 %v2674, %v2672
    %v2757 = vpack.c.b16 %v2677, %v2675
    %v2758 = vpack.c.b16 %v2678, %v2676
    %v2759 = vpack.c.b16 %v2681, %v2679
    %v2760 = vpack.c.b16 %v2682, %v2680
    %v2761 = vpack.c.b16 %v2685, %v2683
    %v2762 = vpack.c.b16 %v2686, %v2684
    %v2763 = vpack.c.b16 %v2689, %v2687
    %v2764 = vpack.c.b16 %v2690, %v2688
    %v2765 = vpack.c.b16 %v2693, %v2691
    %v2766 = vpack.c.b16 %v2694, %v2692
    %v2767 = vpack.c.b16 %v2697, %v2695
    %v2768 = vpack.c.b16 %v2698, %v2696
    %v2769 = vpack.c.b16 %v2701, %v2699
    %v2770 = vpack.c.b16 %v2702, %v2700
    %v2771 = vpack.c.b16 %v2705, %v2703
    %v2772 = vpack.c.b16 %v2706, %v2704
    %v2773 = vpack.c.b16 %v2709, %v2707
    %v2774 = vpack.c.b16 %v2710, %v2708
    %2839 = vmatprep.subr.bf16.mxu0 %v2726
    %2840 = vmatpush1.bf16.msra.mxu0 %v2725
    %2841 = vmatprep.subr.bf16.mxu0 %v2724
    %2842 = vmatpush1.bf16.msra.mxu0 %v2723
    %2843 = vmatprep.subr.bf16.mxu0 %v2722
    %2844 = vmatpush1.bf16.msra.mxu0 %v2721
    %2845 = vmatprep.subr.bf16.mxu0 %v2720
    %2846 = vmatpush1.bf16.msra.mxu0 %v2719
    %2847 = vmatprep.subr.bf16.mxu0 %v2718
    %2848 = vmatpush1.bf16.msra.mxu0 %v2717
    %2849 = vmatprep.subr.bf16.mxu0 %v2716
    %2850 = vmatpush1.bf16.msra.mxu0 %v2715
    %2851 = vmatprep.subr.bf16.mxu0 %v2714
    %2852 = vmatpush1.bf16.msra.mxu0 %v2713
    %2853 = vmatprep.subr.bf16.mxu0 %v2712
    %2854 = vmatpush1.bf16.msra.mxu0 %v2711
    %2855 = vmatprep.subr.bf16.mxu0 %v2742
    %2856 = vmatpush2.bf16.msra.mxu0 %v2741
    %2857 = vmatprep.subr.bf16.mxu0 %v2740
    %2858 = vmatpush2.bf16.msra.mxu0 %v2739
    %2859 = vmatprep.subr.bf16.mxu0 %v2738
    %2860 = vmatpush2.bf16.msra.mxu0 %v2737
    %2861 = vmatprep.subr.bf16.mxu0 %v2736
    %2862 = vmatpush2.bf16.msra.mxu0 %v2735
    %2863 = vmatprep.subr.bf16.mxu0 %v2734
    %2864 = vmatpush2.bf16.msra.mxu0 %v2733
    %2865 = vmatprep.subr.bf16.mxu0 %v2732
    %2866 = vmatpush2.bf16.msra.mxu0 %v2731
    %2867 = vmatprep.subr.bf16.mxu0 %v2730
    %2868 = vmatpush2.bf16.msra.mxu0 %v2729
    %2869 = vmatprep.subr.bf16.mxu0 %v2728
    %2870 = vmatpush2.bf16.msra.mxu0 %v2727
    %2871 = vmatprep.mubr.bf16.mxu0 %v2440
    %2872 = vmatmul.mubr.bf16.gmra.mxu0 %v2439
    %v2873 = vpop.f32.mrf.mxu0
    %v2874 = vadd.f32 %v2512, %v2873
    %v2875 = vpop.f32.mrf.mxu0
    %v2876 = vadd.f32 %v2516, %v2875
    %v2877 = vpop.f32.mrf.mxu0
    %v2878 = vpop.f32.mrf.mxu0
    %2879 = vdwg.mxu0
    %2880 = vmatprep.subr.bf16.mxu0 %v2758
    %2881 = vmatpush1.bf16.msra.mxu0 %v2757
    %2882 = vmatprep.subr.bf16.mxu0 %v2756
    %2883 = vmatpush1.bf16.msra.mxu0 %v2755
    %2884 = vmatprep.subr.bf16.mxu0 %v2754
    %2885 = vmatpush1.bf16.msra.mxu0 %v2753
    %2886 = vmatprep.subr.bf16.mxu0 %v2752
    %2887 = vmatpush1.bf16.msra.mxu0 %v2751
    %2888 = vmatprep.subr.bf16.mxu0 %v2750
    %2889 = vmatpush1.bf16.msra.mxu0 %v2749
    %2890 = vmatprep.subr.bf16.mxu0 %v2748
    %2891 = vmatpush1.bf16.msra.mxu0 %v2747
    %2892 = vmatprep.subr.bf16.mxu0 %v2746
    %2893 = vmatpush1.bf16.msra.mxu0 %v2745
    %2894 = vmatprep.subr.bf16.mxu0 %v2744
    %2895 = vmatpush1.bf16.msra.mxu0 %v2743
    %2896 = vmatprep.subr.bf16.mxu0 %v2774
    %2897 = vmatpush2.bf16.msra.mxu0 %v2773
    %2898 = vmatprep.subr.bf16.mxu0 %v2772
    %2899 = vmatpush2.bf16.msra.mxu0 %v2771
    %2900 = vmatprep.subr.bf16.mxu0 %v2770
    %2901 = vmatpush2.bf16.msra.mxu0 %v2769
    %2902 = vmatprep.subr.bf16.mxu0 %v2768
    %2903 = vmatpush2.bf16.msra.mxu0 %v2767
    %2904 = vmatprep.subr.bf16.mxu0 %v2766
    %2905 = vmatpush2.bf16.msra.mxu0 %v2765
    %2906 = vmatprep.subr.bf16.mxu0 %v2764
    %2907 = vmatpush2.bf16.msra.mxu0 %v2763
    %2908 = vmatprep.subr.bf16.mxu0 %v2762
    %2909 = vmatpush2.bf16.msra.mxu0 %v2761
    %2910 = vmatprep.subr.bf16.mxu0 %v2760
    %2911 = vmatpush2.bf16.msra.mxu0 %v2759
    %2912 = vmatprep.mubr.bf16.mxu0 %v2442
    %2913 = vmatmul.mubr.bf16.gmra.mxu0 %v2441
    %v2914 = vpop.f32.mrf.mxu0
    %v2915 = vadd.f32 %v2874, %v2914
    %v2916 = vpop.f32.mrf.mxu0
    %v2917 = vadd.f32 %v2876, %v2916
    %v2918 = vpop.f32.mrf.mxu0
    %v2919 = vpop.f32.mrf.mxu0
    %2920 = vdwg.mxu0
    %vm2921 = vcmp.gt.f32.partialorder %v2915, 0.0
    %vm2922 = vcmp.gt.f32.partialorder %v2917, 0.0
    %v2923 = vmul.f32 %v2915, 0.01
    %v2924 = vmul.f32 %v2917, 0.01
    %v2925 = vsel %vm2921, %v2915, %v2923
    %v2926 = vsel %vm2922, %v2917, %v2924
    %v2927 = vpack.c.bf16 %v2925, %v2925
    %v2928 = vpack.c.bf16 %v2926, %v2926
    %v2929 = vld [vmem:[#allocation15] sm:$0xf]
    %v2930 = vld [vmem:[#allocation15 + $0x4] sm:$0xf]
    %v2931 = vld [vmem:[#allocation15 + $0x8] sm:$0xf]
    %v2932 = vld [vmem:[#allocation15 + $0xc] sm:$0xf]
    %v2933 = vld [vmem:[#allocation15 + $0x10] sm:$0xf]
    %v2934 = vld [vmem:[#allocation15 + $0x14] sm:$0xf]
    %v2935 = vld [vmem:[#allocation15 + $0x18] sm:$0xf]
    %v2936 = vld [vmem:[#allocation15 + $0x1c] sm:$0xf]
    %v2937 = vld [vmem:[#allocation15 + $0x20] sm:$0xf]
    %v2938 = vld [vmem:[#allocation15 + $0x24] sm:$0xf]
    %v2939 = vld [vmem:[#allocation15 + $0x28] sm:$0xf]
    %v2940 = vld [vmem:[#allocation15 + $0x2c] sm:$0xf]
    %v2941 = vld [vmem:[#allocation15 + $0x30] sm:$0xf]
    %v2942 = vld [vmem:[#allocation15 + $0x34] sm:$0xf]
    %v2943 = vld [vmem:[#allocation15 + $0x38] sm:$0xf]
    %v2944 = vld [vmem:[#allocation15 + $0x3c] sm:$0xf]
    %v2945 = vld [vmem:[#allocation15 + $0x40] sm:$0xf]
    %v2946 = vld [vmem:[#allocation15 + $0x44] sm:$0xf]
    %v2947 = vld [vmem:[#allocation15 + $0x48] sm:$0xf]
    %v2948 = vld [vmem:[#allocation15 + $0x4c] sm:$0xf]
    %v2949 = vld [vmem:[#allocation15 + $0x50] sm:$0xf]
    %v2950 = vld [vmem:[#allocation15 + $0x54] sm:$0xf]
    %v2951 = vld [vmem:[#allocation15 + $0x58] sm:$0xf]
    %v2952 = vld [vmem:[#allocation15 + $0x5c] sm:$0xf]
    %v2953 = vld [vmem:[#allocation15 + $0x60] sm:$0xf]
    %v2954 = vld [vmem:[#allocation15 + $0x64] sm:$0xf]
    %v2955 = vld [vmem:[#allocation15 + $0x68] sm:$0xf]
    %v2956 = vld [vmem:[#allocation15 + $0x6c] sm:$0xf]
    %v2957 = vld [vmem:[#allocation15 + $0x70] sm:$0xf]
    %v2958 = vld [vmem:[#allocation15 + $0x74] sm:$0xf]
    %v2959 = vld [vmem:[#allocation15 + $0x78] sm:$0xf]
    %v2960 = vld [vmem:[#allocation15 + $0x7c] sm:$0xf]
    %v2961 = vld [vmem:[%s10] sm:$0x1]
    %v2963 = vlaneseq
    %v2964 = vshrl.u32 %v2963, 7
    %v2965 = vsub.s32 0, %v2964
    %v2966 = vrot.slane %v2961, %v2965
    %v3000 = vunpack.c.l.b16 %v2929
    %v3001 = vunpack.c.l.b16 %v2930
    %v3002 = vunpack.c.l.b16 %v2931
    %v3003 = vunpack.c.l.b16 %v2932
    %v3004 = vunpack.c.l.b16 %v2933
    %v3005 = vunpack.c.l.b16 %v2934
    %v3006 = vunpack.c.l.b16 %v2935
    %v3007 = vunpack.c.l.b16 %v2936
    %v3008 = vunpack.c.l.b16 %v2937
    %v3009 = vunpack.c.l.b16 %v2938
    %v3010 = vunpack.c.l.b16 %v2939
    %v3011 = vunpack.c.l.b16 %v2940
    %v3012 = vunpack.c.l.b16 %v2941
    %v3013 = vunpack.c.l.b16 %v2942
    %v3014 = vunpack.c.l.b16 %v2943
    %v3015 = vunpack.c.l.b16 %v2944
    %v3016 = vunpack.c.l.b16 %v2945
    %v3017 = vunpack.c.l.b16 %v2946
    %v3018 = vunpack.c.l.b16 %v2947
    %v3019 = vunpack.c.l.b16 %v2948
    %v3020 = vunpack.c.l.b16 %v2949
    %v3021 = vunpack.c.l.b16 %v2950
    %v3022 = vunpack.c.l.b16 %v2951
    %v3023 = vunpack.c.l.b16 %v2952
    %v3024 = vunpack.c.l.b16 %v2953
    %v3025 = vunpack.c.l.b16 %v2954
    %v3026 = vunpack.c.l.b16 %v2955
    %v3027 = vunpack.c.l.b16 %v2956
    %v3028 = vunpack.c.l.b16 %v2957
    %v3029 = vunpack.c.l.b16 %v2958
    %v3030 = vunpack.c.l.b16 %v2959
    %v3031 = vunpack.c.l.b16 %v2960
    %v3032 = vpack.c.b16 %v3001, %v3000
    %v3033 = vpack.c.b16 %v3003, %v3002
    %v3034 = vpack.c.b16 %v3005, %v3004
    %v3035 = vpack.c.b16 %v3007, %v3006
    %v3036 = vpack.c.b16 %v3009, %v3008
    %v3037 = vpack.c.b16 %v3011, %v3010
    %v3038 = vpack.c.b16 %v3013, %v3012
    %v3039 = vpack.c.b16 %v3015, %v3014
    %v3040 = vpack.c.b16 %v3017, %v3016
    %v3041 = vpack.c.b16 %v3019, %v3018
    %v3042 = vpack.c.b16 %v3021, %v3020
    %v3043 = vpack.c.b16 %v3023, %v3022
    %v3044 = vpack.c.b16 %v3025, %v3024
    %v3045 = vpack.c.b16 %v3027, %v3026
    %v3046 = vpack.c.b16 %v3029, %v3028
    %v3047 = vpack.c.b16 %v3031, %v3030
    %3064 = vmatprep.subr.bf16.mxu0 0
    %3065 = vmatpush1.bf16.msra.mxu0 %v3039
    %3066 = vmatprep.subr.bf16.mxu0 0
    %3067 = vmatpush1.bf16.msra.mxu0 %v3038
    %3068 = vmatprep.subr.bf16.mxu0 0
    %3069 = vmatpush1.bf16.msra.mxu0 %v3037
    %3070 = vmatprep.subr.bf16.mxu0 0
    %3071 = vmatpush1.bf16.msra.mxu0 %v3036
    %3072 = vmatprep.subr.bf16.mxu0 0
    %3073 = vmatpush1.bf16.msra.mxu0 %v3035
    %3074 = vmatprep.subr.bf16.mxu0 0
    %3075 = vmatpush1.bf16.msra.mxu0 %v3034
    %3076 = vmatprep.subr.bf16.mxu0 0
    %3077 = vmatpush1.bf16.msra.mxu0 %v3033
    %3078 = vmatprep.subr.bf16.mxu0 0
    %3079 = vmatpush1.bf16.msra.mxu0 %v3032
    %3080 = vmatprep.subr.bf16.mxu0 0
    %3081 = vmatpush2.bf16.msra.mxu0 %v3047
    %3082 = vmatprep.subr.bf16.mxu0 0
    %3083 = vmatpush2.bf16.msra.mxu0 %v3046
    %3084 = vmatprep.subr.bf16.mxu0 0
    %3085 = vmatpush2.bf16.msra.mxu0 %v3045
    %3086 = vmatprep.subr.bf16.mxu0 0
    %3087 = vmatpush2.bf16.msra.mxu0 %v3044
    %3088 = vmatprep.subr.bf16.mxu0 0
    %3089 = vmatpush2.bf16.msra.mxu0 %v3043
    %3090 = vmatprep.subr.bf16.mxu0 0
    %3091 = vmatpush2.bf16.msra.mxu0 %v3042
    %3092 = vmatprep.subr.bf16.mxu0 0
    %3093 = vmatpush2.bf16.msra.mxu0 %v3041
    %3094 = vmatprep.subr.bf16.mxu0 0
    %3095 = vmatpush2.bf16.msra.mxu0 %v3040
    %3096 = vmatprep.mubr.bf16.mxu0 %v2928
    %3097 = vmatmul.mubr.bf16.gmra.mxu0 %v2927
    %v3098 = vpop.f32.mrf.mxu0
    %v3099 = vadd.f32 %v2966, %v3098
    %v3100 = vpop.f32.mrf.mxu0
    %v3101 = vpop.f32.mrf.mxu0
    %v3102 = vpop.f32.mrf.mxu0
    %3103 = vdwg.mxu0
    %vm3104 = vcmp.gt.f32.partialorder %v3099, 0.0
    %v3105 = vmul.f32 %v3099, 0.01
    %v3106 = vsel %vm3104, %v3099, %v3105
    %v3107 = vld [vmem:[%s11] sm:$0x1]
    %v3109 = vlaneseq
    %v3110 = vshrl.u32 %v3109, 7
    %v3111 = vsub.s32 0, %v3110
    %v3112 = vrot.slane %v3107, %v3111
    %v3114 = vmul.f32 %v3106, %v3112
    %3115 = vadd.xlane.f32.xlu0 %v3114
    %v3116 = vpop.xlane.xlu0 %3115
    %s3117 = sld [smem:[#allocation2]]
    %v3118 = vstv %s3117
    %v3119 = vadd.f32 %v3116, %v3118
    %v3121 = vlaneseq
    %v3122 = vand.u32 %v3121, 127
    %v3123 = vlaneseq
    %v3124 = vshrl.u32 %v3123, 7
    %v3125 = vsub.s32 %v3122, %v3124
    %v3126 = vrot.slane %v3119, %v3125
    %vm3128 = vcmask 57344
    %3129 = vst.msk [vmem:[#allocation17] sm:$0x1] %vm3128, %v3126
    // Predicated region
    $region86: #{tpu_custom_call.1} parent=1 // pred_check
      _
    $region87: #{tpu_custom_call.1} parent=1 // pred_check_branch
      %3131 = sbr.rel (0) target = $region89
    $region88: #{tpu_custom_call.1} parent=1 // pred_region
      %s3133 = ssub.s32 16, 16
      %3134 = vsyncadd [#allocation5], %s3133
      %s3136 = sshll.u32 [#allocation17], 4
      %s3137 = int_to_ptr.vmem [resolvable:$true] %s3136
      %3139 = dma.vmem_to_hbm [thread:$0]  %s3137, 16, %s13, [#allocation5]
    $region89: #{tpu_custom_call.1} parent=1 // pred_fallthru
      _
    // Predicated region
    $region90: #{tpu_custom_call.1} parent=1 // pred_check
      _
    $region91: #{tpu_custom_call.1} parent=1 // pred_check_branch
      %3141 = sbr.rel (0) target = $region93
    $region92: #{tpu_custom_call.1} parent=1 // pred_region
      %3142 = dma.done [#allocation5], 16
    $region93: #{tpu_custom_call.1} parent=1 // pred_fallthru
      _
    %3143 = vsyncpa [#allocation4], 1
    %3144 = vsyncpa [#allocation7], 1
    %3145 = vsyncpa [#allocation10], 1
    %3146 = vsyncpa [#allocation13], 1
    %3147 = vsyncpa [#allocation16], 1
    %3148 = vsyncpa [#allocation5], 1

</llo_original>
